<compile_context>
chip_gen: v7x
topology: tpu7x:2x2x1
jax: 0.10.0
libtpu: 0.0.40
codegen_flags: <defaults>
</compile_context>

<pallas_src>
import functools

import jax
import jax.numpy as jnp
from jax.experimental import pallas as pl
from jax.experimental.pallas import tpu as pltpu


def _round_up(x, m):
    return ((x + m - 1) // m) * m


# ---------------------------------------------------------------------------
# Fused RNN_Decoder kernel (grid over FCP chunks, reduction into o_ref)
# ---------------------------------------------------------------------------
def decoder_kernel(enc_ref, x_ref, wih_ref, whh_ref, b_ref,
                   wfc_ref, bfc_ref, wfe_ref, wfh_ref, bfin_ref,
                   o_ref, h_scratch, *, B, NF, EMB, HP):
    # enc_ref : (B, ENC)          f32   encoder output
    # x_ref   : (B, NF, ML)       f32   dec_inp; LSTM: seq_len=B, batch=NF
    # wih_ref : (ML, 4*HP)        bf16  gate order i,f,g,o; hidden padded to HP
    # whh_ref : (HP, 4*HP)        bf16
    # b_ref   : (1, 4*HP)         f32   b_ih + b_hh fused, gate-padded
    # wfc_ref : (NF, EMB, FC_CHUNK) bf16  rnn_fc weight chunk (COMPACT rows)
    # bfc_ref : (1, FC_CHUNK)     f32
    # wfe_ref : (ENC, CN)         f32   final_layer weight, enc_out half
    # wfh_ref : (FC_CHUNK, CN)    bf16  final_layer weight, hidden half (chunk)
    # bfin_ref: (1, CN)           f32
    # o_ref   : (B, CN)           f32   resident accumulator across chunks
    # h_scratch: (B, NF, EMB)     f32 VMEM — compact per-timestep hidden states
    f32 = jnp.float32
    bf16 = jnp.bfloat16
    j = pl.program_id(0)

    # ---- chunk 0 only: LSTM recurrence + output init (enc branch) ----------
    @pl.when(j == 0)
    def _lstm_and_init():
        ML = x_ref.shape[-1]
        # Input-side gate pre-activations for ALL timesteps in one MXU push;
        # bias broadcast hoisted out of the recurrence.
        x2d = x_ref[...].reshape(B * NF, ML).astype(bf16)
        xg = jnp.dot(x2d, wih_ref[...], preferred_element_type=f32) + b_ref[...]

        whh = whh_ref[...]                       # hoisted: loaded once
        h = jnp.zeros((NF, HP), f32)
        c = jnp.zeros((NF, HP), f32)
        for t in range(B):                       # tiny static trip count (B=2)
            gates = (xg[t * NF:(t + 1) * NF, :]  # sublane-aligned slice
                     + jnp.dot(h.astype(bf16), whh,
                               preferred_element_type=f32))
            # 128-lane-aligned gate slices (HP == 128 padding).
            i_g = jax.nn.sigmoid(gates[:, 0 * HP:1 * HP])
            f_g = jax.nn.sigmoid(gates[:, 1 * HP:2 * HP])
            g_g = jnp.tanh(gates[:, 2 * HP:3 * HP])
            o_g = jax.nn.sigmoid(gates[:, 3 * HP:4 * HP])
            c = f_g * c + i_g * g_g
            h = o_g * jnp.tanh(c)
            h_scratch[t] = h[:, :EMB]            # store only the real lanes

        # Initialize output accumulator with the enc_out branch of the
        # split-K final_layer (kept f32 for parity) + bias.
        o_ref[...] = (jnp.dot(enc_ref[...], wfe_ref[...],
                              preferred_element_type=f32)
                      + bfin_ref[...]).astype(o_ref.dtype)

    # ---- every chunk: rnn_fc for this FCP chunk (compact weights, no
    #      lane-crossing reshape) then accumulate final_layer split-K --------
    FC_CHUNK = wfc_ref.shape[-1]
    hid = h_scratch[...]                         # (B, NF, EMB), tiny
    acc = jnp.zeros((B, FC_CHUNK), f32)
    for f in range(NF):                          # per-feature row-block matmuls
        acc = acc + jnp.dot(hid[:, f, :].astype(bf16), wfc_ref[f],
                            preferred_element_type=f32)
    hidden_chunk = acc + bfc_ref[...]            # (B, FC_CHUNK)

    o_ref[...] += jnp.dot(hidden_chunk.astype(bf16), wfh_ref[...],
                          preferred_element_type=f32)
    # TODO(synk): dropout is identity in eval mode.


def rnn_decoder_forward(enc_out, dec_inp, p):
    B, NF, ML = dec_inp.shape
    HP = p["whh"].shape[0]               # padded hidden dim (static, 128)
    EMB = p["wfc"].shape[1]              # true embedding_dim
    FCP = p["wfc"].shape[-1]             # rnn_fc output dim padded to lanes
    ENC = enc_out.shape[-1]
    CN = p["b_final"].shape[-1]          # class_n

    # 2-4 chunks, each >= 256 lanes, so weight DMA pipelines behind compute
    # without grid-step overhead eating the win.
    if FCP % 512 == 0:
        FC_CHUNK = 512
    elif FCP % 256 == 0:
        FC_CHUNK = 256
    else:
        FC_CHUNK = FCP
    n_chunks = FCP // FC_CHUNK

    kern = functools.partial(decoder_kernel, B=B, NF=NF, EMB=EMB, HP=HP)

    in_specs = [
        pl.BlockSpec((B, ENC), lambda j: (0, 0)),              # enc_out
        pl.BlockSpec((B, NF, ML), lambda j: (0, 0, 0)),        # dec_inp
        pl.BlockSpec(p["wih"].shape, lambda j: (0, 0)),        # wih
        pl.BlockSpec(p["whh"].shape, lambda j: (0, 0)),        # whh
        pl.BlockSpec(p["b_lstm"].shape, lambda j: (0, 0)),     # b_lstm
        pl.BlockSpec((NF, EMB, FC_CHUNK), lambda j: (0, 0, j)),  # wfc chunk
        pl.BlockSpec((1, FC_CHUNK), lambda j: (0, j)),         # bfc chunk
        pl.BlockSpec((ENC, CN), lambda j: (0, 0)),             # wfe (f32)
        pl.BlockSpec((FC_CHUNK, CN), lambda j: (j, 0)),        # wfh chunk
        pl.BlockSpec((1, CN), lambda j: (0, 0)),               # b_final
    ]

    return pl.pallas_call(
        kern,
        grid=(n_chunks,),
        in_specs=in_specs,
        out_specs=pl.BlockSpec((B, CN), lambda j: (0, 0)),     # resident acc
        out_shape=jax.ShapeDtypeStruct((B, CN), jnp.float32),
        scratch_shapes=[pltpu.VMEM((B, NF, EMB), jnp.float32)],
        compiler_params=pltpu.CompilerParams(
            dimension_semantics=("arbitrary",)),
    )(enc_out, dec_inp, p["wih"], p["whh"], p["b_lstm"],
      p["wfc"], p["bfc"], p["wfe"], p["wfh"], p["b_final"])


# ---------------------------------------------------------------------------
# Parameter preparation: PyTorch layout -> padded / transposed weights.
# Runs once outside jit (zero runtime cost).
# ---------------------------------------------------------------------------
def prepare_params(raw, *, embedding_dim, num_features, enc_dim, lane=128):
    EMB = embedding_dim
    NF = num_features
    HP = _round_up(EMB, lane)
    f32, bf16 = jnp.float32, jnp.bfloat16

    def pad_gate_cols(w):                     # (K, 4*EMB) -> (K, 4*HP)
        K = w.shape[0]
        w = w.reshape(K, 4, EMB)
        w = jnp.pad(w, ((0, 0), (0, 0), (0, HP - EMB)))
        return w.reshape(K, 4 * HP)

    wih = pad_gate_cols(raw["w_ih"].T).astype(bf16)                 # (ML, 4HP)
    whh = jnp.pad(pad_gate_cols(raw["w_hh"].T),
                  ((0, HP - EMB), (0, 0))).astype(bf16)             # (HP, 4HP)
    b_lstm = pad_gate_cols((raw["b_ih"] + raw["b_hh"])[None, :]).astype(f32)

    # rnn_fc: keep contraction rows COMPACT (no EMB->HP pad) and lay out as
    # (NF, EMB, FCP) so the kernel takes clean per-feature row blocks.
    # Output cols padded to a lane multiple (padded cols stay zero).
    w_fc = raw["w_rnn_fc"].T                                        # (NF*EMB, FC)
    FC = w_fc.shape[1]
    FCP = _round_up(FC, lane)
    w_fc = jnp.pad(w_fc, ((0, 0), (0, FCP - FC)))
    wfc = w_fc.reshape(NF, EMB, FCP).astype(bf16)
    bfc = jnp.pad(raw["b_rnn_fc"][None, :],
                  ((0, 0), (0, FCP - FC))).astype(f32)

    # final_layer: split-K (concat eliminated).  enc branch kept f32 for
    # parity with the f32 reference; hidden branch rows padded FC->FCP.
    w_fin = raw["w_final"]                                          # (CN, ENC+FC)
    wfe = w_fin[:, :enc_dim].T.astype(f32)                          # (ENC, CN)
    wfh = jnp.pad(w_fin[:, enc_dim:].T,
                  ((0, FCP - FC), (0, 0))).astype(bf16)             # (FCP, CN)
    b_final = raw["b_final"][None, :].astype(f32)                   # (1, CN)

    return dict(wih=wih, whh=whh, b_lstm=b_lstm, wfc=wfc, bfc=bfc,
                wfe=wfe, wfh=wfh, b_final=b_final)


# ---------------------------------------------------------------------------
# Pure-JAX f32 reference (mirrors the PyTorch module) for a sanity check.
# ---------------------------------------------------------------------------
def reference_forward(enc_out, dec_inp, raw):
    EMB = raw["w_hh"].shape[1]
    B = dec_inp.shape[0]
    w_ih, w_hh = raw["w_ih"], raw["w_hh"]
    b = raw["b_ih"] + raw["b_hh"]

    def step(carry, x_t):                  # x_t: (NF, ML)
        h, c = carry
        gates = x_t @ w_ih.T + h @ w_hh.T + b
        i = jax.nn.sigmoid(gates[:, 0 * EMB:1 * EMB])
        f = jax.nn.sigmoid(gates[:, 1 * EMB:2 * EMB])
        g = jnp.tanh(gates[:, 2 * EMB:3 * EMB])
        o = jax.nn.sigmoid(gates[:, 3 * EMB:4 * EMB])
        c = f * c + i * g
        h = o * jnp.tanh(c)
        return (h, c), h

    nf = dec_inp.shape[1]
    init = (jnp.zeros((nf, EMB), jnp.float32), jnp.zeros((nf, EMB), jnp.float32))
    _, hs = jax.lax.scan(step, init, dec_inp)          # (B, NF, EMB)
    hidden = hs.reshape(B, -1) @ raw["w_rnn_fc"].T + raw["b_rnn_fc"]
    concat = jnp.concatenate([enc_out, hidden], axis=1)
    return concat @ raw["w_final"].T + raw["b_final"]


# ---------------------------------------------------------------------------
# main
# ---------------------------------------------------------------------------
if __name__ == "__main__":
    # Small shapes consistent with RNN_Decoder; the 1000 / 1000+1000 dims are
    # hard-coded in the module and kept exactly.
    B = 2                 # dec_inp dim 0 == LSTM seq_len == batch of the model
    MAX_LEN = 16          # LSTM input_size
    EMB = 32              # embedding_dim (LSTM hidden)
    NUM_FEATURES = 8      # LSTM "batch" (dec_inp dim 1)
    CLASS_N = 32
    ENC_DIM = 1000        # enc_out feature dim (final_layer in = 1000 + 1000)
    FC_DIM = 1000         # rnn_fc output dim (hard-coded in the module)

    key = jax.random.PRNGKey(0)
    ks = jax.random.split(key, 10)

    def init(k, shape, scale=0.05):
        return scale * jax.random.normal(k, shape, jnp.float32)

    # Raw parameters in PyTorch layouts (gate order i, f, g, o).
    raw = {
        "w_ih":     init(ks[0], (4 * EMB, MAX_LEN)),
        "w_hh":     init(ks[1], (4 * EMB, EMB)),
        "b_ih":     init(ks[2], (4 * EMB,)),
        "b_hh":     init(ks[3], (4 * EMB,)),
        "w_rnn_fc": init(ks[4], (FC_DIM, NUM_FEATURES * EMB)),
        "b_rnn_fc": init(ks[5], (FC_DIM,)),
        "w_final":  init(ks[6], (CLASS_N, ENC_DIM + FC_DIM)),
        "b_final":  init(ks[7], (CLASS_N,)),
    }
    params = prepare_params(raw, embedding_dim=EMB,
                            num_features=NUM_FEATURES, enc_dim=ENC_DIM)

    enc_out = init(ks[8], (B, ENC_DIM), 1.0)
    dec_inp = init(ks[9], (B, NUM_FEATURES, MAX_LEN), 1.0)

    out = jax.jit(rnn_decoder_forward)(enc_out, dec_inp, params)
    out = jax.block_until_ready(out)
    assert out.shape == (B, CLASS_N) and out.dtype == jnp.float32

    # Loose tolerance: rnn_fc / whh / wfh weights are bf16 in the kernel.
    ref = reference_forward(enc_out, dec_inp, raw)
    err = float(jnp.max(jnp.abs(out - ref)))
    assert err < 3e-2, f"max abs error vs reference: {err}"

    print("KERNEL_OK")
</pallas_src>

<mosaic_0001>
module attributes {stable_mosaic.version = 11 : i64} {
  func.func @decoder_kernel(%arg0: i32, %arg1: memref<2x1000xf32, #tpu.memory_space<vmem>>, %arg2: memref<2x8x16xf32, #tpu.memory_space<vmem>>, %arg3: memref<16x512xbf16, #tpu.memory_space<vmem>>, %arg4: memref<128x512xbf16, #tpu.memory_space<vmem>>, %arg5: memref<1x512xf32, #tpu.memory_space<vmem>>, %arg6: memref<8x32x512xbf16, #tpu.memory_space<vmem>>, %arg7: memref<1x512xf32, #tpu.memory_space<vmem>>, %arg8: memref<1000x32xf32, #tpu.memory_space<vmem>>, %arg9: memref<512x32xbf16, #tpu.memory_space<vmem>>, %arg10: memref<1x32xf32, #tpu.memory_space<vmem>>, %arg11: memref<2x32xf32, #tpu.memory_space<vmem>>, %arg12: memref<2x8x32xf32, #tpu.memory_space<vmem>>) attributes {dimension_semantics = [#tpu.dimension_semantics<arbitrary>], iteration_bounds = array<i64: 2>, scalar_prefetch = 0 : i64, scratch_operands = 1 : i64, tpu.core_type = #tpu.core_type<tc>, window_params = [{pipeline_mode = #tpu.pipeline_mode<synchronous>, transform_indices = @transform_0, window_bounds = array<i64: 2, 1000>}, {pipeline_mode = #tpu.pipeline_mode<synchronous>, transform_indices = @transform_1, window_bounds = array<i64: 2, 8, 16>}, {pipeline_mode = #tpu.pipeline_mode<synchronous>, transform_indices = @transform_2, window_bounds = array<i64: 16, 512>}, {pipeline_mode = #tpu.pipeline_mode<synchronous>, transform_indices = @transform_3, window_bounds = array<i64: 128, 512>}, {pipeline_mode = #tpu.pipeline_mode<synchronous>, transform_indices = @transform_4, window_bounds = array<i64: 1, 512>}, {transform_indices = @transform_5, window_bounds = array<i64: 8, 32, 512>}, {transform_indices = @transform_6, window_bounds = array<i64: 1, 512>}, {pipeline_mode = #tpu.pipeline_mode<synchronous>, transform_indices = @transform_7, window_bounds = array<i64: 1000, 32>}, {transform_indices = @transform_8, window_bounds = array<i64: 512, 32>}, {pipeline_mode = #tpu.pipeline_mode<synchronous>, transform_indices = @transform_9, window_bounds = array<i64: 1, 32>}, {pipeline_mode = #tpu.pipeline_mode<synchronous>, transform_indices = @transform_10, window_bounds = array<i64: 2, 32>}]} {
    %c0_i32 = arith.constant 0 : i32
    %0 = arith.cmpi eq, %arg0, %c0_i32 : i32
    %1 = arith.extui %0 : i1 to i32
    %c0_i32_0 = arith.constant 0 : i32
    %2 = arith.cmpi ne, %1, %c0_i32_0 : i32
    scf.if %2 {
      %c0_37 = arith.constant 0 : index
      %c0_38 = arith.constant 0 : index
      %c0_39 = arith.constant 0 : index
      %70 = vector.load %arg2[%c0_37, %c0_38, %c0_39] : memref<2x8x16xf32, #tpu.memory_space<vmem>>, vector<2x8x16xf32>
      %71 = vector.shape_cast %70 : vector<2x8x16xf32> to vector<16x16xf32>
      %72 = arith.truncf %71 : vector<16x16xf32> to vector<16x16xbf16>
      %c0_40 = arith.constant 0 : index
      %c0_41 = arith.constant 0 : index
      %73 = vector.load %arg3[%c0_40, %c0_41] : memref<16x512xbf16, #tpu.memory_space<vmem>>, vector<16x512xbf16>
      %cst_42 = arith.constant dense<0.000000e+00> : vector<16x512xf32>
      %74 = tpu.matmul %72, %73, %cst_42 {dimension_numbers = #tpu.dot_dimension_numbers<[1], [0], [0], [1], [0, 0, 1, 1], [], []>} : vector<16x16xbf16>, vector<16x512xbf16>, vector<16x512xf32> -> vector<16x512xf32>
      %c0_43 = arith.constant 0 : index
      %c0_44 = arith.constant 0 : index
      %75 = vector.load %arg5[%c0_43, %c0_44] : memref<1x512xf32, #tpu.memory_space<vmem>>, vector<1x512xf32>
      %76 = vector.broadcast %75 : vector<1x512xf32> to vector<16x512xf32>
      %77 = arith.addf %74, %76 : vector<16x512xf32>
      %c0_45 = arith.constant 0 : index
      %c0_46 = arith.constant 0 : index
      %78 = vector.load %arg4[%c0_45, %c0_46] : memref<128x512xbf16, #tpu.memory_space<vmem>>, vector<128x512xbf16>
      %cst_47 = arith.constant 0.000000e+00 : f32
      %79 = vector.broadcast %cst_47 : f32 to vector<8x128xf32>
      %cst_48 = arith.constant 0.000000e+00 : f32
      %80 = vector.broadcast %cst_48 : f32 to vector<8x128xf32>
      %81 = vector.extract_strided_slice %77 {offsets = [0, 0], sizes = [8, 512], strides = [1, 1]} : vector<16x512xf32> to vector<8x512xf32>
      %82 = arith.truncf %79 : vector<8x128xf32> to vector<8x128xbf16>
      %cst_49 = arith.constant dense<0.000000e+00> : vector<8x512xf32>
      %83 = tpu.matmul %82, %78, %cst_49 {dimension_numbers = #tpu.dot_dimension_numbers<[1], [0], [0], [1], [0, 0, 1, 1], [], []>} : vector<8x128xbf16>, vector<128x512xbf16>, vector<8x512xf32> -> vector<8x512xf32>
      %84 = arith.addf %81, %83 : vector<8x512xf32>
      %85 = vector.extract_strided_slice %84 {offsets = [0, 0], sizes = [8, 128], strides = [1, 1]} : vector<8x512xf32> to vector<8x128xf32>
      %86 = arith.negf %85 : vector<8x128xf32>
      %87 = math.exp %86 : vector<8x128xf32>
      %cst_50 = arith.constant 1.000000e+00 : f32
      %88 = vector.broadcast %cst_50 : f32 to vector<8x128xf32>
      %89 = arith.addf %88, %87 : vector<8x128xf32>
      %90 = arith.divf %88, %89 : vector<8x128xf32>
      %91 = vector.extract_strided_slice %84 {offsets = [0, 128], sizes = [8, 128], strides = [1, 1]} : vector<8x512xf32> to vector<8x128xf32>
      %92 = arith.negf %91 : vector<8x128xf32>
      %93 = math.exp %92 : vector<8x128xf32>
      %cst_51 = arith.constant 1.000000e+00 : f32
      %94 = vector.broadcast %cst_51 : f32 to vector<8x128xf32>
      %95 = arith.addf %94, %93 : vector<8x128xf32>
      %96 = arith.divf %94, %95 : vector<8x128xf32>
      %97 = vector.extract_strided_slice %84 {offsets = [0, 256], sizes = [8, 128], strides = [1, 1]} : vector<8x512xf32> to vector<8x128xf32>
      %98 = math.tanh %97 : vector<8x128xf32>
      %99 = vector.extract_strided_slice %84 {offsets = [0, 384], sizes = [8, 128], strides = [1, 1]} : vector<8x512xf32> to vector<8x128xf32>
      %100 = arith.negf %99 : vector<8x128xf32>
      %101 = math.exp %100 : vector<8x128xf32>
      %cst_52 = arith.constant 1.000000e+00 : f32
      %102 = vector.broadcast %cst_52 : f32 to vector<8x128xf32>
      %103 = arith.addf %102, %101 : vector<8x128xf32>
      %104 = arith.divf %102, %103 : vector<8x128xf32>
      %105 = arith.mulf %96, %80 : vector<8x128xf32>
      %106 = arith.mulf %90, %98 : vector<8x128xf32>
      %107 = arith.addf %105, %106 : vector<8x128xf32>
      %108 = math.tanh %107 : vector<8x128xf32>
      %109 = arith.mulf %104, %108 : vector<8x128xf32>
      %110 = vector.extract_strided_slice %109 {offsets = [0, 0], sizes = [8, 32], strides = [1, 1]} : vector<8x128xf32> to vector<8x32xf32>
      %c0_53 = arith.constant 0 : index
      %c0_54 = arith.constant 0 : index
      %c0_55 = arith.constant 0 : index
      %111 = vector.load %arg12[%c0_53, %c0_54, %c0_55] : memref<2x8x32xf32, #tpu.memory_space<vmem>>, vector<1x8x32xf32>
      %112 = vector.shape_cast %111 : vector<1x8x32xf32> to vector<8x32xf32>
      %113 = vector.shape_cast %110 : vector<8x32xf32> to vector<1x8x32xf32>
      tpu.vector_store %arg12[%c0_53, %c0_54, %c0_55], %113 {strides = array<i32>} : memref<2x8x32xf32, #tpu.memory_space<vmem>>, vector<1x8x32xf32>,
      %114 = vector.extract_strided_slice %77 {offsets = [8, 0], sizes = [8, 512], strides = [1, 1]} : vector<16x512xf32> to vector<8x512xf32>
      %115 = arith.truncf %109 : vector<8x128xf32> to vector<8x128xbf16>
      %cst_56 = arith.constant dense<0.000000e+00> : vector<8x512xf32>
      %116 = tpu.matmul %115, %78, %cst_56 {dimension_numbers = #tpu.dot_dimension_numbers<[1], [0], [0], [1], [0, 0, 1, 1], [], []>} : vector<8x128xbf16>, vector<128x512xbf16>, vector<8x512xf32> -> vector<8x512xf32>
      %117 = arith.addf %114, %116 : vector<8x512xf32>
      %118 = vector.extract_strided_slice %117 {offsets = [0, 0], sizes = [8, 128], strides = [1, 1]} : vector<8x512xf32> to vector<8x128xf32>
      %119 = arith.negf %118 : vector<8x128xf32>
      %120 = math.exp %119 : vector<8x128xf32>
      %cst_57 = arith.constant 1.000000e+00 : f32
      %121 = vector.broadcast %cst_57 : f32 to vector<8x128xf32>
      %122 = arith.addf %121, %120 : vector<8x128xf32>
      %123 = arith.divf %121, %122 : vector<8x128xf32>
      %124 = vector.extract_strided_slice %117 {offsets = [0, 128], sizes = [8, 128], strides = [1, 1]} : vector<8x512xf32> to vector<8x128xf32>
      %125 = arith.negf %124 : vector<8x128xf32>
      %126 = math.exp %125 : vector<8x128xf32>
      %cst_58 = arith.constant 1.000000e+00 : f32
      %127 = vector.broadcast %cst_58 : f32 to vector<8x128xf32>
      %128 = arith.addf %127, %126 : vector<8x128xf32>
      %129 = arith.divf %127, %128 : vector<8x128xf32>
      %130 = vector.extract_strided_slice %117 {offsets = [0, 256], sizes = [8, 128], strides = [1, 1]} : vector<8x512xf32> to vector<8x128xf32>
      %131 = math.tanh %130 : vector<8x128xf32>
      %132 = vector.extract_strided_slice %117 {offsets = [0, 384], sizes = [8, 128], strides = [1, 1]} : vector<8x512xf32> to vector<8x128xf32>
      %133 = arith.negf %132 : vector<8x128xf32>
      %134 = math.exp %133 : vector<8x128xf32>
      %cst_59 = arith.constant 1.000000e+00 : f32
      %135 = vector.broadcast %cst_59 : f32 to vector<8x128xf32>
      %136 = arith.addf %135, %134 : vector<8x128xf32>
      %137 = arith.divf %135, %136 : vector<8x128xf32>
      %138 = arith.mulf %129, %107 : vector<8x128xf32>
      %139 = arith.mulf %123, %131 : vector<8x128xf32>
      %140 = arith.addf %138, %139 : vector<8x128xf32>
      %141 = math.tanh %140 : vector<8x128xf32>
      %142 = arith.mulf %137, %141 : vector<8x128xf32>
      %143 = vector.extract_strided_slice %142 {offsets = [0, 0], sizes = [8, 32], strides = [1, 1]} : vector<8x128xf32> to vector<8x32xf32>
      %c1_60 = arith.constant 1 : index
      %c0_61 = arith.constant 0 : index
      %c0_62 = arith.constant 0 : index
      %144 = vector.load %arg12[%c1_60, %c0_61, %c0_62] : memref<2x8x32xf32, #tpu.memory_space<vmem>>, vector<1x8x32xf32>
      %145 = vector.shape_cast %144 : vector<1x8x32xf32> to vector<8x32xf32>
      %146 = vector.shape_cast %143 : vector<8x32xf32> to vector<1x8x32xf32>
      tpu.vector_store %arg12[%c1_60, %c0_61, %c0_62], %146 {strides = array<i32>} : memref<2x8x32xf32, #tpu.memory_space<vmem>>, vector<1x8x32xf32>,
      %c0_63 = arith.constant 0 : index
      %c0_64 = arith.constant 0 : index
      %147 = vector.load %arg1[%c0_63, %c0_64] : memref<2x1000xf32, #tpu.memory_space<vmem>>, vector<2x1000xf32>
      %c0_65 = arith.constant 0 : index
      %c0_66 = arith.constant 0 : index
      %148 = vector.load %arg8[%c0_65, %c0_66] : memref<1000x32xf32, #tpu.memory_space<vmem>>, vector<1000x32xf32>
      %cst_67 = arith.constant dense<0.000000e+00> : vector<2x32xf32>
      %149 = tpu.matmul %147, %148, %cst_67 {dimension_numbers = #tpu.dot_dimension_numbers<[1], [0], [0], [1], [0, 0, 1, 1], [], []>} : vector<2x1000xf32>, vector<1000x32xf32>, vector<2x32xf32> -> vector<2x32xf32>
      %c0_68 = arith.constant 0 : index
      %c0_69 = arith.constant 0 : index
      %150 = vector.load %arg10[%c0_68, %c0_69] : memref<1x32xf32, #tpu.memory_space<vmem>>, vector<1x32xf32>
      %151 = vector.broadcast %150 : vector<1x32xf32> to vector<2x32xf32>
      %152 = arith.addf %149, %151 : vector<2x32xf32>
      %c0_70 = arith.constant 0 : index
      %c0_71 = arith.constant 0 : index
      %153 = vector.load %arg11[%c0_70, %c0_71] : memref<2x32xf32, #tpu.memory_space<vmem>>, vector<2x32xf32>
      tpu.vector_store %arg11[%c0_70, %c0_71], %152 {strides = array<i32>} : memref<2x32xf32, #tpu.memory_space<vmem>>, vector<2x32xf32>,
    } else {
    }
    %c0 = arith.constant 0 : index
    %c0_1 = arith.constant 0 : index
    %c0_2 = arith.constant 0 : index
    %3 = vector.load %arg12[%c0, %c0_1, %c0_2] : memref<2x8x32xf32, #tpu.memory_space<vmem>>, vector<2x8x32xf32>
    %cst = arith.constant 0.000000e+00 : f32
    %4 = vector.broadcast %cst : f32 to vector<2x512xf32>
    %5 = vector.extract_strided_slice %3 {offsets = [0, 0, 0], sizes = [2, 1, 32], strides = [1, 1, 1]} : vector<2x8x32xf32> to vector<2x1x32xf32>
    %6 = vector.shape_cast %5 : vector<2x1x32xf32> to vector<2x32xf32>
    %7 = arith.truncf %6 : vector<2x32xf32> to vector<2x32xbf16>
    %c0_3 = arith.constant 0 : index
    %c0_4 = arith.constant 0 : index
    %c0_5 = arith.constant 0 : index
    %8 = vector.load %arg6[%c0_3, %c0_4, %c0_5] : memref<8x32x512xbf16, #tpu.memory_space<vmem>>, vector<1x32x512xbf16>
    %9 = vector.shape_cast %8 : vector<1x32x512xbf16> to vector<32x512xbf16>
    %cst_6 = arith.constant dense<0.000000e+00> : vector<2x512xf32>
    %10 = tpu.matmul %7, %9, %cst_6 {dimension_numbers = #tpu.dot_dimension_numbers<[1], [0], [0], [1], [0, 0, 1, 1], [], []>} : vector<2x32xbf16>, vector<32x512xbf16>, vector<2x512xf32> -> vector<2x512xf32>
    %11 = arith.addf %4, %10 : vector<2x512xf32>
    %12 = vector.extract_strided_slice %3 {offsets = [0, 1, 0], sizes = [2, 1, 32], strides = [1, 1, 1]} : vector<2x8x32xf32> to vector<2x1x32xf32>
    %13 = vector.shape_cast %12 : vector<2x1x32xf32> to vector<2x32xf32>
    %14 = arith.truncf %13 : vector<2x32xf32> to vector<2x32xbf16>
    %c1 = arith.constant 1 : index
    %c0_7 = arith.constant 0 : index
    %c0_8 = arith.constant 0 : index
    %15 = vector.load %arg6[%c1, %c0_7, %c0_8] : memref<8x32x512xbf16, #tpu.memory_space<vmem>>, vector<1x32x512xbf16>
    %16 = vector.shape_cast %15 : vector<1x32x512xbf16> to vector<32x512xbf16>
    %cst_9 = arith.constant dense<0.000000e+00> : vector<2x512xf32>
    %17 = tpu.matmul %14, %16, %cst_9 {dimension_numbers = #tpu.dot_dimension_numbers<[1], [0], [0], [1], [0, 0, 1, 1], [], []>} : vector<2x32xbf16>, vector<32x512xbf16>, vector<2x512xf32> -> vector<2x512xf32>
    %18 = arith.addf %11, %17 : vector<2x512xf32>
    %19 = vector.extract_strided_slice %3 {offsets = [0, 2, 0], sizes = [2, 1, 32], strides = [1, 1, 1]} : vector<2x8x32xf32> to vector<2x1x32xf32>
    %20 = vector.shape_cast %19 : vector<2x1x32xf32> to vector<2x32xf32>
    %21 = arith.truncf %20 : vector<2x32xf32> to vector<2x32xbf16>
    %c2 = arith.constant 2 : index
    %c0_10 = arith.constant 0 : index
    %c0_11 = arith.constant 0 : index
    %22 = vector.load %arg6[%c2, %c0_10, %c0_11] : memref<8x32x512xbf16, #tpu.memory_space<vmem>>, vector<1x32x512xbf16>
    %23 = vector.shape_cast %22 : vector<1x32x512xbf16> to vector<32x512xbf16>
    %cst_12 = arith.constant dense<0.000000e+00> : vector<2x512xf32>
    %24 = tpu.matmul %21, %23, %cst_12 {dimension_numbers = #tpu.dot_dimension_numbers<[1], [0], [0], [1], [0, 0, 1, 1], [], []>} : vector<2x32xbf16>, vector<32x512xbf16>, vector<2x512xf32> -> vector<2x512xf32>
    %25 = arith.addf %18, %24 : vector<2x512xf32>
    %26 = vector.extract_strided_slice %3 {offsets = [0, 3, 0], sizes = [2, 1, 32], strides = [1, 1, 1]} : vector<2x8x32xf32> to vector<2x1x32xf32>
    %27 = vector.shape_cast %26 : vector<2x1x32xf32> to vector<2x32xf32>
    %28 = arith.truncf %27 : vector<2x32xf32> to vector<2x32xbf16>
    %c3 = arith.constant 3 : index
    %c0_13 = arith.constant 0 : index
    %c0_14 = arith.constant 0 : index
    %29 = vector.load %arg6[%c3, %c0_13, %c0_14] : memref<8x32x512xbf16, #tpu.memory_space<vmem>>, vector<1x32x512xbf16>
    %30 = vector.shape_cast %29 : vector<1x32x512xbf16> to vector<32x512xbf16>
    %cst_15 = arith.constant dense<0.000000e+00> : vector<2x512xf32>
    %31 = tpu.matmul %28, %30, %cst_15 {dimension_numbers = #tpu.dot_dimension_numbers<[1], [0], [0], [1], [0, 0, 1, 1], [], []>} : vector<2x32xbf16>, vector<32x512xbf16>, vector<2x512xf32> -> vector<2x512xf32>
    %32 = arith.addf %25, %31 : vector<2x512xf32>
    %33 = vector.extract_strided_slice %3 {offsets = [0, 4, 0], sizes = [2, 1, 32], strides = [1, 1, 1]} : vector<2x8x32xf32> to vector<2x1x32xf32>
    %34 = vector.shape_cast %33 : vector<2x1x32xf32> to vector<2x32xf32>
    %35 = arith.truncf %34 : vector<2x32xf32> to vector<2x32xbf16>
    %c4 = arith.constant 4 : index
    %c0_16 = arith.constant 0 : index
    %c0_17 = arith.constant 0 : index
    %36 = vector.load %arg6[%c4, %c0_16, %c0_17] : memref<8x32x512xbf16, #tpu.memory_space<vmem>>, vector<1x32x512xbf16>
    %37 = vector.shape_cast %36 : vector<1x32x512xbf16> to vector<32x512xbf16>
    %cst_18 = arith.constant dense<0.000000e+00> : vector<2x512xf32>
    %38 = tpu.matmul %35, %37, %cst_18 {dimension_numbers = #tpu.dot_dimension_numbers<[1], [0], [0], [1], [0, 0, 1, 1], [], []>} : vector<2x32xbf16>, vector<32x512xbf16>, vector<2x512xf32> -> vector<2x512xf32>
    %39 = arith.addf %32, %38 : vector<2x512xf32>
    %40 = vector.extract_strided_slice %3 {offsets = [0, 5, 0], sizes = [2, 1, 32], strides = [1, 1, 1]} : vector<2x8x32xf32> to vector<2x1x32xf32>
    %41 = vector.shape_cast %40 : vector<2x1x32xf32> to vector<2x32xf32>
    %42 = arith.truncf %41 : vector<2x32xf32> to vector<2x32xbf16>
    %c5 = arith.constant 5 : index
    %c0_19 = arith.constant 0 : index
    %c0_20 = arith.constant 0 : index
    %43 = vector.load %arg6[%c5, %c0_19, %c0_20] : memref<8x32x512xbf16, #tpu.memory_space<vmem>>, vector<1x32x512xbf16>
    %44 = vector.shape_cast %43 : vector<1x32x512xbf16> to vector<32x512xbf16>
    %cst_21 = arith.constant dense<0.000000e+00> : vector<2x512xf32>
    %45 = tpu.matmul %42, %44, %cst_21 {dimension_numbers = #tpu.dot_dimension_numbers<[1], [0], [0], [1], [0, 0, 1, 1], [], []>} : vector<2x32xbf16>, vector<32x512xbf16>, vector<2x512xf32> -> vector<2x512xf32>
    %46 = arith.addf %39, %45 : vector<2x512xf32>
    %47 = vector.extract_strided_slice %3 {offsets = [0, 6, 0], sizes = [2, 1, 32], strides = [1, 1, 1]} : vector<2x8x32xf32> to vector<2x1x32xf32>
    %48 = vector.shape_cast %47 : vector<2x1x32xf32> to vector<2x32xf32>
    %49 = arith.truncf %48 : vector<2x32xf32> to vector<2x32xbf16>
    %c6 = arith.constant 6 : index
    %c0_22 = arith.constant 0 : index
    %c0_23 = arith.constant 0 : index
    %50 = vector.load %arg6[%c6, %c0_22, %c0_23] : memref<8x32x512xbf16, #tpu.memory_space<vmem>>, vector<1x32x512xbf16>
    %51 = vector.shape_cast %50 : vector<1x32x512xbf16> to vector<32x512xbf16>
    %cst_24 = arith.constant dense<0.000000e+00> : vector<2x512xf32>
    %52 = tpu.matmul %49, %51, %cst_24 {dimension_numbers = #tpu.dot_dimension_numbers<[1], [0], [0], [1], [0, 0, 1, 1], [], []>} : vector<2x32xbf16>, vector<32x512xbf16>, vector<2x512xf32> -> vector<2x512xf32>
    %53 = arith.addf %46, %52 : vector<2x512xf32>
    %54 = vector.extract_strided_slice %3 {offsets = [0, 7, 0], sizes = [2, 1, 32], strides = [1, 1, 1]} : vector<2x8x32xf32> to vector<2x1x32xf32>
    %55 = vector.shape_cast %54 : vector<2x1x32xf32> to vector<2x32xf32>
    %56 = arith.truncf %55 : vector<2x32xf32> to vector<2x32xbf16>
    %c7 = arith.constant 7 : index
    %c0_25 = arith.constant 0 : index
    %c0_26 = arith.constant 0 : index
    %57 = vector.load %arg6[%c7, %c0_25, %c0_26] : memref<8x32x512xbf16, #tpu.memory_space<vmem>>, vector<1x32x512xbf16>
    %58 = vector.shape_cast %57 : vector<1x32x512xbf16> to vector<32x512xbf16>
    %cst_27 = arith.constant dense<0.000000e+00> : vector<2x512xf32>
    %59 = tpu.matmul %56, %58, %cst_27 {dimension_numbers = #tpu.dot_dimension_numbers<[1], [0], [0], [1], [0, 0, 1, 1], [], []>} : vector<2x32xbf16>, vector<32x512xbf16>, vector<2x512xf32> -> vector<2x512xf32>
    %60 = arith.addf %53, %59 : vector<2x512xf32>
    %c0_28 = arith.constant 0 : index
    %c0_29 = arith.constant 0 : index
    %61 = vector.load %arg7[%c0_28, %c0_29] : memref<1x512xf32, #tpu.memory_space<vmem>>, vector<1x512xf32>
    %62 = vector.broadcast %61 : vector<1x512xf32> to vector<2x512xf32>
    %63 = arith.addf %60, %62 : vector<2x512xf32>
    %c0_30 = arith.constant 0 : index
    %c0_31 = arith.constant 0 : index
    %64 = vector.load %arg11[%c0_30, %c0_31] : memref<2x32xf32, #tpu.memory_space<vmem>>, vector<2x32xf32>
    %65 = arith.truncf %63 : vector<2x512xf32> to vector<2x512xbf16>
    %c0_32 = arith.constant 0 : index
    %c0_33 = arith.constant 0 : index
    %66 = vector.load %arg9[%c0_32, %c0_33] : memref<512x32xbf16, #tpu.memory_space<vmem>>, vector<512x32xbf16>
    %cst_34 = arith.constant dense<0.000000e+00> : vector<2x32xf32>
    %67 = tpu.matmul %65, %66, %cst_34 {dimension_numbers = #tpu.dot_dimension_numbers<[1], [0], [0], [1], [0, 0, 1, 1], [], []>} : vector<2x512xbf16>, vector<512x32xbf16>, vector<2x32xf32> -> vector<2x32xf32>
    %68 = arith.addf %64, %67 : vector<2x32xf32>
    %c0_35 = arith.constant 0 : index
    %c0_36 = arith.constant 0 : index
    %69 = vector.load %arg11[%c0_35, %c0_36] : memref<2x32xf32, #tpu.memory_space<vmem>>, vector<2x32xf32>
    tpu.vector_store %arg11[%c0_35, %c0_36], %68 {strides = array<i32>} : memref<2x32xf32, #tpu.memory_space<vmem>>, vector<2x32xf32>,
    return
  }
  func.func @transform_0(%arg0: i32) -> (i32, i32) {
    %c0_i32 = arith.constant 0 : i32
    %c0_i32_0 = arith.constant 0 : i32
    %c0_i32_1 = arith.constant 0 : i32
    return %c0_i32, %c0_i32_0 : i32, i32
  }
  func.func @transform_1(%arg0: i32) -> (i32, i32, i32) {
    %c0_i32 = arith.constant 0 : i32
    %c0_i32_0 = arith.constant 0 : i32
    %c0_i32_1 = arith.constant 0 : i32
    %c0_i32_2 = arith.constant 0 : i32
    return %c0_i32, %c0_i32_0, %c0_i32_1 : i32, i32, i32
  }
  func.func @transform_2(%arg0: i32) -> (i32, i32) {
    %c0_i32 = arith.constant 0 : i32
    %c0_i32_0 = arith.constant 0 : i32
    %c0_i32_1 = arith.constant 0 : i32
    return %c0_i32, %c0_i32_0 : i32, i32
  }
  func.func @transform_3(%arg0: i32) -> (i32, i32) {
    %c0_i32 = arith.constant 0 : i32
    %c0_i32_0 = arith.constant 0 : i32
    %c0_i32_1 = arith.constant 0 : i32
    return %c0_i32, %c0_i32_0 : i32, i32
  }
  func.func @transform_4(%arg0: i32) -> (i32, i32) {
    %c0_i32 = arith.constant 0 : i32
    %c0_i32_0 = arith.constant 0 : i32
    %c0_i32_1 = arith.constant 0 : i32
    return %c0_i32, %c0_i32_0 : i32, i32
  }
  func.func @transform_5(%arg0: i32) -> (i32, i32, i32) {
    %c0_i32 = arith.constant 0 : i32
    %c0_i32_0 = arith.constant 0 : i32
    %c0_i32_1 = arith.constant 0 : i32
    return %c0_i32, %c0_i32_0, %arg0 : i32, i32, i32
  }
  func.func @transform_6(%arg0: i32) -> (i32, i32) {
    %c0_i32 = arith.constant 0 : i32
    %c0_i32_0 = arith.constant 0 : i32
    return %c0_i32, %arg0 : i32, i32
  }
  func.func @transform_7(%arg0: i32) -> (i32, i32) {
    %c0_i32 = arith.constant 0 : i32
    %c0_i32_0 = arith.constant 0 : i32
    %c0_i32_1 = arith.constant 0 : i32
    return %c0_i32, %c0_i32_0 : i32, i32
  }
  func.func @transform_8(%arg0: i32) -> (i32, i32) {
    %c0_i32 = arith.constant 0 : i32
    %c0_i32_0 = arith.constant 0 : i32
    return %arg0, %c0_i32 : i32, i32
  }
  func.func @transform_9(%arg0: i32) -> (i32, i32) {
    %c0_i32 = arith.constant 0 : i32
    %c0_i32_0 = arith.constant 0 : i32
    %c0_i32_1 = arith.constant 0 : i32
    return %c0_i32, %c0_i32_0 : i32, i32
  }
  func.func @transform_10(%arg0: i32) -> (i32, i32) {
    %c0_i32 = arith.constant 0 : i32
    %c0_i32_0 = arith.constant 0 : i32
    %c0_i32_1 = arith.constant 0 : i32
    return %c0_i32, %c0_i32_0 : i32, i32
  }
}

</mosaic_0001>

<llo_original>
// kernel: rnn_decoder_forward.1
$region0: #{rnn_decoder_forward.1}
  #allocation0 [shape = 'u32[]', space=smem, size = 0x4, offset = 0x4, fixed_abs, tag = 'smem constant byte address 0x4 - core index']
  #allocation1 [shape = 'u32[144,128]{1,0:T(1,128)}', space=vmem, size = 0x12000, scoped, tag = 'internal scratch']
  #allocation2 [shape = 'f32[2,8,32]{2,1,0:T(8,128)}', space=vmem, size = 0x2000, scoped, tag = 'scratch operand']
  %s0 = inlined_call_operand.vmem [shape: f32[2,1000], index: 0, kind: input, shape index: {}]
  %s1 = inlined_call_operand.vmem [shape: f32[2,8,16], index: 1, kind: input, shape index: {}]
  %s2 = inlined_call_operand.vmem [shape: bf16[16,512], index: 2, kind: input, shape index: {}]
  %s3 = inlined_call_operand.vmem [shape: bf16[128,512], index: 3, kind: input, shape index: {}]
  %s4 = inlined_call_operand.vmem [shape: f32[1,512], index: 4, kind: input, shape index: {}]
  %s5 = inlined_call_operand.vmem [shape: bf16[8,32,1024], index: 5, kind: input, shape index: {}]
  %s6 = inlined_call_operand.vmem [shape: f32[1,1024], index: 6, kind: input, shape index: {}]
  %s7 = inlined_call_operand.vmem [shape: f32[1000,32], index: 7, kind: input, shape index: {}]
  %s8 = inlined_call_operand.vmem [shape: bf16[1024,32], index: 8, kind: input, shape index: {}]
  %s9 = inlined_call_operand.vmem [shape: f32[1,32], index: 9, kind: input, shape index: {}]
  %s10 = inlined_call_operand.hbm [shape: f32[2,32], index: 10, kind: output, shape index: {}]
  %s11 = sld [smem:[#allocation0]]
  $region100: #{rnn_decoder_forward.1} parent=0
    _
  %s13 = ssub.s32 1, %s11
  %s14 = scalar_select 0, %s13, %s11
  $region1: #{rnn_decoder_forward.1} parent=0
    #allocation3 [shape = 'u8[524288]{0}', space=vmem, size = 0x80000, scoped, tag = 'input window, operand 5']
    #allocation4 [shape = 'u8[1024]{0}', space=vmem, size = 0x400, scoped, tag = 'output window, operand 0, single buffered']
    #allocation5 [shape = 's32[2]{0}', space=sflag, size = 0x8, scoped, tag = 'scoped memory for rnn_decoder_forward.1']
    %15 = vsyncpa [#allocation5], 0
    loop: start=0, step=1, limit=4
    $region2: #{rnn_decoder_forward.1} parent=1 // loop_pre_header
      _
    $region3: #{rnn_decoder_forward.1} parent=1 // loop_header
      %s17 = sphi 0, %s21
      %p18 = scmp.ge.s32.totalorder %s17, 4
      %s25 = sphi 0, %s25
      %s27 = sphi 0, %s25
      %s28 = sphi 0, %s27
      %s42 = sphi 0, %s28
      %s46 = sphi 0, %s46
      %s48 = sphi 0, %s46
      %s49 = sphi 0, %s48
      %s63 = sphi 0, %s49
      %s67 = sphi 0, %s67
      %s69 = sphi 0, %s67
      %s70 = sphi 0, %s69
      %s84 = sphi 0, %s70
      %s88 = sphi 0, %s88
      %s90 = sphi 0, %s88
      %s91 = sphi 0, %s90
      %s105 = sphi 0, %s91
      %s109 = sphi 0, %s109
      %s111 = sphi 0, %s109
      %s112 = sphi 0, %s111
      %s126 = sphi 0, %s112
      %s132 = sphi 0, %s134
      %s135 = sphi 0, %s132
      %s136 = sphi 0, %s135
      %s152 = sphi 0, %s136
      %s158 = sphi 0, %s160
      %s161 = sphi 0, %s158
      %s162 = sphi 0, %s161
      %s178 = sphi 0, %s162
      %s182 = sphi 0, %s182
      %s184 = sphi 0, %s182
      %s185 = sphi 0, %s184
      %s199 = sphi 0, %s185
      %s205 = sphi 0, %s207
      %s208 = sphi 0, %s205
      %s209 = sphi 0, %s208
      %s225 = sphi 0, %s209
      %s229 = sphi 0, %s229
      %s231 = sphi 0, %s229
      %s232 = sphi 0, %s231
      %s246 = sphi 0, %s232
      %s250 = sphi 0, %s250
      %s252 = sphi 0, %s250
      %s253 = sphi 0, %s252
      %s267 = sphi 0, %s253
    $region4: #{rnn_decoder_forward.1} parent=1 // loop_header_branch
      %20 = sbr.rel (%p18) target = $region8
    $region5: #{rnn_decoder_forward.1} parent=1 // loop_body
      %s22 = ssub.s32 %s17, 1
      %s23 = ssub.s32 %s17, 2
      %s24 = sadd.s32 %s17, 1
      %s26 = sadd.s32 %s25, 1
      %p29 = scmp.eq.s32.totalorder %s17, 1
      %p30 = scmp.ne.s32.totalorder %s25, %s27
      %p31 = scmp.eq.s32.totalorder %s17, 0
      %p32 = por %p30, %p31
      %p33 = scmp.ne.s32.totalorder %s25, %s27
      %p34 = scmp.eq.s32.totalorder %s22, 1
      %p35 = por %p33, %p34
      %p36 = scmp.ne.s32.totalorder %s27, %s28
      %p37 = scmp.eq.s32.totalorder %s22, 0
      %p38 = por %p36, %p37
      %p39 = scmp.ne.s32.totalorder %s27, %s28
      %p40 = scmp.eq.s32.totalorder %s23, 1
      %p41 = por %p39, %p40
      %p43 = scmp.ne.s32.totalorder %s28, %s42
      %p44 = scmp.eq.s32.totalorder %s23, 0
      %p45 = por %p43, %p44
      %s47 = sadd.s32 %s46, 1
      %p50 = scmp.eq.s32.totalorder %s17, 1
      %p51 = scmp.ne.s32.totalorder %s46, %s48
      %p52 = scmp.eq.s32.totalorder %s17, 0
      %p53 = por %p51, %p52
      %p54 = scmp.ne.s32.totalorder %s46, %s48
      %p55 = scmp.eq.s32.totalorder %s22, 1
      %p56 = por %p54, %p55
      %p57 = scmp.ne.s32.totalorder %s48, %s49
      %p58 = scmp.eq.s32.totalorder %s22, 0
      %p59 = por %p57, %p58
      %p60 = scmp.ne.s32.totalorder %s48, %s49
      %p61 = scmp.eq.s32.totalorder %s23, 1
      %p62 = por %p60, %p61
      %p64 = scmp.ne.s32.totalorder %s49, %s63
      %p65 = scmp.eq.s32.totalorder %s23, 0
      %p66 = por %p64, %p65
      %s68 = sadd.s32 %s67, 1
      %p71 = scmp.eq.s32.totalorder %s17, 1
      %p72 = scmp.ne.s32.totalorder %s67, %s69
      %p73 = scmp.eq.s32.totalorder %s17, 0
      %p74 = por %p72, %p73
      %p75 = scmp.ne.s32.totalorder %s67, %s69
      %p76 = scmp.eq.s32.totalorder %s22, 1
      %p77 = por %p75, %p76
      %p78 = scmp.ne.s32.totalorder %s69, %s70
      %p79 = scmp.eq.s32.totalorder %s22, 0
      %p80 = por %p78, %p79
      %p81 = scmp.ne.s32.totalorder %s69, %s70
      %p82 = scmp.eq.s32.totalorder %s23, 1
      %p83 = por %p81, %p82
      %p85 = scmp.ne.s32.totalorder %s70, %s84
      %p86 = scmp.eq.s32.totalorder %s23, 0
      %p87 = por %p85, %p86
      %s89 = sadd.s32 %s88, 1
      %p92 = scmp.eq.s32.totalorder %s17, 1
      %p93 = scmp.ne.s32.totalorder %s88, %s90
      %p94 = scmp.eq.s32.totalorder %s17, 0
      %p95 = por %p93, %p94
      %p96 = scmp.ne.s32.totalorder %s88, %s90
      %p97 = scmp.eq.s32.totalorder %s22, 1
      %p98 = por %p96, %p97
      %p99 = scmp.ne.s32.totalorder %s90, %s91
      %p100 = scmp.eq.s32.totalorder %s22, 0
      %p101 = por %p99, %p100
      %p102 = scmp.ne.s32.totalorder %s90, %s91
      %p103 = scmp.eq.s32.totalorder %s23, 1
      %p104 = por %p102, %p103
      %p106 = scmp.ne.s32.totalorder %s91, %s105
      %p107 = scmp.eq.s32.totalorder %s23, 0
      %p108 = por %p106, %p107
      %s110 = sadd.s32 %s109, 1
      %p113 = scmp.eq.s32.totalorder %s17, 1
      %p114 = scmp.ne.s32.totalorder %s109, %s111
      %p115 = scmp.eq.s32.totalorder %s17, 0
      %p116 = por %p114, %p115
      %p117 = scmp.ne.s32.totalorder %s109, %s111
      %p118 = scmp.eq.s32.totalorder %s22, 1
      %p119 = por %p117, %p118
      %p120 = scmp.ne.s32.totalorder %s111, %s112
      %p121 = scmp.eq.s32.totalorder %s22, 0
      %p122 = por %p120, %p121
      %p123 = scmp.ne.s32.totalorder %s111, %s112
      %p124 = scmp.eq.s32.totalorder %s23, 1
      %p125 = por %p123, %p124
      %p127 = scmp.ne.s32.totalorder %s112, %s126
      %p128 = scmp.eq.s32.totalorder %s23, 0
      %p129 = por %p127, %p128
      %s130 = ssub.s32 %s17, %s24
      %p131 = scmp.eq.s32.totalorder %s130, 0
      %s133 = sadd.s32 %s132, 1
      %s134 = scalar_select %p131, %s132, %s133
      %p137 = pneg %p131
      %p138 = scmp.eq.s32.totalorder %s17, 1
      %p139 = por %p137, %p138
      %p140 = scmp.ne.s32.totalorder %s132, %s135
      %p141 = scmp.eq.s32.totalorder %s17, 0
      %p142 = por %p140, %p141
      %p143 = scmp.ne.s32.totalorder %s132, %s135
      %p144 = scmp.eq.s32.totalorder %s22, 1
      %p145 = por %p143, %p144
      %p146 = scmp.ne.s32.totalorder %s135, %s136
      %p147 = scmp.eq.s32.totalorder %s22, 0
      %p148 = por %p146, %p147
      %p149 = scmp.ne.s32.totalorder %s135, %s136
      %p150 = scmp.eq.s32.totalorder %s23, 1
      %p151 = por %p149, %p150
      %p153 = scmp.ne.s32.totalorder %s136, %s152
      %p154 = scmp.eq.s32.totalorder %s23, 0
      %p155 = por %p153, %p154
      %s156 = ssub.s32 %s17, %s24
      %p157 = scmp.eq.s32.totalorder %s156, 0
      %s159 = sadd.s32 %s158, 1
      %s160 = scalar_select %p157, %s158, %s159
      %p163 = pneg %p157
      %p164 = scmp.eq.s32.totalorder %s17, 1
      %p165 = por %p163, %p164
      %p166 = scmp.ne.s32.totalorder %s158, %s161
      %p167 = scmp.eq.s32.totalorder %s17, 0
      %p168 = por %p166, %p167
      %p169 = scmp.ne.s32.totalorder %s158, %s161
      %p170 = scmp.eq.s32.totalorder %s22, 1
      %p171 = por %p169, %p170
      %p172 = scmp.ne.s32.totalorder %s161, %s162
      %p173 = scmp.eq.s32.totalorder %s22, 0
      %p174 = por %p172, %p173
      %p175 = scmp.ne.s32.totalorder %s161, %s162
      %p176 = scmp.eq.s32.totalorder %s23, 1
      %p177 = por %p175, %p176
      %p179 = scmp.ne.s32.totalorder %s162, %s178
      %p180 = scmp.eq.s32.totalorder %s23, 0
      %p181 = por %p179, %p180
      %s183 = sadd.s32 %s182, 1
      %p186 = scmp.eq.s32.totalorder %s17, 1
      %p187 = scmp.ne.s32.totalorder %s182, %s184
      %p188 = scmp.eq.s32.totalorder %s17, 0
      %p189 = por %p187, %p188
      %p190 = scmp.ne.s32.totalorder %s182, %s184
      %p191 = scmp.eq.s32.totalorder %s22, 1
      %p192 = por %p190, %p191
      %p193 = scmp.ne.s32.totalorder %s184, %s185
      %p194 = scmp.eq.s32.totalorder %s22, 0
      %p195 = por %p193, %p194
      %p196 = scmp.ne.s32.totalorder %s184, %s185
      %p197 = scmp.eq.s32.totalorder %s23, 1
      %p198 = por %p196, %p197
      %p200 = scmp.ne.s32.totalorder %s185, %s199
      %p201 = scmp.eq.s32.totalorder %s23, 0
      %p202 = por %p200, %p201
      %s203 = ssub.s32 %s17, %s24
      %p204 = scmp.eq.s32.totalorder %s203, 0
      %s206 = sadd.s32 %s205, 1
      %s207 = scalar_select %p204, %s205, %s206
      %p210 = pneg %p204
      %p211 = scmp.eq.s32.totalorder %s17, 1
      %p212 = por %p210, %p211
      %p213 = scmp.ne.s32.totalorder %s205, %s208
      %p214 = scmp.eq.s32.totalorder %s17, 0
      %p215 = por %p213, %p214
      %p216 = scmp.ne.s32.totalorder %s205, %s208
      %p217 = scmp.eq.s32.totalorder %s22, 1
      %p218 = por %p216, %p217
      %p219 = scmp.ne.s32.totalorder %s208, %s209
      %p220 = scmp.eq.s32.totalorder %s22, 0
      %p221 = por %p219, %p220
      %p222 = scmp.ne.s32.totalorder %s208, %s209
      %p223 = scmp.eq.s32.totalorder %s23, 1
      %p224 = por %p222, %p223
      %p226 = scmp.ne.s32.totalorder %s209, %s225
      %p227 = scmp.eq.s32.totalorder %s23, 0
      %p228 = por %p226, %p227
      %s230 = sadd.s32 %s229, 1
      %p233 = scmp.eq.s32.totalorder %s17, 1
      %p234 = scmp.ne.s32.totalorder %s229, %s231
      %p235 = scmp.eq.s32.totalorder %s17, 0
      %p236 = por %p234, %p235
      %p237 = scmp.ne.s32.totalorder %s229, %s231
      %p238 = scmp.eq.s32.totalorder %s22, 1
      %p239 = por %p237, %p238
      %p240 = scmp.ne.s32.totalorder %s231, %s232
      %p241 = scmp.eq.s32.totalorder %s22, 0
      %p242 = por %p240, %p241
      %p243 = scmp.ne.s32.totalorder %s231, %s232
      %p244 = scmp.eq.s32.totalorder %s23, 1
      %p245 = por %p243, %p244
      %p247 = scmp.ne.s32.totalorder %s232, %s246
      %p248 = scmp.eq.s32.totalorder %s23, 0
      %p249 = por %p247, %p248
      %s251 = sadd.s32 %s250, 1
      %p254 = scmp.eq.s32.totalorder %s17, 1
      %p255 = scmp.ne.s32.totalorder %s250, %s252
      %p256 = scmp.eq.s32.totalorder %s17, 0
      %p257 = por %p255, %p256
      %p258 = scmp.ne.s32.totalorder %s250, %s252
      %p259 = scmp.eq.s32.totalorder %s22, 1
      %p260 = por %p258, %p259
      %p261 = scmp.ne.s32.totalorder %s252, %s253
      %p262 = scmp.eq.s32.totalorder %s22, 0
      %p263 = por %p261, %p262
      %p264 = scmp.ne.s32.totalorder %s252, %s253
      %p265 = scmp.eq.s32.totalorder %s23, 1
      %p266 = por %p264, %p265
      %p268 = scmp.ne.s32.totalorder %s253, %s267
      %p269 = scmp.eq.s32.totalorder %s23, 0
      %p270 = por %p268, %p269
      %p271 = scmp.le.s32.totalorder 1, %s17
      %p272 = scmp.lt.s32.totalorder %s17, 3
      %p273 = pnand %p271, %p272
      %p274 = pneg %p273
      // Predicated region
      $region9: #{rnn_decoder_forward.1} parent=5 // pred_check
        _
      $region10: #{rnn_decoder_forward.1} parent=5 // pred_check_branch
        %276 = sbr.rel (%p273) target = $region12
      $region11: #{rnn_decoder_forward.1} parent=5 // pred_region
        %s277 = ssub.s32 %s17, 1
        // Predicated region
        $region13: #{rnn_decoder_forward.1} parent=11 // pred_check
          %p278 = pneg %p38
        $region14: #{rnn_decoder_forward.1} parent=11 // pred_check_branch
          %280 = sbr.rel (%p278) target = $region16
        $region15: #{rnn_decoder_forward.1} parent=11 // pred_region
          _
        $region16: #{rnn_decoder_forward.1} parent=11 // pred_fallthru
          _
        // Predicated region
        $region17: #{rnn_decoder_forward.1} parent=11 // pred_check
          %p281 = pneg %p59
        $region18: #{rnn_decoder_forward.1} parent=11 // pred_check_branch
          %283 = sbr.rel (%p281) target = $region20
        $region19: #{rnn_decoder_forward.1} parent=11 // pred_region
          _
        $region20: #{rnn_decoder_forward.1} parent=11 // pred_fallthru
          _
        // Predicated region
        $region21: #{rnn_decoder_forward.1} parent=11 // pred_check
          %p284 = pneg %p80
        $region22: #{rnn_decoder_forward.1} parent=11 // pred_check_branch
          %286 = sbr.rel (%p284) target = $region24
        $region23: #{rnn_decoder_forward.1} parent=11 // pred_region
          _
        $region24: #{rnn_decoder_forward.1} parent=11 // pred_fallthru
          _
        // Predicated region
        $region25: #{rnn_decoder_forward.1} parent=11 // pred_check
          %p287 = pneg %p101
        $region26: #{rnn_decoder_forward.1} parent=11 // pred_check_branch
          %289 = sbr.rel (%p287) target = $region28
        $region27: #{rnn_decoder_forward.1} parent=11 // pred_region
          _
        $region28: #{rnn_decoder_forward.1} parent=11 // pred_fallthru
          _
        // Predicated region
        $region29: #{rnn_decoder_forward.1} parent=11 // pred_check
          %p290 = pneg %p122
        $region30: #{rnn_decoder_forward.1} parent=11 // pred_check_branch
          %292 = sbr.rel (%p290) target = $region32
        $region31: #{rnn_decoder_forward.1} parent=11 // pred_region
          _
        $region32: #{rnn_decoder_forward.1} parent=11 // pred_fallthru
          _
        // Predicated region
        $region33: #{rnn_decoder_forward.1} parent=11 // pred_check
          %p293 = pneg %p195
        $region34: #{rnn_decoder_forward.1} parent=11 // pred_check_branch
          %295 = sbr.rel (%p293) target = $region36
        $region35: #{rnn_decoder_forward.1} parent=11 // pred_region
          _
        $region36: #{rnn_decoder_forward.1} parent=11 // pred_fallthru
          _
        // Predicated region
        $region37: #{rnn_decoder_forward.1} parent=11 // pred_check
          %p296 = pneg %p242
        $region38: #{rnn_decoder_forward.1} parent=11 // pred_check_branch
          %298 = sbr.rel (%p296) target = $region40
        $region39: #{rnn_decoder_forward.1} parent=11 // pred_region
          _
        $region40: #{rnn_decoder_forward.1} parent=11 // pred_fallthru
          _
      $region12: #{rnn_decoder_forward.1} parent=5 // pred_fallthru
        _
      %p299 = scmp.lt.s32.totalorder %s17, 2
      // Predicated region
      $region41: #{rnn_decoder_forward.1} parent=5 // pred_check
        %p300 = pneg %p299
      $region42: #{rnn_decoder_forward.1} parent=5 // pred_check_branch
        %302 = sbr.rel (%p300) target = $region44
      $region43: #{rnn_decoder_forward.1} parent=5 // pred_region
        // Predicated region
        $region45: #{rnn_decoder_forward.1} parent=43 // pred_check
          %p303 = pneg %p142
        $region46: #{rnn_decoder_forward.1} parent=43 // pred_check_branch
          %305 = sbr.rel (%p303) target = $region48
        $region47: #{rnn_decoder_forward.1} parent=43 // pred_region
          %s306 = sand.u32 %s132, 1
          %s307 = sand.u32 %s132, 1
          %s308 = smul.addr %s307, 512
          %s309 = scalar_lea.vmem [#allocation3], %s308
          %s310 = smul.u32 4, %s17
          %s311 = smul.addr %s310, 4
          %s312 = scalar_lea.vmem %s5, %s311
          // Predicated region
          $region49: #{rnn_decoder_forward.1} parent=47 // pred_check
            _
          $region50: #{rnn_decoder_forward.1} parent=47 // pred_check_branch
            %314 = sbr.rel (0) target = $region52
          $region51: #{rnn_decoder_forward.1} parent=47 // pred_region
            // Predicated region
            $region53: #{rnn_decoder_forward.1} parent=51 // pred_check
              _
            $region54: #{rnn_decoder_forward.1} parent=51 // pred_check_branch
              %316 = sbr.rel (0) target = $region56
            $region55: #{rnn_decoder_forward.1} parent=51 // pred_region
              loop: start=0, step=1, limit=1
              $region57: #{rnn_decoder_forward.1} parent=55 // loop_pre_header
                _
              $region58: #{rnn_decoder_forward.1} parent=55 // loop_header
                %s318 = sphi 0, %s322
                %p319 = scmp.ge.s32.totalorder %s318, 1
                %s323 = sphi %s312, %s312
                %s324 = sphi %s309, %s309
              $region59: #{rnn_decoder_forward.1} parent=55 // loop_header_branch
                %321 = sbr.rel (%p319) target = $region63
              $region60: #{rnn_decoder_forward.1} parent=55 // loop_body
                %v325 = vld [vmem:[%s323] sm:$0xff]
                %326 = vst [vmem:[%s324] sm:$0xff] %v325
                %v327 = vld [vmem:[%s323 + $0x8] sm:$0xff]
                %328 = vst [vmem:[%s324 + $0x8] sm:$0xff] %v327
                %v329 = vld [vmem:[%s323 + $0x20] sm:$0xff]
                %330 = vst [vmem:[%s324 + $0x10] sm:$0xff] %v329
                %v331 = vld [vmem:[%s323 + $0x28] sm:$0xff]
                %332 = vst [vmem:[%s324 + $0x18] sm:$0xff] %v331
                %v333 = vld [vmem:[%s323 + $0x40] sm:$0xff]
                %334 = vst [vmem:[%s324 + $0x20] sm:$0xff] %v333
                %v335 = vld [vmem:[%s323 + $0x48] sm:$0xff]
                %336 = vst [vmem:[%s324 + $0x28] sm:$0xff] %v335
                %v337 = vld [vmem:[%s323 + $0x60] sm:$0xff]
                %338 = vst [vmem:[%s324 + $0x30] sm:$0xff] %v337
                %v339 = vld [vmem:[%s323 + $0x68] sm:$0xff]
                %340 = vst [vmem:[%s324 + $0x38] sm:$0xff] %v339
                %v341 = vld [vmem:[%s323 + $0x80] sm:$0xff]
                %342 = vst [vmem:[%s324 + $0x40] sm:$0xff] %v341
                %v343 = vld [vmem:[%s323 + $0x88] sm:$0xff]
                %344 = vst [vmem:[%s324 + $0x48] sm:$0xff] %v343
                %v345 = vld [vmem:[%s323 + $0xa0] sm:$0xff]
                %346 = vst [vmem:[%s324 + $0x50] sm:$0xff] %v345
                %v347 = vld [vmem:[%s323 + $0xa8] sm:$0xff]
                %348 = vst [vmem:[%s324 + $0x58] sm:$0xff] %v347
                %v349 = vld [vmem:[%s323 + $0xc0] sm:$0xff]
                %350 = vst [vmem:[%s324 + $0x60] sm:$0xff] %v349
                %v351 = vld [vmem:[%s323 + $0xc8] sm:$0xff]
                %352 = vst [vmem:[%s324 + $0x68] sm:$0xff] %v351
                %v353 = vld [vmem:[%s323 + $0xe0] sm:$0xff]
                %354 = vst [vmem:[%s324 + $0x70] sm:$0xff] %v353
                %v355 = vld [vmem:[%s323 + $0xe8] sm:$0xff]
                %356 = vst [vmem:[%s324 + $0x78] sm:$0xff] %v355
                %v357 = vld [vmem:[%s323 + $0x100] sm:$0xff]
                %358 = vst [vmem:[%s324 + $0x80] sm:$0xff] %v357
                %v359 = vld [vmem:[%s323 + $0x108] sm:$0xff]
                %360 = vst [vmem:[%s324 + $0x88] sm:$0xff] %v359
                %v361 = vld [vmem:[%s323 + $0x120] sm:$0xff]
                %362 = vst [vmem:[%s324 + $0x90] sm:$0xff] %v361
                %v363 = vld [vmem:[%s323 + $0x128] sm:$0xff]
                %364 = vst [vmem:[%s324 + $0x98] sm:$0xff] %v363
                %v365 = vld [vmem:[%s323 + $0x140] sm:$0xff]
                %366 = vst [vmem:[%s324 + $0xa0] sm:$0xff] %v365
                %v367 = vld [vmem:[%s323 + $0x148] sm:$0xff]
                %368 = vst [vmem:[%s324 + $0xa8] sm:$0xff] %v367
                %v369 = vld [vmem:[%s323 + $0x160] sm:$0xff]
                %370 = vst [vmem:[%s324 + $0xb0] sm:$0xff] %v369
                %v371 = vld [vmem:[%s323 + $0x168] sm:$0xff]
                %372 = vst [vmem:[%s324 + $0xb8] sm:$0xff] %v371
                %v373 = vld [vmem:[%s323 + $0x180] sm:$0xff]
                %374 = vst [vmem:[%s324 + $0xc0] sm:$0xff] %v373
                %v375 = vld [vmem:[%s323 + $0x188] sm:$0xff]
                %376 = vst [vmem:[%s324 + $0xc8] sm:$0xff] %v375
                %v377 = vld [vmem:[%s323 + $0x1a0] sm:$0xff]
                %378 = vst [vmem:[%s324 + $0xd0] sm:$0xff] %v377
                %v379 = vld [vmem:[%s323 + $0x1a8] sm:$0xff]
                %380 = vst [vmem:[%s324 + $0xd8] sm:$0xff] %v379
                %v381 = vld [vmem:[%s323 + $0x1c0] sm:$0xff]
                %382 = vst [vmem:[%s324 + $0xe0] sm:$0xff] %v381
                %v383 = vld [vmem:[%s323 + $0x1c8] sm:$0xff]
                %384 = vst [vmem:[%s324 + $0xe8] sm:$0xff] %v383
                %v385 = vld [vmem:[%s323 + $0x1e0] sm:$0xff]
                %386 = vst [vmem:[%s324 + $0xf0] sm:$0xff] %v385
                %v387 = vld [vmem:[%s323 + $0x1e8] sm:$0xff]
                %388 = vst [vmem:[%s324 + $0xf8] sm:$0xff] %v387
                %v389 = vld [vmem:[%s323 + $0x200] sm:$0xff]
                %390 = vst [vmem:[%s324 + $0x100] sm:$0xff] %v389
                %v391 = vld [vmem:[%s323 + $0x208] sm:$0xff]
                %392 = vst [vmem:[%s324 + $0x108] sm:$0xff] %v391
                %v393 = vld [vmem:[%s323 + $0x220] sm:$0xff]
                %394 = vst [vmem:[%s324 + $0x110] sm:$0xff] %v393
                %v395 = vld [vmem:[%s323 + $0x228] sm:$0xff]
                %396 = vst [vmem:[%s324 + $0x118] sm:$0xff] %v395
                %v397 = vld [vmem:[%s323 + $0x240] sm:$0xff]
                %398 = vst [vmem:[%s324 + $0x120] sm:$0xff] %v397
                %v399 = vld [vmem:[%s323 + $0x248] sm:$0xff]
                %400 = vst [vmem:[%s324 + $0x128] sm:$0xff] %v399
                %v401 = vld [vmem:[%s323 + $0x260] sm:$0xff]
                %402 = vst [vmem:[%s324 + $0x130] sm:$0xff] %v401
                %v403 = vld [vmem:[%s323 + $0x268] sm:$0xff]
                %404 = vst [vmem:[%s324 + $0x138] sm:$0xff] %v403
                %v405 = vld [vmem:[%s323 + $0x280] sm:$0xff]
                %406 = vst [vmem:[%s324 + $0x140] sm:$0xff] %v405
                %v407 = vld [vmem:[%s323 + $0x288] sm:$0xff]
                %408 = vst [vmem:[%s324 + $0x148] sm:$0xff] %v407
                %v409 = vld [vmem:[%s323 + $0x2a0] sm:$0xff]
                %410 = vst [vmem:[%s324 + $0x150] sm:$0xff] %v409
                %v411 = vld [vmem:[%s323 + $0x2a8] sm:$0xff]
                %412 = vst [vmem:[%s324 + $0x158] sm:$0xff] %v411
                %v413 = vld [vmem:[%s323 + $0x2c0] sm:$0xff]
                %414 = vst [vmem:[%s324 + $0x160] sm:$0xff] %v413
                %v415 = vld [vmem:[%s323 + $0x2c8] sm:$0xff]
                %416 = vst [vmem:[%s324 + $0x168] sm:$0xff] %v415
                %v417 = vld [vmem:[%s323 + $0x2e0] sm:$0xff]
                %418 = vst [vmem:[%s324 + $0x170] sm:$0xff] %v417
                %v419 = vld [vmem:[%s323 + $0x2e8] sm:$0xff]
                %420 = vst [vmem:[%s324 + $0x178] sm:$0xff] %v419
                %v421 = vld [vmem:[%s323 + $0x300] sm:$0xff]
                %422 = vst [vmem:[%s324 + $0x180] sm:$0xff] %v421
                %v423 = vld [vmem:[%s323 + $0x308] sm:$0xff]
                %424 = vst [vmem:[%s324 + $0x188] sm:$0xff] %v423
                %v425 = vld [vmem:[%s323 + $0x320] sm:$0xff]
                %426 = vst [vmem:[%s324 + $0x190] sm:$0xff] %v425
                %v427 = vld [vmem:[%s323 + $0x328] sm:$0xff]
                %428 = vst [vmem:[%s324 + $0x198] sm:$0xff] %v427
                %v429 = vld [vmem:[%s323 + $0x340] sm:$0xff]
                %430 = vst [vmem:[%s324 + $0x1a0] sm:$0xff] %v429
                %v431 = vld [vmem:[%s323 + $0x348] sm:$0xff]
                %432 = vst [vmem:[%s324 + $0x1a8] sm:$0xff] %v431
                %v433 = vld [vmem:[%s323 + $0x360] sm:$0xff]
                %434 = vst [vmem:[%s324 + $0x1b0] sm:$0xff] %v433
                %v435 = vld [vmem:[%s323 + $0x368] sm:$0xff]
                %436 = vst [vmem:[%s324 + $0x1b8] sm:$0xff] %v435
                %v437 = vld [vmem:[%s323 + $0x380] sm:$0xff]
                %438 = vst [vmem:[%s324 + $0x1c0] sm:$0xff] %v437
                %v439 = vld [vmem:[%s323 + $0x388] sm:$0xff]
                %440 = vst [vmem:[%s324 + $0x1c8] sm:$0xff] %v439
                %v441 = vld [vmem:[%s323 + $0x3a0] sm:$0xff]
                %442 = vst [vmem:[%s324 + $0x1d0] sm:$0xff] %v441
                %v443 = vld [vmem:[%s323 + $0x3a8] sm:$0xff]
                %444 = vst [vmem:[%s324 + $0x1d8] sm:$0xff] %v443
                %v445 = vld [vmem:[%s323 + $0x3c0] sm:$0xff]
                %446 = vst [vmem:[%s324 + $0x1e0] sm:$0xff] %v445
                %v447 = vld [vmem:[%s323 + $0x3c8] sm:$0xff]
                %448 = vst [vmem:[%s324 + $0x1e8] sm:$0xff] %v447
                %v449 = vld [vmem:[%s323 + $0x3e0] sm:$0xff]
                %450 = vst [vmem:[%s324 + $0x1f0] sm:$0xff] %v449
                %v451 = vld [vmem:[%s323 + $0x3e8] sm:$0xff]
                %452 = vst [vmem:[%s324 + $0x1f8] sm:$0xff] %v451
              $region61: #{rnn_decoder_forward.1} parent=55 // loop_footer
                %s322 = sadd.s32 1, %s318
              $region62: #{rnn_decoder_forward.1} parent=55 // loop_footer_branch
                %317 = sbr.rel target = $region58
              $region63: #{rnn_decoder_forward.1} parent=55 // loop_exit
                _
            $region56: #{rnn_decoder_forward.1} parent=51 // pred_fallthru
              _
            // Predicated region
            $region64: #{rnn_decoder_forward.1} parent=51 // pred_check
              _
            $region65: #{rnn_decoder_forward.1} parent=51 // pred_check_branch
              %454 = sbr.rel target = $region67
            $region66: #{rnn_decoder_forward.1} parent=51 // pred_region
              _
            $region67: #{rnn_decoder_forward.1} parent=51 // pred_fallthru
              _
          $region52: #{rnn_decoder_forward.1} parent=47 // pred_fallthru
            _
          %455 = vnop
        $region48: #{rnn_decoder_forward.1} parent=43 // pred_fallthru
          _
        // Predicated region
        $region68: #{rnn_decoder_forward.1} parent=43 // pred_check
          %p456 = pneg %p168
        $region69: #{rnn_decoder_forward.1} parent=43 // pred_check_branch
          %458 = sbr.rel (%p456) target = $region71
        $region70: #{rnn_decoder_forward.1} parent=43 // pred_region
          %s459 = smul.u32 4, %s17
          %p460 = scmp.lt.s32.totalorder %s459, 7
          %s461 = scalar_select %p460, %s459, 7
          %s462 = scalar_lea.vmem %s6, %s461
          %s463 = smul.u32 4, %s17
        $region71: #{rnn_decoder_forward.1} parent=43 // pred_fallthru
          _
        // Predicated region
        $region72: #{rnn_decoder_forward.1} parent=43 // pred_check
          %p464 = pneg %p215
        $region73: #{rnn_decoder_forward.1} parent=43 // pred_check_branch
          %466 = sbr.rel (%p464) target = $region75
        $region74: #{rnn_decoder_forward.1} parent=43 // pred_region
          %s467 = smul.u32 64, %s17
          %p468 = scmp.lt.s32.totalorder %s467, 127
          %s469 = scalar_select %p468, %s467, 127
          %s470 = smul.addr %s469, 4
          %s471 = scalar_lea.vmem %s8, %s470
          %s472 = smul.u32 64, %s17
        $region75: #{rnn_decoder_forward.1} parent=43 // pred_fallthru
          _
      $region44: #{rnn_decoder_forward.1} parent=5 // pred_fallthru
        _
      %p473 = scmp.le.s32.totalorder 1, %s17
      %p474 = scmp.lt.s32.totalorder %s17, 3
      %p475 = pnand %p473, %p474
      %p476 = pneg %p475
      // Predicated region
      $region76: #{rnn_decoder_forward.1} parent=5 // pred_check
        _
      $region77: #{rnn_decoder_forward.1} parent=5 // pred_check_branch
        %478 = sbr.rel (%p475) target = $region79
      $region78: #{rnn_decoder_forward.1} parent=5 // pred_region
        %s479 = ssub.s32 %s17, 1
        %s480 = sand.u32 %s135, 1
        %s481 = sand.u32 %s135, 1
        %s482 = smul.addr %s481, 512
        %s483 = scalar_lea.vmem [#allocation3], %s482
        // Predicated region
        $region80: #{rnn_decoder_forward.1} parent=78 // pred_check
          %p484 = pneg %p148
        $region81: #{rnn_decoder_forward.1} parent=78 // pred_check_branch
          %486 = sbr.rel (%p484) target = $region83
        $region82: #{rnn_decoder_forward.1} parent=78 // pred_region
          _
        $region83: #{rnn_decoder_forward.1} parent=78 // pred_fallthru
          _
        %p487 = pneg %p38
        %p488 = pneg %p35
        %p489 = pneg %p59
        %p490 = pneg %p56
        %p491 = pneg %p80
        %p492 = pneg %p77
        %p493 = pneg %p101
        %p494 = pneg %p98
        %p495 = pneg %p122
        %p496 = pneg %p119
        %s497 = sand.u32 %s135, 1
        %s498 = sand.u32 %s135, 1
        %s499 = smul.addr %s498, 512
        %s500 = scalar_lea.vmem [#allocation3], %s499
        %p501 = pneg %p148
        %p502 = pneg %p145
        %s503 = smul.u32 4, %s22
        %p504 = scmp.lt.s32.totalorder %s503, 7
        %s505 = scalar_select %p504, %s503, 7
        %s506 = scalar_lea.vmem %s6, %s505
        %p507 = pneg %p174
        %p508 = pneg %p171
        %p509 = pneg %p195
        %p510 = pneg %p192
        %s511 = smul.u32 64, %s22
        %p512 = scmp.lt.s32.totalorder %s511, 127
        %s513 = scalar_select %p512, %s511, 127
        %s514 = smul.addr %s513, 4
        %s515 = scalar_lea.vmem %s8, %s514
        %p516 = pneg %p221
        %p517 = pneg %p218
        %p518 = pneg %p242
        %p519 = pneg %p239
        %p520 = pneg %p263
        %p521 = pneg %p260
        %s522 = smul.u32 4, %s22
        %s523 = smul.u32 4, %s22
        %p524 = scmp.lt.s32.totalorder %s523, 7
        %s525 = scalar_select %p524, %s523, 7
        %s526 = scalar_lea.vmem %s6, %s525
        %s527 = smul.u32 4, %s22
        %s528 = smul.u32 64, %s22
        %p529 = scmp.lt.s32.totalorder %s528, 127
        %s530 = scalar_select %p529, %s528, 127
        %s531 = smul.addr %s530, 4
        %s532 = scalar_lea.vmem %s8, %s531
        %s533 = smul.u32 64, %s22
        %p535 = scmp.eq.s32.totalorder %s22, 0
        // Predicated region
        $region84: #{rnn_decoder_forward.1} parent=78 // pred_check
          %p536 = pneg %p535
        $region85: #{rnn_decoder_forward.1} parent=78 // pred_check_branch
          %538 = sbr.rel (%p536) target = $region87
        $region86: #{rnn_decoder_forward.1} parent=78 // pred_region
          %v539 = vld [vmem:[%s1] sm:$0xff]
          %v540 = vld [vmem:[%s1 + $0x8] sm:$0xff]
          %v541 = vpack.c.bf16 %v540, %v539
          %v542 = vld [vmem:[%s2] sm:$0xff]
          %v543 = vld [vmem:[%s2 + $0x8] sm:$0xff]
          %v544 = vld [vmem:[%s2 + $0x10] sm:$0xff]
          %v545 = vld [vmem:[%s2 + $0x18] sm:$0xff]
          %v546 = vld [vmem:[%s4] sm:$0xf]
          %v548 = vlaneseq
          %v549 = vshrl.u32 %v548, 7
          %v550 = vsub.s32 0, %v549
          %v551 = vrot.slane %v546, %v550
          %v552 = vlaneseq
          %v553 = vshrl.u32 %v552, 7
          %v554 = vsub.s32 1, %v553
          %v555 = vrot.slane %v546, %v554
          %v556 = vlaneseq
          %v557 = vshrl.u32 %v556, 7
          %v558 = vsub.s32 2, %v557
          %v559 = vrot.slane %v546, %v558
          %v560 = vlaneseq
          %v561 = vshrl.u32 %v560, 7
          %v562 = vsub.s32 3, %v561
          %v563 = vrot.slane %v546, %v562
          %v572 = vunpack.c.l.b16 %v542
          %v573 = vunpack.c.h.b16 %v542
          %v574 = vunpack.c.l.b16 %v543
          %v575 = vunpack.c.h.b16 %v543
          %v576 = vunpack.c.l.b16 %v544
          %v577 = vunpack.c.h.b16 %v544
          %v578 = vunpack.c.l.b16 %v545
          %v579 = vunpack.c.h.b16 %v545
          %v580 = vpack.c.b16 %v576, %v572
          %v581 = vpack.c.b16 %v577, %v573
          %v582 = vpack.c.b16 %v578, %v574
          %v583 = vpack.c.b16 %v579, %v575
          %vm588 = vcmask 130048
          %v590 = vsel %vm588, %v541, 0
          %592 = vmatprep.subr.bf16.mxu0 %v581
          %593 = vmatpush1.bf16.msra.mxu0 %v580
          %594 = vmatprep.subr.bf16.mxu0 0
          %595 = vmatpush1.bf16.msra.mxu0 0
          %596 = vmatprep.subr.bf16.mxu0 0
          %597 = vmatpush1.bf16.msra.mxu0 0
          %598 = vmatprep.subr.bf16.mxu0 0
          %599 = vmatpush1.bf16.msra.mxu0 0
          %600 = vmatprep.subr.bf16.mxu0 0
          %601 = vmatpush1.bf16.msra.mxu0 0
          %602 = vmatprep.subr.bf16.mxu0 0
          %603 = vmatpush1.bf16.msra.mxu0 0
          %604 = vmatprep.subr.bf16.mxu0 0
          %605 = vmatpush1.bf16.msra.mxu0 0
          %606 = vmatprep.subr.bf16.mxu0 0
          %607 = vmatpush1.bf16.msra.mxu0 0
          %608 = vmatprep.subr.bf16.mxu0 0
          %609 = vmatpush1.bf16.msra.mxu0 0
          %610 = vmatprep.subr.bf16.mxu0 0
          %611 = vmatpush1.bf16.msra.mxu0 0
          %612 = vmatprep.subr.bf16.mxu0 0
          %613 = vmatpush1.bf16.msra.mxu0 0
          %614 = vmatprep.subr.bf16.mxu0 0
          %615 = vmatpush1.bf16.msra.mxu0 0
          %616 = vmatprep.subr.bf16.mxu0 0
          %617 = vmatpush1.bf16.msra.mxu0 0
          %618 = vmatprep.subr.bf16.mxu0 0
          %619 = vmatpush1.bf16.msra.mxu0 0
          %620 = vmatprep.subr.bf16.mxu0 0
          %621 = vmatpush1.bf16.msra.mxu0 0
          %622 = vmatprep.subr.bf16.mxu0 0
          %623 = vmatpush1.bf16.msra.mxu0 0
          %624 = vmatprep.mubr.bf16.mxu0 0
          %625 = vmatmul.mubr.bf16.gmra.mrb[0].mxu0 %v590
          %v626 = vpop.f32.mrb[0].mxu0
          %v627 = vadd.f32 %v551, %v626
          %v628 = vpop.f32.mrb[0].mxu0
          %v629 = vadd.f32 %v555, %v628
          %v630 = vpop.f32.mrb[0].mxu0
          %v631 = vadd.f32 %v551, %v630
          %v632 = vpop.f32.mrb[0].mxu0
          %v633 = vadd.f32 %v555, %v632
          %634 = vdwg.mxu0
          %635 = vmatprep.subr.bf16.mxu0 %v583
          %636 = vmatpush1.bf16.msra.mxu0 %v582
          %637 = vmatprep.subr.bf16.mxu0 0
          %638 = vmatpush1.bf16.msra.mxu0 0
          %639 = vmatprep.subr.bf16.mxu0 0
          %640 = vmatpush1.bf16.msra.mxu0 0
          %641 = vmatprep.subr.bf16.mxu0 0
          %642 = vmatpush1.bf16.msra.mxu0 0
          %643 = vmatprep.subr.bf16.mxu0 0
          %644 = vmatpush1.bf16.msra.mxu0 0
          %645 = vmatprep.subr.bf16.mxu0 0
          %646 = vmatpush1.bf16.msra.mxu0 0
          %647 = vmatprep.subr.bf16.mxu0 0
          %648 = vmatpush1.bf16.msra.mxu0 0
          %649 = vmatprep.subr.bf16.mxu0 0
          %650 = vmatpush1.bf16.msra.mxu0 0
          %651 = vmatprep.subr.bf16.mxu0 0
          %652 = vmatpush1.bf16.msra.mxu0 0
          %653 = vmatprep.subr.bf16.mxu0 0
          %654 = vmatpush1.bf16.msra.mxu0 0
          %655 = vmatprep.subr.bf16.mxu0 0
          %656 = vmatpush1.bf16.msra.mxu0 0
          %657 = vmatprep.subr.bf16.mxu0 0
          %658 = vmatpush1.bf16.msra.mxu0 0
          %659 = vmatprep.subr.bf16.mxu0 0
          %660 = vmatpush1.bf16.msra.mxu0 0
          %661 = vmatprep.subr.bf16.mxu0 0
          %662 = vmatpush1.bf16.msra.mxu0 0
          %663 = vmatprep.subr.bf16.mxu0 0
          %664 = vmatpush1.bf16.msra.mxu0 0
          %665 = vmatprep.subr.bf16.mxu0 0
          %666 = vmatpush1.bf16.msra.mxu0 0
          %667 = vmatprep.mubr.bf16.mxu0 0
          %668 = vmatmul.mubr.bf16.gmra.mrb[0].mxu0 %v590
          %v669 = vpop.f32.mrb[0].mxu0
          %v670 = vadd.f32 %v559, %v669
          %v671 = vpop.f32.mrb[0].mxu0
          %v672 = vadd.f32 %v563, %v671
          %v673 = vpop.f32.mrb[0].mxu0
          %v674 = vadd.f32 %v559, %v673
          %v675 = vpop.f32.mrb[0].mxu0
          %v676 = vadd.f32 %v563, %v675
          %677 = vdwg.mxu0
          %v678 = vld [vmem:[%s3] sm:$0xff]
          %v679 = vld [vmem:[%s3 + $0x8] sm:$0xff]
          %v680 = vld [vmem:[%s3 + $0x10] sm:$0xff]
          %v681 = vld [vmem:[%s3 + $0x18] sm:$0xff]
          %v682 = vld [vmem:[%s3 + $0x20] sm:$0xff]
          %v683 = vld [vmem:[%s3 + $0x28] sm:$0xff]
          %v684 = vld [vmem:[%s3 + $0x30] sm:$0xff]
          %v685 = vld [vmem:[%s3 + $0x38] sm:$0xff]
          %v686 = vld [vmem:[%s3 + $0x40] sm:$0xff]
          %v687 = vld [vmem:[%s3 + $0x48] sm:$0xff]
          %v688 = vld [vmem:[%s3 + $0x50] sm:$0xff]
          %v689 = vld [vmem:[%s3 + $0x58] sm:$0xff]
          %v690 = vld [vmem:[%s3 + $0x60] sm:$0xff]
          %v691 = vld [vmem:[%s3 + $0x68] sm:$0xff]
          %v692 = vld [vmem:[%s3 + $0x70] sm:$0xff]
          %v693 = vld [vmem:[%s3 + $0x78] sm:$0xff]
          %v694 = vld [vmem:[%s3 + $0x80] sm:$0xff]
          %v695 = vld [vmem:[%s3 + $0x88] sm:$0xff]
          %v696 = vld [vmem:[%s3 + $0x90] sm:$0xff]
          %v697 = vld [vmem:[%s3 + $0x98] sm:$0xff]
          %v698 = vld [vmem:[%s3 + $0xa0] sm:$0xff]
          %v699 = vld [vmem:[%s3 + $0xa8] sm:$0xff]
          %v700 = vld [vmem:[%s3 + $0xb0] sm:$0xff]
          %v701 = vld [vmem:[%s3 + $0xb8] sm:$0xff]
          %v702 = vld [vmem:[%s3 + $0xc0] sm:$0xff]
          %v703 = vld [vmem:[%s3 + $0xc8] sm:$0xff]
          %v704 = vld [vmem:[%s3 + $0xd0] sm:$0xff]
          %v705 = vld [vmem:[%s3 + $0xd8] sm:$0xff]
          %v706 = vld [vmem:[%s3 + $0xe0] sm:$0xff]
          %v707 = vld [vmem:[%s3 + $0xe8] sm:$0xff]
          %v708 = vld [vmem:[%s3 + $0xf0] sm:$0xff]
          %v709 = vld [vmem:[%s3 + $0xf8] sm:$0xff]
          %v742 = vunpack.c.l.b16 %v678
          %v743 = vunpack.c.h.b16 %v678
          %v744 = vunpack.c.l.b16 %v679
          %v745 = vunpack.c.h.b16 %v679
          %v746 = vunpack.c.l.b16 %v680
          %v747 = vunpack.c.h.b16 %v680
          %v748 = vunpack.c.l.b16 %v681
          %v749 = vunpack.c.h.b16 %v681
          %v750 = vunpack.c.l.b16 %v682
          %v751 = vunpack.c.h.b16 %v682
          %v752 = vunpack.c.l.b16 %v683
          %v753 = vunpack.c.h.b16 %v683
          %v754 = vunpack.c.l.b16 %v684
          %v755 = vunpack.c.h.b16 %v684
          %v756 = vunpack.c.l.b16 %v685
          %v757 = vunpack.c.h.b16 %v685
          %v758 = vunpack.c.l.b16 %v686
          %v759 = vunpack.c.h.b16 %v686
          %v760 = vunpack.c.l.b16 %v687
          %v761 = vunpack.c.h.b16 %v687
          %v762 = vunpack.c.l.b16 %v688
          %v763 = vunpack.c.h.b16 %v688
          %v764 = vunpack.c.l.b16 %v689
          %v765 = vunpack.c.h.b16 %v689
          %v766 = vunpack.c.l.b16 %v690
          %v767 = vunpack.c.h.b16 %v690
          %v768 = vunpack.c.l.b16 %v691
          %v769 = vunpack.c.h.b16 %v691
          %v770 = vunpack.c.l.b16 %v692
          %v771 = vunpack.c.h.b16 %v692
          %v772 = vunpack.c.l.b16 %v693
          %v773 = vunpack.c.h.b16 %v693
          %v774 = vunpack.c.l.b16 %v694
          %v775 = vunpack.c.h.b16 %v694
          %v776 = vunpack.c.l.b16 %v695
          %v777 = vunpack.c.h.b16 %v695
          %v778 = vunpack.c.l.b16 %v696
          %v779 = vunpack.c.h.b16 %v696
          %v780 = vunpack.c.l.b16 %v697
          %v781 = vunpack.c.h.b16 %v697
          %v782 = vunpack.c.l.b16 %v698
          %v783 = vunpack.c.h.b16 %v698
          %v784 = vunpack.c.l.b16 %v699
          %v785 = vunpack.c.h.b16 %v699
          %v786 = vunpack.c.l.b16 %v700
          %v787 = vunpack.c.h.b16 %v700
          %v788 = vunpack.c.l.b16 %v701
          %v789 = vunpack.c.h.b16 %v701
          %v790 = vunpack.c.l.b16 %v702
          %v791 = vunpack.c.h.b16 %v702
          %v792 = vunpack.c.l.b16 %v703
          %v793 = vunpack.c.h.b16 %v703
          %v794 = vunpack.c.l.b16 %v704
          %v795 = vunpack.c.h.b16 %v704
          %v796 = vunpack.c.l.b16 %v705
          %v797 = vunpack.c.h.b16 %v705
          %v798 = vunpack.c.l.b16 %v706
          %v799 = vunpack.c.h.b16 %v706
          %v800 = vunpack.c.l.b16 %v707
          %v801 = vunpack.c.h.b16 %v707
          %v802 = vunpack.c.l.b16 %v708
          %v803 = vunpack.c.h.b16 %v708
          %v804 = vunpack.c.l.b16 %v709
          %v805 = vunpack.c.h.b16 %v709
          %v806 = vpack.c.b16 %v746, %v742
          %v807 = vpack.c.b16 %v747, %v743
          %v808 = vpack.c.b16 %v748, %v744
          %v809 = vpack.c.b16 %v749, %v745
          %v810 = vpack.c.b16 %v754, %v750
          %v811 = vpack.c.b16 %v755, %v751
          %v812 = vpack.c.b16 %v756, %v752
          %v813 = vpack.c.b16 %v757, %v753
          %v814 = vpack.c.b16 %v762, %v758
          %v815 = vpack.c.b16 %v763, %v759
          %v816 = vpack.c.b16 %v764, %v760
          %v817 = vpack.c.b16 %v765, %v761
          %v818 = vpack.c.b16 %v770, %v766
          %v819 = vpack.c.b16 %v771, %v767
          %v820 = vpack.c.b16 %v772, %v768
          %v821 = vpack.c.b16 %v773, %v769
          %v822 = vpack.c.b16 %v778, %v774
          %v823 = vpack.c.b16 %v779, %v775
          %v824 = vpack.c.b16 %v780, %v776
          %v825 = vpack.c.b16 %v781, %v777
          %v826 = vpack.c.b16 %v786, %v782
          %v827 = vpack.c.b16 %v787, %v783
          %v828 = vpack.c.b16 %v788, %v784
          %v829 = vpack.c.b16 %v789, %v785
          %v830 = vpack.c.b16 %v794, %v790
          %v831 = vpack.c.b16 %v795, %v791
          %v832 = vpack.c.b16 %v796, %v792
          %v833 = vpack.c.b16 %v797, %v793
          %v834 = vpack.c.b16 %v802, %v798
          %v835 = vpack.c.b16 %v803, %v799
          %v836 = vpack.c.b16 %v804, %v800
          %v837 = vpack.c.b16 %v805, %v801
          %870 = vmatprep.subr.bf16.mxu0 %v807
          %871 = vmatpush1.bf16.msra.mxu0 %v806
          %872 = vmatprep.subr.bf16.mxu0 %v811
          %873 = vmatpush1.bf16.msra.mxu0 %v810
          %874 = vmatprep.subr.bf16.mxu0 %v815
          %875 = vmatpush1.bf16.msra.mxu0 %v814
          %876 = vmatprep.subr.bf16.mxu0 %v819
          %877 = vmatpush1.bf16.msra.mxu0 %v818
          %878 = vmatprep.subr.bf16.mxu0 %v823
          %879 = vmatpush1.bf16.msra.mxu0 %v822
          %880 = vmatprep.subr.bf16.mxu0 %v827
          %881 = vmatpush1.bf16.msra.mxu0 %v826
          %882 = vmatprep.subr.bf16.mxu0 %v831
          %883 = vmatpush1.bf16.msra.mxu0 %v830
          %884 = vmatprep.subr.bf16.mxu0 %v835
          %885 = vmatpush1.bf16.msra.mxu0 %v834
          %886 = vmatprep.subr.bf16.mxu0 0
          %887 = vmatpush1.bf16.msra.mxu0 0
          %888 = vmatprep.subr.bf16.mxu0 0
          %889 = vmatpush1.bf16.msra.mxu0 0
          %890 = vmatprep.subr.bf16.mxu0 0
          %891 = vmatpush1.bf16.msra.mxu0 0
          %892 = vmatprep.subr.bf16.mxu0 0
          %893 = vmatpush1.bf16.msra.mxu0 0
          %894 = vmatprep.subr.bf16.mxu0 0
          %895 = vmatpush1.bf16.msra.mxu0 0
          %896 = vmatprep.subr.bf16.mxu0 0
          %897 = vmatpush1.bf16.msra.mxu0 0
          %898 = vmatprep.subr.bf16.mxu0 0
          %899 = vmatpush1.bf16.msra.mxu0 0
          %900 = vmatprep.subr.bf16.mxu0 0
          %901 = vmatpush1.bf16.msra.mxu0 0
          %902 = vmatprep.mubr.bf16.mxu0 0
          %903 = vmatmul.mubr.bf16.gmra.mrb[0].mxu0 0
          %v904 = vpop.f32.mrb[0].mxu0
          %v905 = vadd.f32 0.0, %v904
          %v906 = vpop.f32.mrb[0].mxu0
          %v907 = vadd.f32 0.0, %v906
          %v908 = vpop.f32.mrb[0].mxu0
          %v909 = vpop.f32.mrb[0].mxu0
          %910 = vdwg.mxu0
          %911 = vmatprep.subr.bf16.mxu0 %v809
          %912 = vmatpush1.bf16.msra.mxu0 %v808
          %913 = vmatprep.subr.bf16.mxu0 %v813
          %914 = vmatpush1.bf16.msra.mxu0 %v812
          %915 = vmatprep.subr.bf16.mxu0 %v817
          %916 = vmatpush1.bf16.msra.mxu0 %v816
          %917 = vmatprep.subr.bf16.mxu0 %v821
          %918 = vmatpush1.bf16.msra.mxu0 %v820
          %919 = vmatprep.subr.bf16.mxu0 %v825
          %920 = vmatpush1.bf16.msra.mxu0 %v824
          %921 = vmatprep.subr.bf16.mxu0 %v829
          %922 = vmatpush1.bf16.msra.mxu0 %v828
          %923 = vmatprep.subr.bf16.mxu0 %v833
          %924 = vmatpush1.bf16.msra.mxu0 %v832
          %925 = vmatprep.subr.bf16.mxu0 %v837
          %926 = vmatpush1.bf16.msra.mxu0 %v836
          %927 = vmatprep.subr.bf16.mxu0 0
          %928 = vmatpush1.bf16.msra.mxu0 0
          %929 = vmatprep.subr.bf16.mxu0 0
          %930 = vmatpush1.bf16.msra.mxu0 0
          %931 = vmatprep.subr.bf16.mxu0 0
          %932 = vmatpush1.bf16.msra.mxu0 0
          %933 = vmatprep.subr.bf16.mxu0 0
          %934 = vmatpush1.bf16.msra.mxu0 0
          %935 = vmatprep.subr.bf16.mxu0 0
          %936 = vmatpush1.bf16.msra.mxu0 0
          %937 = vmatprep.subr.bf16.mxu0 0
          %938 = vmatpush1.bf16.msra.mxu0 0
          %939 = vmatprep.subr.bf16.mxu0 0
          %940 = vmatpush1.bf16.msra.mxu0 0
          %941 = vmatprep.subr.bf16.mxu0 0
          %942 = vmatpush1.bf16.msra.mxu0 0
          %943 = vmatprep.mubr.bf16.mxu0 0
          %944 = vmatmul.mubr.bf16.gmra.mrb[0].mxu0 0
          %v945 = vpop.f32.mrb[0].mxu0
          %v946 = vadd.f32 0.0, %v945
          %v947 = vpop.f32.mrb[0].mxu0
          %v948 = vadd.f32 0.0, %v947
          %v949 = vpop.f32.mrb[0].mxu0
          %v950 = vpop.f32.mrb[0].mxu0
          %951 = vdwg.mxu0
          %v952 = vadd.f32 %v627, %v905
          %v953 = vadd.f32 %v629, %v907
          %v954 = vadd.f32 %v670, %v946
          %v955 = vadd.f32 %v672, %v948
          %v956 = vxor.u32 %v952, 2147483648
          %v957 = vmul.f32 %v956, 1.442695
          %v958 = vpow.pop %v957
          %v959 = vadd.f32 %v958, 1.0
          %v960 = vrcp.pop %v959
          %v961 = vmul.f32 1.0, %v960
          %v962 = vxor.u32 %v953, 2147483648
          %v963 = vmul.f32 %v962, 1.442695
          %v964 = vpow.pop %v963
          %v965 = vadd.f32 %v964, 1.0
          %v966 = vrcp.pop %v965
          %v967 = vmul.f32 1.0, %v966
          %v968 = vtanh.pop %v954
          %v969 = vxor.u32 %v955, 2147483648
          %v970 = vmul.f32 %v969, 1.442695
          %v971 = vpow.pop %v970
          %v972 = vadd.f32 %v971, 1.0
          %v973 = vrcp.pop %v972
          %v974 = vmul.f32 1.0, %v973
          %v975 = vmul.f32 %v967, 0.0
          %v976 = vmul.f32 %v961, %v968
          %v977 = vadd.f32 %v975, %v976
          %v978 = vtanh.pop %v977
          %v979 = vmul.f32 %v974, %v978
          %vm980 = vcmask 261120
          %981 = vst.msk [vmem:[#allocation2] sm:$0xff] %vm980, %v979
          %v982 = vpack.c.bf16 %v979, %v979
          %983 = vmatprep.subr.bf16.mxu0 %v807
          %984 = vmatpush1.bf16.msra.mxu0 %v806
          %985 = vmatprep.subr.bf16.mxu0 %v811
          %986 = vmatpush1.bf16.msra.mxu0 %v810
          %987 = vmatprep.subr.bf16.mxu0 %v815
          %988 = vmatpush1.bf16.msra.mxu0 %v814
          %989 = vmatprep.subr.bf16.mxu0 %v819
          %990 = vmatpush1.bf16.msra.mxu0 %v818
          %991 = vmatprep.subr.bf16.mxu0 %v823
          %992 = vmatpush1.bf16.msra.mxu0 %v822
          %993 = vmatprep.subr.bf16.mxu0 %v827
          %994 = vmatpush1.bf16.msra.mxu0 %v826
          %995 = vmatprep.subr.bf16.mxu0 %v831
          %996 = vmatpush1.bf16.msra.mxu0 %v830
          %997 = vmatprep.subr.bf16.mxu0 %v835
          %998 = vmatpush1.bf16.msra.mxu0 %v834
          %999 = vmatprep.subr.bf16.mxu0 0
          %1000 = vmatpush1.bf16.msra.mxu0 0
          %1001 = vmatprep.subr.bf16.mxu0 0
          %1002 = vmatpush1.bf16.msra.mxu0 0
          %1003 = vmatprep.subr.bf16.mxu0 0
          %1004 = vmatpush1.bf16.msra.mxu0 0
          %1005 = vmatprep.subr.bf16.mxu0 0
          %1006 = vmatpush1.bf16.msra.mxu0 0
          %1007 = vmatprep.subr.bf16.mxu0 0
          %1008 = vmatpush1.bf16.msra.mxu0 0
          %1009 = vmatprep.subr.bf16.mxu0 0
          %1010 = vmatpush1.bf16.msra.mxu0 0
          %1011 = vmatprep.subr.bf16.mxu0 0
          %1012 = vmatpush1.bf16.msra.mxu0 0
          %1013 = vmatprep.subr.bf16.mxu0 0
          %1014 = vmatpush1.bf16.msra.mxu0 0
          %1015 = vmatprep.mubr.bf16.mxu0 0
          %1016 = vmatmul.mubr.bf16.gmra.mrb[0].mxu0 %v982
          %v1017 = vpop.f32.mrb[0].mxu0
          %v1018 = vadd.f32 0.0, %v1017
          %v1019 = vpop.f32.mrb[0].mxu0
          %v1020 = vadd.f32 0.0, %v1019
          %v1021 = vpop.f32.mrb[0].mxu0
          %v1022 = vpop.f32.mrb[0].mxu0
          %1023 = vdwg.mxu0
          %1024 = vmatprep.subr.bf16.mxu0 %v809
          %1025 = vmatpush1.bf16.msra.mxu0 %v808
          %1026 = vmatprep.subr.bf16.mxu0 %v813
          %1027 = vmatpush1.bf16.msra.mxu0 %v812
          %1028 = vmatprep.subr.bf16.mxu0 %v817
          %1029 = vmatpush1.bf16.msra.mxu0 %v816
          %1030 = vmatprep.subr.bf16.mxu0 %v821
          %1031 = vmatpush1.bf16.msra.mxu0 %v820
          %1032 = vmatprep.subr.bf16.mxu0 %v825
          %1033 = vmatpush1.bf16.msra.mxu0 %v824
          %1034 = vmatprep.subr.bf16.mxu0 %v829
          %1035 = vmatpush1.bf16.msra.mxu0 %v828
          %1036 = vmatprep.subr.bf16.mxu0 %v833
          %1037 = vmatpush1.bf16.msra.mxu0 %v832
          %1038 = vmatprep.subr.bf16.mxu0 %v837
          %1039 = vmatpush1.bf16.msra.mxu0 %v836
          %1040 = vmatprep.subr.bf16.mxu0 0
          %1041 = vmatpush1.bf16.msra.mxu0 0
          %1042 = vmatprep.subr.bf16.mxu0 0
          %1043 = vmatpush1.bf16.msra.mxu0 0
          %1044 = vmatprep.subr.bf16.mxu0 0
          %1045 = vmatpush1.bf16.msra.mxu0 0
          %1046 = vmatprep.subr.bf16.mxu0 0
          %1047 = vmatpush1.bf16.msra.mxu0 0
          %1048 = vmatprep.subr.bf16.mxu0 0
          %1049 = vmatpush1.bf16.msra.mxu0 0
          %1050 = vmatprep.subr.bf16.mxu0 0
          %1051 = vmatpush1.bf16.msra.mxu0 0
          %1052 = vmatprep.subr.bf16.mxu0 0
          %1053 = vmatpush1.bf16.msra.mxu0 0
          %1054 = vmatprep.subr.bf16.mxu0 0
          %1055 = vmatpush1.bf16.msra.mxu0 0
          %1056 = vmatprep.mubr.bf16.mxu0 0
          %1057 = vmatmul.mubr.bf16.gmra.mrb[0].mxu0 %v982
          %v1058 = vpop.f32.mrb[0].mxu0
          %v1059 = vadd.f32 0.0, %v1058
          %v1060 = vpop.f32.mrb[0].mxu0
          %v1061 = vadd.f32 0.0, %v1060
          %v1062 = vpop.f32.mrb[0].mxu0
          %v1063 = vpop.f32.mrb[0].mxu0
          %1064 = vdwg.mxu0
          %v1065 = vadd.f32 %v631, %v1018
          %v1066 = vadd.f32 %v633, %v1020
          %v1067 = vadd.f32 %v674, %v1059
          %v1068 = vadd.f32 %v676, %v1061
          %v1069 = vxor.u32 %v1065, 2147483648
          %v1070 = vmul.f32 %v1069, 1.442695
          %v1071 = vpow.pop %v1070
          %v1072 = vadd.f32 %v1071, 1.0
          %v1073 = vrcp.pop %v1072
          %v1074 = vmul.f32 1.0, %v1073
          %v1075 = vxor.u32 %v1066, 2147483648
          %v1076 = vmul.f32 %v1075, 1.442695
          %v1077 = vpow.pop %v1076
          %v1078 = vadd.f32 %v1077, 1.0
          %v1079 = vrcp.pop %v1078
          %v1080 = vmul.f32 1.0, %v1079
          %v1081 = vtanh.pop %v1067
          %v1082 = vxor.u32 %v1068, 2147483648
          %v1083 = vmul.f32 %v1082, 1.442695
          %v1084 = vpow.pop %v1083
          %v1085 = vadd.f32 %v1084, 1.0
          %v1086 = vrcp.pop %v1085
          %v1087 = vmul.f32 1.0, %v1086
          %v1088 = vmul.f32 %v1080, %v977
          %v1089 = vmul.f32 %v1074, %v1081
          %v1090 = vadd.f32 %v1088, %v1089
          %v1091 = vtanh.pop %v1090
          %v1092 = vmul.f32 %v1087, %v1091
          %s1093 = scalar_lea.vmem [#allocation2], 8
          %1094 = vst.msk [vmem:[%s1093] sm:$0xff] %vm980, %v1092
          %v1095 = vld [vmem:[%s0] sm:$0xff]
          %v1096 = vld [vmem:[%s0 + $0x8] sm:$0xff]
          %v1097 = vld [vmem:[%s7] sm:$0xff]
          %v1098 = vld [vmem:[%s7 + $0x8] sm:$0xff]
          %v1099 = vld [vmem:[%s7 + $0x10] sm:$0xff]
          %v1100 = vld [vmem:[%s7 + $0x18] sm:$0xff]
          %v1101 = vld [vmem:[%s7 + $0x20] sm:$0xff]
          %v1102 = vld [vmem:[%s7 + $0x28] sm:$0xff]
          %v1103 = vld [vmem:[%s7 + $0x30] sm:$0xff]
          %v1104 = vld [vmem:[%s7 + $0x38] sm:$0xff]
          %v1105 = vld [vmem:[%s7 + $0x40] sm:$0xff]
          %v1106 = vld [vmem:[%s7 + $0x48] sm:$0xff]
          %v1107 = vld [vmem:[%s7 + $0x50] sm:$0xff]
          %v1108 = vld [vmem:[%s7 + $0x58] sm:$0xff]
          %v1109 = vld [vmem:[%s7 + $0x60] sm:$0xff]
          %v1110 = vld [vmem:[%s7 + $0x68] sm:$0xff]
          %v1111 = vld [vmem:[%s7 + $0x70] sm:$0xff]
          %v1112 = vld [vmem:[%s7 + $0x78] sm:$0xff]
          %v1113 = vld [vmem:[%s7 + $0x80] sm:$0xff]
          %v1114 = vld [vmem:[%s7 + $0x88] sm:$0xff]
          %v1115 = vld [vmem:[%s7 + $0x90] sm:$0xff]
          %v1116 = vld [vmem:[%s7 + $0x98] sm:$0xff]
          %v1117 = vld [vmem:[%s7 + $0xa0] sm:$0xff]
          %v1118 = vld [vmem:[%s7 + $0xa8] sm:$0xff]
          %v1119 = vld [vmem:[%s7 + $0xb0] sm:$0xff]
          %v1120 = vld [vmem:[%s7 + $0xb8] sm:$0xff]
          %v1121 = vld [vmem:[%s7 + $0xc0] sm:$0xff]
          %v1122 = vld [vmem:[%s7 + $0xc8] sm:$0xff]
          %v1123 = vld [vmem:[%s7 + $0xd0] sm:$0xff]
          %v1124 = vld [vmem:[%s7 + $0xd8] sm:$0xff]
          %v1125 = vld [vmem:[%s7 + $0xe0] sm:$0xff]
          %v1126 = vld [vmem:[%s7 + $0xe8] sm:$0xff]
          %v1127 = vld [vmem:[%s7 + $0xf0] sm:$0xff]
          %v1128 = vld [vmem:[%s7 + $0xf8] sm:$0xff]
          %v1129 = vld [vmem:[%s7 + $0x100] sm:$0xff]
          %v1130 = vld [vmem:[%s7 + $0x108] sm:$0xff]
          %v1131 = vld [vmem:[%s7 + $0x110] sm:$0xff]
          %v1132 = vld [vmem:[%s7 + $0x118] sm:$0xff]
          %v1133 = vld [vmem:[%s7 + $0x120] sm:$0xff]
          %v1134 = vld [vmem:[%s7 + $0x128] sm:$0xff]
          %v1135 = vld [vmem:[%s7 + $0x130] sm:$0xff]
          %v1136 = vld [vmem:[%s7 + $0x138] sm:$0xff]
          %v1137 = vld [vmem:[%s7 + $0x140] sm:$0xff]
          %v1138 = vld [vmem:[%s7 + $0x148] sm:$0xff]
          %v1139 = vld [vmem:[%s7 + $0x150] sm:$0xff]
          %v1140 = vld [vmem:[%s7 + $0x158] sm:$0xff]
          %v1141 = vld [vmem:[%s7 + $0x160] sm:$0xff]
          %v1142 = vld [vmem:[%s7 + $0x168] sm:$0xff]
          %v1143 = vld [vmem:[%s7 + $0x170] sm:$0xff]
          %v1144 = vld [vmem:[%s7 + $0x178] sm:$0xff]
          %v1145 = vld [vmem:[%s7 + $0x180] sm:$0xff]
          %v1146 = vld [vmem:[%s7 + $0x188] sm:$0xff]
          %v1147 = vld [vmem:[%s7 + $0x190] sm:$0xff]
          %v1148 = vld [vmem:[%s7 + $0x198] sm:$0xff]
          %v1149 = vld [vmem:[%s7 + $0x1a0] sm:$0xff]
          %v1150 = vld [vmem:[%s7 + $0x1a8] sm:$0xff]
          %v1151 = vld [vmem:[%s7 + $0x1b0] sm:$0xff]
          %v1152 = vld [vmem:[%s7 + $0x1b8] sm:$0xff]
          %v1153 = vld [vmem:[%s7 + $0x1c0] sm:$0xff]
          %v1154 = vld [vmem:[%s7 + $0x1c8] sm:$0xff]
          %v1155 = vld [vmem:[%s7 + $0x1d0] sm:$0xff]
          %v1156 = vld [vmem:[%s7 + $0x1d8] sm:$0xff]
          %v1157 = vld [vmem:[%s7 + $0x1e0] sm:$0xff]
          %v1158 = vld [vmem:[%s7 + $0x1e8] sm:$0xff]
          %v1159 = vld [vmem:[%s7 + $0x1f0] sm:$0xff]
          %v1160 = vld [vmem:[%s7 + $0x1f8] sm:$0xff]
          %v1161 = vld [vmem:[%s7 + $0x200] sm:$0xff]
          %v1162 = vld [vmem:[%s7 + $0x208] sm:$0xff]
          %v1163 = vld [vmem:[%s7 + $0x210] sm:$0xff]
          %v1164 = vld [vmem:[%s7 + $0x218] sm:$0xff]
          %v1165 = vld [vmem:[%s7 + $0x220] sm:$0xff]
          %v1166 = vld [vmem:[%s7 + $0x228] sm:$0xff]
          %v1167 = vld [vmem:[%s7 + $0x230] sm:$0xff]
          %v1168 = vld [vmem:[%s7 + $0x238] sm:$0xff]
          %v1169 = vld [vmem:[%s7 + $0x240] sm:$0xff]
          %v1170 = vld [vmem:[%s7 + $0x248] sm:$0xff]
          %v1171 = vld [vmem:[%s7 + $0x250] sm:$0xff]
          %v1172 = vld [vmem:[%s7 + $0x258] sm:$0xff]
          %v1173 = vld [vmem:[%s7 + $0x260] sm:$0xff]
          %v1174 = vld [vmem:[%s7 + $0x268] sm:$0xff]
          %v1175 = vld [vmem:[%s7 + $0x270] sm:$0xff]
          %v1176 = vld [vmem:[%s7 + $0x278] sm:$0xff]
          %v1177 = vld [vmem:[%s7 + $0x280] sm:$0xff]
          %v1178 = vld [vmem:[%s7 + $0x288] sm:$0xff]
          %v1179 = vld [vmem:[%s7 + $0x290] sm:$0xff]
          %v1180 = vld [vmem:[%s7 + $0x298] sm:$0xff]
          %v1181 = vld [vmem:[%s7 + $0x2a0] sm:$0xff]
          %v1182 = vld [vmem:[%s7 + $0x2a8] sm:$0xff]
          %v1183 = vld [vmem:[%s7 + $0x2b0] sm:$0xff]
          %v1184 = vld [vmem:[%s7 + $0x2b8] sm:$0xff]
          %v1185 = vld [vmem:[%s7 + $0x2c0] sm:$0xff]
          %v1186 = vld [vmem:[%s7 + $0x2c8] sm:$0xff]
          %v1187 = vld [vmem:[%s7 + $0x2d0] sm:$0xff]
          %v1188 = vld [vmem:[%s7 + $0x2d8] sm:$0xff]
          %v1189 = vld [vmem:[%s7 + $0x2e0] sm:$0xff]
          %v1190 = vld [vmem:[%s7 + $0x2e8] sm:$0xff]
          %v1191 = vld [vmem:[%s7 + $0x2f0] sm:$0xff]
          %v1192 = vld [vmem:[%s7 + $0x2f8] sm:$0xff]
          %v1193 = vld [vmem:[%s7 + $0x300] sm:$0xff]
          %v1194 = vld [vmem:[%s7 + $0x308] sm:$0xff]
          %v1195 = vld [vmem:[%s7 + $0x310] sm:$0xff]
          %v1196 = vld [vmem:[%s7 + $0x318] sm:$0xff]
          %v1197 = vld [vmem:[%s7 + $0x320] sm:$0xff]
          %v1198 = vld [vmem:[%s7 + $0x328] sm:$0xff]
          %v1199 = vld [vmem:[%s7 + $0x330] sm:$0xff]
          %v1200 = vld [vmem:[%s7 + $0x338] sm:$0xff]
          %v1201 = vld [vmem:[%s7 + $0x340] sm:$0xff]
          %v1202 = vld [vmem:[%s7 + $0x348] sm:$0xff]
          %v1203 = vld [vmem:[%s7 + $0x350] sm:$0xff]
          %v1204 = vld [vmem:[%s7 + $0x358] sm:$0xff]
          %v1205 = vld [vmem:[%s7 + $0x360] sm:$0xff]
          %v1206 = vld [vmem:[%s7 + $0x368] sm:$0xff]
          %v1207 = vld [vmem:[%s7 + $0x370] sm:$0xff]
          %v1208 = vld [vmem:[%s7 + $0x378] sm:$0xff]
          %v1209 = vld [vmem:[%s7 + $0x380] sm:$0xff]
          %v1210 = vld [vmem:[%s7 + $0x388] sm:$0xff]
          %v1211 = vld [vmem:[%s7 + $0x390] sm:$0xff]
          %v1212 = vld [vmem:[%s7 + $0x398] sm:$0xff]
          %v1213 = vld [vmem:[%s7 + $0x3a0] sm:$0xff]
          %v1214 = vld [vmem:[%s7 + $0x3a8] sm:$0xff]
          %v1215 = vld [vmem:[%s7 + $0x3b0] sm:$0xff]
          %v1216 = vld [vmem:[%s7 + $0x3b8] sm:$0xff]
          %v1217 = vld [vmem:[%s7 + $0x3c0] sm:$0xff]
          %v1218 = vld [vmem:[%s7 + $0x3c8] sm:$0xff]
          %v1219 = vld [vmem:[%s7 + $0x3d0] sm:$0xff]
          %v1220 = vld [vmem:[%s7 + $0x3d8] sm:$0xff]
          %v1221 = vld [vmem:[%s7 + $0x3e0] sm:$0xff]
          %v1222 = vld [vmem:[%s9] sm:$0x1]
          %v1224 = vlaneseq
          %v1225 = vshrl.u32 %v1224, 7
          %v1226 = vsub.s32 0, %v1225
          %v1227 = vrot.slane %v1222, %v1226
          %v1231 = vcombine.high %v1095, %v1095
          %v1233 = vunpack.c.l.s4 1983009808
          %v1234 = vunpack.c.0.s8 %v1233
          %v1235 = vlaneseq
          %v1236 = vshrl.u32 %v1235, 7
          %v1237 = vsub.s32 %v1234, %v1236
          %v1238 = vrot.slane %v1095, %v1237
          %v1240 = vunpack.c.l.s4 1983009808
          %v1241 = vunpack.c.0.s8 %v1240
          %v1242 = vlaneseq
          %v1243 = vshrl.u32 %v1242, 7
          %v1244 = vsub.s32 %v1241, %v1243
          %v1245 = vrot.slane %v1231, %v1244
          %v1246 = vcombine.high %v1238, %v1238
          %v1247 = vcombine.high %v1245, %v1245
          %v1248 = vcombine.high %v1096, %v1096
          %v1250 = vunpack.c.l.s4 1983009808
          %v1251 = vunpack.c.0.s8 %v1250
          %v1252 = vlaneseq
          %v1253 = vshrl.u32 %v1252, 7
          %v1254 = vsub.s32 %v1251, %v1253
          %v1255 = vrot.slane %v1096, %v1254
          %v1257 = vunpack.c.l.s4 1983009808
          %v1258 = vunpack.c.0.s8 %v1257
          %v1259 = vlaneseq
          %v1260 = vshrl.u32 %v1259, 7
          %v1261 = vsub.s32 %v1258, %v1260
          %v1262 = vrot.slane %v1248, %v1261
          %v1263 = vcombine.high %v1255, %v1255
          %v1264 = vcombine.high %v1262, %v1262
          %vm1272 = vcmask 850944
          %v1273 = vsel %vm1272, %v1264, 0
          %1275 = vmatprep.subr.mxu0 0.0
          %1276 = vmatpush1.msra.mxu0 %v1097
          %1277 = vmatprep.subr.mxu0 0.0
          %1278 = vmatpush1.msra.mxu0 %v1098
          %1279 = vmatprep.subr.mxu0 0.0
          %1280 = vmatpush1.msra.mxu0 %v1099
          %1281 = vmatprep.subr.mxu0 0.0
          %1282 = vmatpush1.msra.mxu0 %v1100
          %1283 = vmatprep.subr.mxu0 0.0
          %1284 = vmatpush1.msra.mxu0 %v1101
          %1285 = vmatprep.subr.mxu0 0.0
          %1286 = vmatpush1.msra.mxu0 %v1102
          %1287 = vmatprep.subr.mxu0 0.0
          %1288 = vmatpush1.msra.mxu0 %v1103
          %1289 = vmatprep.subr.mxu0 0.0
          %1290 = vmatpush1.msra.mxu0 %v1104
          %1291 = vmatprep.subr.mxu0 0.0
          %1292 = vmatpush1.msra.mxu0 %v1105
          %1293 = vmatprep.subr.mxu0 0.0
          %1294 = vmatpush1.msra.mxu0 %v1106
          %1295 = vmatprep.subr.mxu0 0.0
          %1296 = vmatpush1.msra.mxu0 %v1107
          %1297 = vmatprep.subr.mxu0 0.0
          %1298 = vmatpush1.msra.mxu0 %v1108
          %1299 = vmatprep.subr.mxu0 0.0
          %1300 = vmatpush1.msra.mxu0 %v1109
          %1301 = vmatprep.subr.mxu0 0.0
          %1302 = vmatpush1.msra.mxu0 %v1110
          %1303 = vmatprep.subr.mxu0 0.0
          %1304 = vmatpush1.msra.mxu0 %v1111
          %1305 = vmatprep.subr.mxu0 0.0
          %1306 = vmatpush1.msra.mxu0 %v1112
          %1307 = vmatprep.subr.mxu0 0.0
          %1308 = vmatpush1.msra.mxu0 %v1113
          %1309 = vmatprep.subr.mxu0 0.0
          %1310 = vmatpush1.msra.mxu0 %v1114
          %1311 = vmatprep.subr.mxu0 0.0
          %1312 = vmatpush1.msra.mxu0 %v1115
          %1313 = vmatprep.subr.mxu0 0.0
          %1314 = vmatpush1.msra.mxu0 %v1116
          %1315 = vmatprep.subr.mxu0 0.0
          %1316 = vmatpush1.msra.mxu0 %v1117
          %1317 = vmatprep.subr.mxu0 0.0
          %1318 = vmatpush1.msra.mxu0 %v1118
          %1319 = vmatprep.subr.mxu0 0.0
          %1320 = vmatpush1.msra.mxu0 %v1119
          %1321 = vmatprep.subr.mxu0 0.0
          %1322 = vmatpush1.msra.mxu0 %v1120
          %1323 = vmatprep.subr.mxu0 0.0
          %1324 = vmatpush1.msra.mxu0 %v1121
          %1325 = vmatprep.subr.mxu0 0.0
          %1326 = vmatpush1.msra.mxu0 %v1122
          %1327 = vmatprep.subr.mxu0 0.0
          %1328 = vmatpush1.msra.mxu0 %v1123
          %1329 = vmatprep.subr.mxu0 0.0
          %1330 = vmatpush1.msra.mxu0 %v1124
          %1331 = vmatprep.subr.mxu0 0.0
          %1332 = vmatpush1.msra.mxu0 %v1125
          %1333 = vmatprep.subr.mxu0 0.0
          %1334 = vmatpush1.msra.mxu0 %v1126
          %1335 = vmatprep.subr.mxu0 0.0
          %1336 = vmatpush1.msra.mxu0 %v1127
          %1337 = vmatprep.subr.mxu0 0.0
          %1338 = vmatpush1.msra.mxu0 %v1128
          %1339 = vmatprep.mubr.f32.mxu0 %v1246
          %1340 = vmatmul.mubr.f32.gmra.mrb[0].mxu0 %v1238
          %v1341 = vpop.f32.mrb[0].mxu0
          %v1342 = vadd.f32 %v1227, %v1341
          %v1343 = vpop.f32.mrb[0].mxu0
          %1344 = vdwg.mxu0
          %1345 = vmatprep.subr.mxu0 0.0
          %1346 = vmatpush1.msra.mxu0 %v1129
          %1347 = vmatprep.subr.mxu0 0.0
          %1348 = vmatpush1.msra.mxu0 %v1130
          %1349 = vmatprep.subr.mxu0 0.0
          %1350 = vmatpush1.msra.mxu0 %v1131
          %1351 = vmatprep.subr.mxu0 0.0
          %1352 = vmatpush1.msra.mxu0 %v1132
          %1353 = vmatprep.subr.mxu0 0.0
          %1354 = vmatpush1.msra.mxu0 %v1133
          %1355 = vmatprep.subr.mxu0 0.0
          %1356 = vmatpush1.msra.mxu0 %v1134
          %1357 = vmatprep.subr.mxu0 0.0
          %1358 = vmatpush1.msra.mxu0 %v1135
          %1359 = vmatprep.subr.mxu0 0.0
          %1360 = vmatpush1.msra.mxu0 %v1136
          %1361 = vmatprep.subr.mxu0 0.0
          %1362 = vmatpush1.msra.mxu0 %v1137
          %1363 = vmatprep.subr.mxu0 0.0
          %1364 = vmatpush1.msra.mxu0 %v1138
          %1365 = vmatprep.subr.mxu0 0.0
          %1366 = vmatpush1.msra.mxu0 %v1139
          %1367 = vmatprep.subr.mxu0 0.0
          %1368 = vmatpush1.msra.mxu0 %v1140
          %1369 = vmatprep.subr.mxu0 0.0
          %1370 = vmatpush1.msra.mxu0 %v1141
          %1371 = vmatprep.subr.mxu0 0.0
          %1372 = vmatpush1.msra.mxu0 %v1142
          %1373 = vmatprep.subr.mxu0 0.0
          %1374 = vmatpush1.msra.mxu0 %v1143
          %1375 = vmatprep.subr.mxu0 0.0
          %1376 = vmatpush1.msra.mxu0 %v1144
          %1377 = vmatprep.subr.mxu0 0.0
          %1378 = vmatpush1.msra.mxu0 %v1145
          %1379 = vmatprep.subr.mxu0 0.0
          %1380 = vmatpush1.msra.mxu0 %v1146
          %1381 = vmatprep.subr.mxu0 0.0
          %1382 = vmatpush1.msra.mxu0 %v1147
          %1383 = vmatprep.subr.mxu0 0.0
          %1384 = vmatpush1.msra.mxu0 %v1148
          %1385 = vmatprep.subr.mxu0 0.0
          %1386 = vmatpush1.msra.mxu0 %v1149
          %1387 = vmatprep.subr.mxu0 0.0
          %1388 = vmatpush1.msra.mxu0 %v1150
          %1389 = vmatprep.subr.mxu0 0.0
          %1390 = vmatpush1.msra.mxu0 %v1151
          %1391 = vmatprep.subr.mxu0 0.0
          %1392 = vmatpush1.msra.mxu0 %v1152
          %1393 = vmatprep.subr.mxu0 0.0
          %1394 = vmatpush1.msra.mxu0 %v1153
          %1395 = vmatprep.subr.mxu0 0.0
          %1396 = vmatpush1.msra.mxu0 %v1154
          %1397 = vmatprep.subr.mxu0 0.0
          %1398 = vmatpush1.msra.mxu0 %v1155
          %1399 = vmatprep.subr.mxu0 0.0
          %1400 = vmatpush1.msra.mxu0 %v1156
          %1401 = vmatprep.subr.mxu0 0.0
          %1402 = vmatpush1.msra.mxu0 %v1157
          %1403 = vmatprep.subr.mxu0 0.0
          %1404 = vmatpush1.msra.mxu0 %v1158
          %1405 = vmatprep.subr.mxu0 0.0
          %1406 = vmatpush1.msra.mxu0 %v1159
          %1407 = vmatprep.subr.mxu0 0.0
          %1408 = vmatpush1.msra.mxu0 %v1160
          %1409 = vmatprep.mubr.f32.mxu0 %v1247
          %1410 = vmatmul.mubr.f32.gmra.mrb[0].mxu0 %v1245
          %v1411 = vpop.f32.mrb[0].mxu0
          %v1412 = vadd.f32 %v1342, %v1411
          %v1413 = vpop.f32.mrb[0].mxu0
          %1414 = vdwg.mxu0
          %1415 = vmatprep.subr.mxu0 0.0
          %1416 = vmatpush1.msra.mxu0 %v1161
          %1417 = vmatprep.subr.mxu0 0.0
          %1418 = vmatpush1.msra.mxu0 %v1162
          %1419 = vmatprep.subr.mxu0 0.0
          %1420 = vmatpush1.msra.mxu0 %v1163
          %1421 = vmatprep.subr.mxu0 0.0
          %1422 = vmatpush1.msra.mxu0 %v1164
          %1423 = vmatprep.subr.mxu0 0.0
          %1424 = vmatpush1.msra.mxu0 %v1165
          %1425 = vmatprep.subr.mxu0 0.0
          %1426 = vmatpush1.msra.mxu0 %v1166
          %1427 = vmatprep.subr.mxu0 0.0
          %1428 = vmatpush1.msra.mxu0 %v1167
          %1429 = vmatprep.subr.mxu0 0.0
          %1430 = vmatpush1.msra.mxu0 %v1168
          %1431 = vmatprep.subr.mxu0 0.0
          %1432 = vmatpush1.msra.mxu0 %v1169
          %1433 = vmatprep.subr.mxu0 0.0
          %1434 = vmatpush1.msra.mxu0 %v1170
          %1435 = vmatprep.subr.mxu0 0.0
          %1436 = vmatpush1.msra.mxu0 %v1171
          %1437 = vmatprep.subr.mxu0 0.0
          %1438 = vmatpush1.msra.mxu0 %v1172
          %1439 = vmatprep.subr.mxu0 0.0
          %1440 = vmatpush1.msra.mxu0 %v1173
          %1441 = vmatprep.subr.mxu0 0.0
          %1442 = vmatpush1.msra.mxu0 %v1174
          %1443 = vmatprep.subr.mxu0 0.0
          %1444 = vmatpush1.msra.mxu0 %v1175
          %1445 = vmatprep.subr.mxu0 0.0
          %1446 = vmatpush1.msra.mxu0 %v1176
          %1447 = vmatprep.subr.mxu0 0.0
          %1448 = vmatpush1.msra.mxu0 %v1177
          %1449 = vmatprep.subr.mxu0 0.0
          %1450 = vmatpush1.msra.mxu0 %v1178
          %1451 = vmatprep.subr.mxu0 0.0
          %1452 = vmatpush1.msra.mxu0 %v1179
          %1453 = vmatprep.subr.mxu0 0.0
          %1454 = vmatpush1.msra.mxu0 %v1180
          %1455 = vmatprep.subr.mxu0 0.0
          %1456 = vmatpush1.msra.mxu0 %v1181
          %1457 = vmatprep.subr.mxu0 0.0
          %1458 = vmatpush1.msra.mxu0 %v1182
          %1459 = vmatprep.subr.mxu0 0.0
          %1460 = vmatpush1.msra.mxu0 %v1183
          %1461 = vmatprep.subr.mxu0 0.0
          %1462 = vmatpush1.msra.mxu0 %v1184
          %1463 = vmatprep.subr.mxu0 0.0
          %1464 = vmatpush1.msra.mxu0 %v1185
          %1465 = vmatprep.subr.mxu0 0.0
          %1466 = vmatpush1.msra.mxu0 %v1186
          %1467 = vmatprep.subr.mxu0 0.0
          %1468 = vmatpush1.msra.mxu0 %v1187
          %1469 = vmatprep.subr.mxu0 0.0
          %1470 = vmatpush1.msra.mxu0 %v1188
          %1471 = vmatprep.subr.mxu0 0.0
          %1472 = vmatpush1.msra.mxu0 %v1189
          %1473 = vmatprep.subr.mxu0 0.0
          %1474 = vmatpush1.msra.mxu0 %v1190
          %1475 = vmatprep.subr.mxu0 0.0
          %1476 = vmatpush1.msra.mxu0 %v1191
          %1477 = vmatprep.subr.mxu0 0.0
          %1478 = vmatpush1.msra.mxu0 %v1192
          %1479 = vmatprep.mubr.f32.mxu0 %v1263
          %1480 = vmatmul.mubr.f32.gmra.mrb[0].mxu0 %v1255
          %v1481 = vpop.f32.mrb[0].mxu0
          %v1482 = vadd.f32 %v1412, %v1481
          %v1483 = vpop.f32.mrb[0].mxu0
          %1484 = vdwg.mxu0
          %1485 = vmatprep.subr.mxu0 0.0
          %1486 = vmatpush1.msra.mxu0 %v1193
          %1487 = vmatprep.subr.mxu0 0.0
          %1488 = vmatpush1.msra.mxu0 %v1194
          %1489 = vmatprep.subr.mxu0 0.0
          %1490 = vmatpush1.msra.mxu0 %v1195
          %1491 = vmatprep.subr.mxu0 0.0
          %1492 = vmatpush1.msra.mxu0 %v1196
          %1493 = vmatprep.subr.mxu0 0.0
          %1494 = vmatpush1.msra.mxu0 %v1197
          %1495 = vmatprep.subr.mxu0 0.0
          %1496 = vmatpush1.msra.mxu0 %v1198
          %1497 = vmatprep.subr.mxu0 0.0
          %1498 = vmatpush1.msra.mxu0 %v1199
          %1499 = vmatprep.subr.mxu0 0.0
          %1500 = vmatpush1.msra.mxu0 %v1200
          %1501 = vmatprep.subr.mxu0 0.0
          %1502 = vmatpush1.msra.mxu0 %v1201
          %1503 = vmatprep.subr.mxu0 0.0
          %1504 = vmatpush1.msra.mxu0 %v1202
          %1505 = vmatprep.subr.mxu0 0.0
          %1506 = vmatpush1.msra.mxu0 %v1203
          %1507 = vmatprep.subr.mxu0 0.0
          %1508 = vmatpush1.msra.mxu0 %v1204
          %1509 = vmatprep.subr.mxu0 0.0
          %1510 = vmatpush1.msra.mxu0 %v1205
          %1511 = vmatprep.subr.mxu0 0.0
          %1512 = vmatpush1.msra.mxu0 %v1206
          %1513 = vmatprep.subr.mxu0 0.0
          %1514 = vmatpush1.msra.mxu0 %v1207
          %1515 = vmatprep.subr.mxu0 0.0
          %1516 = vmatpush1.msra.mxu0 %v1208
          %1517 = vmatprep.subr.mxu0 0.0
          %1518 = vmatpush1.msra.mxu0 %v1209
          %1519 = vmatprep.subr.mxu0 0.0
          %1520 = vmatpush1.msra.mxu0 %v1210
          %1521 = vmatprep.subr.mxu0 0.0
          %1522 = vmatpush1.msra.mxu0 %v1211
          %1523 = vmatprep.subr.mxu0 0.0
          %1524 = vmatpush1.msra.mxu0 %v1212
          %1525 = vmatprep.subr.mxu0 0.0
          %1526 = vmatpush1.msra.mxu0 %v1213
          %1527 = vmatprep.subr.mxu0 0.0
          %1528 = vmatpush1.msra.mxu0 %v1214
          %1529 = vmatprep.subr.mxu0 0.0
          %1530 = vmatpush1.msra.mxu0 %v1215
          %1531 = vmatprep.subr.mxu0 0.0
          %1532 = vmatpush1.msra.mxu0 %v1216
          %1533 = vmatprep.subr.mxu0 0.0
          %1534 = vmatpush1.msra.mxu0 %v1217
          %1535 = vmatprep.subr.mxu0 0.0
          %1536 = vmatpush1.msra.mxu0 %v1218
          %1537 = vmatprep.subr.mxu0 0.0
          %1538 = vmatpush1.msra.mxu0 %v1219
          %1539 = vmatprep.subr.mxu0 0.0
          %1540 = vmatpush1.msra.mxu0 %v1220
          %1541 = vmatprep.subr.mxu0 0.0
          %1542 = vmatpush1.msra.mxu0 %v1221
          %1543 = vmatprep.subr.mxu0 0.0
          %1544 = vmatpush1.msra.mxu0 0.0
          %1545 = vmatprep.subr.mxu0 0.0
          %1546 = vmatpush1.msra.mxu0 0.0
          %1547 = vmatprep.subr.mxu0 0.0
          %1548 = vmatpush1.msra.mxu0 0.0
          %1549 = vmatprep.mubr.f32.mxu0 %v1273
          %1550 = vmatmul.mubr.f32.gmra.mrb[0].mxu0 %v1262
          %v1551 = vpop.f32.mrb[0].mxu0
          %v1552 = vadd.f32 %v1482, %v1551
          %v1553 = vpop.f32.mrb[0].mxu0
          %1554 = vdwg.mxu0
          %vm1555 = vcmask 254976
          %1556 = vst.msk [vmem:[#allocation4] sm:$0x3] %vm1555, %v1552
        $region87: #{rnn_decoder_forward.1} parent=78 // pred_fallthru
          _
        %v1557 = vld [vmem:[#allocation2] sm:$0xff]
        %v1558 = vld [vmem:[#allocation2 + $0x8] sm:$0xff]
        %v1559 = vpack.c.bf16 %v1557, %v1557
        %v1560 = vpack.c.bf16 %v1558, %v1558
        %v1561 = vld [vmem:[%s483] sm:$0xff]
        %v1562 = vld [vmem:[%s483 + $0x8] sm:$0xff]
        %v1563 = vld [vmem:[%s483 + $0x10] sm:$0xff]
        %v1564 = vld [vmem:[%s483 + $0x18] sm:$0xff]
        %v1565 = vld [vmem:[%s483 + $0x20] sm:$0xff]
        %v1566 = vld [vmem:[%s483 + $0x28] sm:$0xff]
        %v1567 = vld [vmem:[%s483 + $0x30] sm:$0xff]
        %v1568 = vld [vmem:[%s483 + $0x38] sm:$0xff]
        %s1569 = scalar_lea.vmem %s483, 64 [#allocation3]
        %v1570 = vld [vmem:[%s1569] sm:$0xff]
        %v1571 = vld [vmem:[%s1569 + $0x8] sm:$0xff]
        %v1572 = vld [vmem:[%s1569 + $0x10] sm:$0xff]
        %v1573 = vld [vmem:[%s1569 + $0x18] sm:$0xff]
        %v1574 = vld [vmem:[%s1569 + $0x20] sm:$0xff]
        %v1575 = vld [vmem:[%s1569 + $0x28] sm:$0xff]
        %v1576 = vld [vmem:[%s1569 + $0x30] sm:$0xff]
        %v1577 = vld [vmem:[%s1569 + $0x38] sm:$0xff]
        %v1580 = vunpack.c.l.b16 %v1559
        %v1581 = vunpack.c.l.b16 %v1560
        %v1582 = vrot.slane %v1580, 1
        %vm1583 = vcmask 1041409
        %v1584 = vsel %vm1583, %v1581, %v1582
        %v1585 = vpack.c.b16 %v1584, %v1584
        %v1594 = vunpack.c.l.b16 %v1570
        %v1595 = vunpack.c.h.b16 %v1570
        %v1596 = vunpack.c.l.b16 %v1571
        %v1597 = vunpack.c.h.b16 %v1571
        %v1598 = vunpack.c.l.b16 %v1572
        %v1599 = vunpack.c.h.b16 %v1572
        %v1600 = vunpack.c.l.b16 %v1573
        %v1601 = vunpack.c.h.b16 %v1573
        %v1602 = vunpack.c.l.b16 %v1574
        %v1603 = vunpack.c.h.b16 %v1574
        %v1604 = vunpack.c.l.b16 %v1575
        %v1605 = vunpack.c.h.b16 %v1575
        %v1606 = vunpack.c.l.b16 %v1576
        %v1607 = vunpack.c.h.b16 %v1576
        %v1608 = vunpack.c.l.b16 %v1577
        %v1609 = vunpack.c.h.b16 %v1577
        %v1610 = vpack.c.b16 %v1598, %v1594
        %v1611 = vpack.c.b16 %v1599, %v1595
        %v1612 = vpack.c.b16 %v1600, %v1596
        %v1613 = vpack.c.b16 %v1601, %v1597
        %v1614 = vpack.c.b16 %v1606, %v1602
        %v1615 = vpack.c.b16 %v1607, %v1603
        %v1616 = vpack.c.b16 %v1608, %v1604
        %v1617 = vpack.c.b16 %v1609, %v1605
        %vm1626 = vcmask 261120
        %v1628 = vsel %vm1626, %v1585, 0
        %1630 = vmatprep.subr.bf16.mxu0 %v1611
        %1631 = vmatpush1.bf16.msra.mxu0 %v1610
        %1632 = vmatprep.subr.bf16.mxu0 %v1615
        %1633 = vmatpush1.bf16.msra.mxu0 %v1614
        %1634 = vmatprep.subr.bf16.mxu0 0
        %1635 = vmatpush1.bf16.msra.mxu0 0
        %1636 = vmatprep.subr.bf16.mxu0 0
        %1637 = vmatpush1.bf16.msra.mxu0 0
        %1638 = vmatprep.subr.bf16.mxu0 0
        %1639 = vmatpush1.bf16.msra.mxu0 0
        %1640 = vmatprep.subr.bf16.mxu0 0
        %1641 = vmatpush1.bf16.msra.mxu0 0
        %1642 = vmatprep.subr.bf16.mxu0 0
        %1643 = vmatpush1.bf16.msra.mxu0 0
        %1644 = vmatprep.subr.bf16.mxu0 0
        %1645 = vmatpush1.bf16.msra.mxu0 0
        %1646 = vmatprep.subr.bf16.mxu0 0
        %1647 = vmatpush1.bf16.msra.mxu0 0
        %1648 = vmatprep.subr.bf16.mxu0 0
        %1649 = vmatpush1.bf16.msra.mxu0 0
        %1650 = vmatprep.subr.bf16.mxu0 0
        %1651 = vmatpush1.bf16.msra.mxu0 0
        %1652 = vmatprep.subr.bf16.mxu0 0
        %1653 = vmatpush1.bf16.msra.mxu0 0
        %1654 = vmatprep.subr.bf16.mxu0 0
        %1655 = vmatpush1.bf16.msra.mxu0 0
        %1656 = vmatprep.subr.bf16.mxu0 0
        %1657 = vmatpush1.bf16.msra.mxu0 0
        %1658 = vmatprep.subr.bf16.mxu0 0
        %1659 = vmatpush1.bf16.msra.mxu0 0
        %1660 = vmatprep.subr.bf16.mxu0 0
        %1661 = vmatpush1.bf16.msra.mxu0 0
        %1662 = vmatprep.mubr.bf16.mxu0 0
        %1663 = vmatmul.mubr.bf16.gmra.mrb[0].mxu0 %v1628
        %v1664 = vpop.f32.mrb[0].mxu0
        %v1665 = vadd.f32 0.0, %v1664
        %v1666 = vpop.f32.mrb[0].mxu0
        %v1667 = vadd.f32 0.0, %v1666
        %v1668 = vpop.f32.mrb[0].mxu0
        %v1669 = vpop.f32.mrb[0].mxu0
        %1670 = vdwg.mxu0
        %1671 = vmatprep.subr.bf16.mxu0 %v1613
        %1672 = vmatpush1.bf16.msra.mxu0 %v1612
        %1673 = vmatprep.subr.bf16.mxu0 %v1617
        %1674 = vmatpush1.bf16.msra.mxu0 %v1616
        %1675 = vmatprep.subr.bf16.mxu0 0
        %1676 = vmatpush1.bf16.msra.mxu0 0
        %1677 = vmatprep.subr.bf16.mxu0 0
        %1678 = vmatpush1.bf16.msra.mxu0 0
        %1679 = vmatprep.subr.bf16.mxu0 0
        %1680 = vmatpush1.bf16.msra.mxu0 0
        %1681 = vmatprep.subr.bf16.mxu0 0
        %1682 = vmatpush1.bf16.msra.mxu0 0
        %1683 = vmatprep.subr.bf16.mxu0 0
        %1684 = vmatpush1.bf16.msra.mxu0 0
        %1685 = vmatprep.subr.bf16.mxu0 0
        %1686 = vmatpush1.bf16.msra.mxu0 0
        %1687 = vmatprep.subr.bf16.mxu0 0
        %1688 = vmatpush1.bf16.msra.mxu0 0
        %1689 = vmatprep.subr.bf16.mxu0 0
        %1690 = vmatpush1.bf16.msra.mxu0 0
        %1691 = vmatprep.subr.bf16.mxu0 0
        %1692 = vmatpush1.bf16.msra.mxu0 0
        %1693 = vmatprep.subr.bf16.mxu0 0
        %1694 = vmatpush1.bf16.msra.mxu0 0
        %1695 = vmatprep.subr.bf16.mxu0 0
        %1696 = vmatpush1.bf16.msra.mxu0 0
        %1697 = vmatprep.subr.bf16.mxu0 0
        %1698 = vmatpush1.bf16.msra.mxu0 0
        %1699 = vmatprep.subr.bf16.mxu0 0
        %1700 = vmatpush1.bf16.msra.mxu0 0
        %1701 = vmatprep.subr.bf16.mxu0 0
        %1702 = vmatpush1.bf16.msra.mxu0 0
        %1703 = vmatprep.mubr.bf16.mxu0 0
        %1704 = vmatmul.mubr.bf16.gmra.mrb[0].mxu0 %v1628
        %v1705 = vpop.f32.mrb[0].mxu0
        %v1706 = vadd.f32 0.0, %v1705
        %v1707 = vpop.f32.mrb[0].mxu0
        %v1708 = vadd.f32 0.0, %v1707
        %v1709 = vpop.f32.mrb[0].mxu0
        %v1710 = vpop.f32.mrb[0].mxu0
        %1711 = vdwg.mxu0
        %v1712 = vrot.slane %v1581, 7
        %v1713 = vsel %vm1583, %v1712, %v1580
        %v1714 = vpack.c.b16 %v1713, %v1713
        %v1723 = vunpack.c.l.b16 %v1561
        %v1724 = vunpack.c.h.b16 %v1561
        %v1725 = vunpack.c.l.b16 %v1562
        %v1726 = vunpack.c.h.b16 %v1562
        %v1727 = vunpack.c.l.b16 %v1563
        %v1728 = vunpack.c.h.b16 %v1563
        %v1729 = vunpack.c.l.b16 %v1564
        %v1730 = vunpack.c.h.b16 %v1564
        %v1731 = vunpack.c.l.b16 %v1565
        %v1732 = vunpack.c.h.b16 %v1565
        %v1733 = vunpack.c.l.b16 %v1566
        %v1734 = vunpack.c.h.b16 %v1566
        %v1735 = vunpack.c.l.b16 %v1567
        %v1736 = vunpack.c.h.b16 %v1567
        %v1737 = vunpack.c.l.b16 %v1568
        %v1738 = vunpack.c.h.b16 %v1568
        %v1739 = vpack.c.b16 %v1727, %v1723
        %v1740 = vpack.c.b16 %v1728, %v1724
        %v1741 = vpack.c.b16 %v1729, %v1725
        %v1742 = vpack.c.b16 %v1730, %v1726
        %v1743 = vpack.c.b16 %v1735, %v1731
        %v1744 = vpack.c.b16 %v1736, %v1732
        %v1745 = vpack.c.b16 %v1737, %v1733
        %v1746 = vpack.c.b16 %v1738, %v1734
        %v1756 = vsel %vm1626, %v1714, 0
        %1758 = vmatprep.subr.bf16.mxu0 %v1740
        %1759 = vmatpush1.bf16.msra.mxu0 %v1739
        %1760 = vmatprep.subr.bf16.mxu0 %v1744
        %1761 = vmatpush1.bf16.msra.mxu0 %v1743
        %1762 = vmatprep.subr.bf16.mxu0 0
        %1763 = vmatpush1.bf16.msra.mxu0 0
        %1764 = vmatprep.subr.bf16.mxu0 0
        %1765 = vmatpush1.bf16.msra.mxu0 0
        %1766 = vmatprep.subr.bf16.mxu0 0
        %1767 = vmatpush1.bf16.msra.mxu0 0
        %1768 = vmatprep.subr.bf16.mxu0 0
        %1769 = vmatpush1.bf16.msra.mxu0 0
        %1770 = vmatprep.subr.bf16.mxu0 0
        %1771 = vmatpush1.bf16.msra.mxu0 0
        %1772 = vmatprep.subr.bf16.mxu0 0
        %1773 = vmatpush1.bf16.msra.mxu0 0
        %1774 = vmatprep.subr.bf16.mxu0 0
        %1775 = vmatpush1.bf16.msra.mxu0 0
        %1776 = vmatprep.subr.bf16.mxu0 0
        %1777 = vmatpush1.bf16.msra.mxu0 0
        %1778 = vmatprep.subr.bf16.mxu0 0
        %1779 = vmatpush1.bf16.msra.mxu0 0
        %1780 = vmatprep.subr.bf16.mxu0 0
        %1781 = vmatpush1.bf16.msra.mxu0 0
        %1782 = vmatprep.subr.bf16.mxu0 0
        %1783 = vmatpush1.bf16.msra.mxu0 0
        %1784 = vmatprep.subr.bf16.mxu0 0
        %1785 = vmatpush1.bf16.msra.mxu0 0
        %1786 = vmatprep.subr.bf16.mxu0 0
        %1787 = vmatpush1.bf16.msra.mxu0 0
        %1788 = vmatprep.subr.bf16.mxu0 0
        %1789 = vmatpush1.bf16.msra.mxu0 0
        %1790 = vmatprep.mubr.bf16.mxu0 0
        %1791 = vmatmul.mubr.bf16.gmra.mrb[0].mxu0 %v1756
        %v1792 = vpop.f32.mrb[0].mxu0
        %v1793 = vadd.f32 %v1665, %v1792
        %v1794 = vpop.f32.mrb[0].mxu0
        %v1795 = vadd.f32 %v1667, %v1794
        %v1796 = vpop.f32.mrb[0].mxu0
        %v1797 = vpop.f32.mrb[0].mxu0
        %1798 = vdwg.mxu0
        %1799 = vmatprep.subr.bf16.mxu0 %v1742
        %1800 = vmatpush1.bf16.msra.mxu0 %v1741
        %1801 = vmatprep.subr.bf16.mxu0 %v1746
        %1802 = vmatpush1.bf16.msra.mxu0 %v1745
        %1803 = vmatprep.subr.bf16.mxu0 0
        %1804 = vmatpush1.bf16.msra.mxu0 0
        %1805 = vmatprep.subr.bf16.mxu0 0
        %1806 = vmatpush1.bf16.msra.mxu0 0
        %1807 = vmatprep.subr.bf16.mxu0 0
        %1808 = vmatpush1.bf16.msra.mxu0 0
        %1809 = vmatprep.subr.bf16.mxu0 0
        %1810 = vmatpush1.bf16.msra.mxu0 0
        %1811 = vmatprep.subr.bf16.mxu0 0
        %1812 = vmatpush1.bf16.msra.mxu0 0
        %1813 = vmatprep.subr.bf16.mxu0 0
        %1814 = vmatpush1.bf16.msra.mxu0 0
        %1815 = vmatprep.subr.bf16.mxu0 0
        %1816 = vmatpush1.bf16.msra.mxu0 0
        %1817 = vmatprep.subr.bf16.mxu0 0
        %1818 = vmatpush1.bf16.msra.mxu0 0
        %1819 = vmatprep.subr.bf16.mxu0 0
        %1820 = vmatpush1.bf16.msra.mxu0 0
        %1821 = vmatprep.subr.bf16.mxu0 0
        %1822 = vmatpush1.bf16.msra.mxu0 0
        %1823 = vmatprep.subr.bf16.mxu0 0
        %1824 = vmatpush1.bf16.msra.mxu0 0
        %1825 = vmatprep.subr.bf16.mxu0 0
        %1826 = vmatpush1.bf16.msra.mxu0 0
        %1827 = vmatprep.subr.bf16.mxu0 0
        %1828 = vmatpush1.bf16.msra.mxu0 0
        %1829 = vmatprep.subr.bf16.mxu0 0
        %1830 = vmatpush1.bf16.msra.mxu0 0
        %1831 = vmatprep.mubr.bf16.mxu0 0
        %1832 = vmatmul.mubr.bf16.gmra.mrb[0].mxu0 %v1756
        %v1833 = vpop.f32.mrb[0].mxu0
        %v1834 = vadd.f32 %v1706, %v1833
        %v1835 = vpop.f32.mrb[0].mxu0
        %v1836 = vadd.f32 %v1708, %v1835
        %v1837 = vpop.f32.mrb[0].mxu0
        %v1838 = vpop.f32.mrb[0].mxu0
        %1839 = vdwg.mxu0
        %s1840 = scalar_lea.vmem %s483, 128 [#allocation3]
        %v1841 = vld [vmem:[%s1840] sm:$0xff]
        %v1842 = vld [vmem:[%s1840 + $0x8] sm:$0xff]
        %v1843 = vld [vmem:[%s1840 + $0x10] sm:$0xff]
        %v1844 = vld [vmem:[%s1840 + $0x18] sm:$0xff]
        %v1845 = vld [vmem:[%s1840 + $0x20] sm:$0xff]
        %v1846 = vld [vmem:[%s1840 + $0x28] sm:$0xff]
        %v1847 = vld [vmem:[%s1840 + $0x30] sm:$0xff]
        %v1848 = vld [vmem:[%s1840 + $0x38] sm:$0xff]
        %v1849 = vrot.slane %v1580, 2
        %v1850 = vrot.slane %v1581, 1
        %v1851 = vsel %vm1583, %v1850, %v1849
        %v1852 = vpack.c.b16 %v1851, %v1851
        %v1861 = vunpack.c.l.b16 %v1841
        %v1862 = vunpack.c.h.b16 %v1841
        %v1863 = vunpack.c.l.b16 %v1842
        %v1864 = vunpack.c.h.b16 %v1842
        %v1865 = vunpack.c.l.b16 %v1843
        %v1866 = vunpack.c.h.b16 %v1843
        %v1867 = vunpack.c.l.b16 %v1844
        %v1868 = vunpack.c.h.b16 %v1844
        %v1869 = vunpack.c.l.b16 %v1845
        %v1870 = vunpack.c.h.b16 %v1845
        %v1871 = vunpack.c.l.b16 %v1846
        %v1872 = vunpack.c.h.b16 %v1846
        %v1873 = vunpack.c.l.b16 %v1847
        %v1874 = vunpack.c.h.b16 %v1847
        %v1875 = vunpack.c.l.b16 %v1848
        %v1876 = vunpack.c.h.b16 %v1848
        %v1877 = vpack.c.b16 %v1865, %v1861
        %v1878 = vpack.c.b16 %v1866, %v1862
        %v1879 = vpack.c.b16 %v1867, %v1863
        %v1880 = vpack.c.b16 %v1868, %v1864
        %v1881 = vpack.c.b16 %v1873, %v1869
        %v1882 = vpack.c.b16 %v1874, %v1870
        %v1883 = vpack.c.b16 %v1875, %v1871
        %v1884 = vpack.c.b16 %v1876, %v1872
        %v1894 = vsel %vm1626, %v1852, 0
        %1896 = vmatprep.subr.bf16.mxu0 %v1878
        %1897 = vmatpush1.bf16.msra.mxu0 %v1877
        %1898 = vmatprep.subr.bf16.mxu0 %v1882
        %1899 = vmatpush1.bf16.msra.mxu0 %v1881
        %1900 = vmatprep.subr.bf16.mxu0 0
        %1901 = vmatpush1.bf16.msra.mxu0 0
        %1902 = vmatprep.subr.bf16.mxu0 0
        %1903 = vmatpush1.bf16.msra.mxu0 0
        %1904 = vmatprep.subr.bf16.mxu0 0
        %1905 = vmatpush1.bf16.msra.mxu0 0
        %1906 = vmatprep.subr.bf16.mxu0 0
        %1907 = vmatpush1.bf16.msra.mxu0 0
        %1908 = vmatprep.subr.bf16.mxu0 0
        %1909 = vmatpush1.bf16.msra.mxu0 0
        %1910 = vmatprep.subr.bf16.mxu0 0
        %1911 = vmatpush1.bf16.msra.mxu0 0
        %1912 = vmatprep.subr.bf16.mxu0 0
        %1913 = vmatpush1.bf16.msra.mxu0 0
        %1914 = vmatprep.subr.bf16.mxu0 0
        %1915 = vmatpush1.bf16.msra.mxu0 0
        %1916 = vmatprep.subr.bf16.mxu0 0
        %1917 = vmatpush1.bf16.msra.mxu0 0
        %1918 = vmatprep.subr.bf16.mxu0 0
        %1919 = vmatpush1.bf16.msra.mxu0 0
        %1920 = vmatprep.subr.bf16.mxu0 0
        %1921 = vmatpush1.bf16.msra.mxu0 0
        %1922 = vmatprep.subr.bf16.mxu0 0
        %1923 = vmatpush1.bf16.msra.mxu0 0
        %1924 = vmatprep.subr.bf16.mxu0 0
        %1925 = vmatpush1.bf16.msra.mxu0 0
        %1926 = vmatprep.subr.bf16.mxu0 0
        %1927 = vmatpush1.bf16.msra.mxu0 0
        %1928 = vmatprep.mubr.bf16.mxu0 0
        %1929 = vmatmul.mubr.bf16.gmra.mrb[0].mxu0 %v1894
        %v1930 = vpop.f32.mrb[0].mxu0
        %v1931 = vadd.f32 0.0, %v1930
        %v1932 = vpop.f32.mrb[0].mxu0
        %v1933 = vadd.f32 0.0, %v1932
        %v1934 = vpop.f32.mrb[0].mxu0
        %v1935 = vpop.f32.mrb[0].mxu0
        %1936 = vdwg.mxu0
        %1937 = vmatprep.subr.bf16.mxu0 %v1880
        %1938 = vmatpush1.bf16.msra.mxu0 %v1879
        %1939 = vmatprep.subr.bf16.mxu0 %v1884
        %1940 = vmatpush1.bf16.msra.mxu0 %v1883
        %1941 = vmatprep.subr.bf16.mxu0 0
        %1942 = vmatpush1.bf16.msra.mxu0 0
        %1943 = vmatprep.subr.bf16.mxu0 0
        %1944 = vmatpush1.bf16.msra.mxu0 0
        %1945 = vmatprep.subr.bf16.mxu0 0
        %1946 = vmatpush1.bf16.msra.mxu0 0
        %1947 = vmatprep.subr.bf16.mxu0 0
        %1948 = vmatpush1.bf16.msra.mxu0 0
        %1949 = vmatprep.subr.bf16.mxu0 0
        %1950 = vmatpush1.bf16.msra.mxu0 0
        %1951 = vmatprep.subr.bf16.mxu0 0
        %1952 = vmatpush1.bf16.msra.mxu0 0
        %1953 = vmatprep.subr.bf16.mxu0 0
        %1954 = vmatpush1.bf16.msra.mxu0 0
        %1955 = vmatprep.subr.bf16.mxu0 0
        %1956 = vmatpush1.bf16.msra.mxu0 0
        %1957 = vmatprep.subr.bf16.mxu0 0
        %1958 = vmatpush1.bf16.msra.mxu0 0
        %1959 = vmatprep.subr.bf16.mxu0 0
        %1960 = vmatpush1.bf16.msra.mxu0 0
        %1961 = vmatprep.subr.bf16.mxu0 0
        %1962 = vmatpush1.bf16.msra.mxu0 0
        %1963 = vmatprep.subr.bf16.mxu0 0
        %1964 = vmatpush1.bf16.msra.mxu0 0
        %1965 = vmatprep.subr.bf16.mxu0 0
        %1966 = vmatpush1.bf16.msra.mxu0 0
        %1967 = vmatprep.subr.bf16.mxu0 0
        %1968 = vmatpush1.bf16.msra.mxu0 0
        %1969 = vmatprep.mubr.bf16.mxu0 0
        %1970 = vmatmul.mubr.bf16.gmra.mrb[0].mxu0 %v1894
        %v1971 = vpop.f32.mrb[0].mxu0
        %v1972 = vadd.f32 0.0, %v1971
        %v1973 = vpop.f32.mrb[0].mxu0
        %v1974 = vadd.f32 0.0, %v1973
        %v1975 = vpop.f32.mrb[0].mxu0
        %v1976 = vpop.f32.mrb[0].mxu0
        %1977 = vdwg.mxu0
        %v1978 = vadd.f32 %v1793, %v1931
        %v1979 = vadd.f32 %v1795, %v1933
        %v1980 = vadd.f32 %v1834, %v1972
        %v1981 = vadd.f32 %v1836, %v1974
        %s1982 = scalar_lea.vmem %s483, 192 [#allocation3]
        %v1983 = vld [vmem:[%s1982] sm:$0xff]
        %v1984 = vld [vmem:[%s1982 + $0x8] sm:$0xff]
        %v1985 = vld [vmem:[%s1982 + $0x10] sm:$0xff]
        %v1986 = vld [vmem:[%s1982 + $0x18] sm:$0xff]
        %v1987 = vld [vmem:[%s1982 + $0x20] sm:$0xff]
        %v1988 = vld [vmem:[%s1982 + $0x28] sm:$0xff]
        %v1989 = vld [vmem:[%s1982 + $0x30] sm:$0xff]
        %v1990 = vld [vmem:[%s1982 + $0x38] sm:$0xff]
        %v1991 = vrot.slane %v1580, 3
        %v1992 = vrot.slane %v1581, 2
        %v1993 = vsel %vm1583, %v1992, %v1991
        %v1994 = vpack.c.b16 %v1993, %v1993
        %v2003 = vunpack.c.l.b16 %v1983
        %v2004 = vunpack.c.h.b16 %v1983
        %v2005 = vunpack.c.l.b16 %v1984
        %v2006 = vunpack.c.h.b16 %v1984
        %v2007 = vunpack.c.l.b16 %v1985
        %v2008 = vunpack.c.h.b16 %v1985
        %v2009 = vunpack.c.l.b16 %v1986
        %v2010 = vunpack.c.h.b16 %v1986
        %v2011 = vunpack.c.l.b16 %v1987
        %v2012 = vunpack.c.h.b16 %v1987
        %v2013 = vunpack.c.l.b16 %v1988
        %v2014 = vunpack.c.h.b16 %v1988
        %v2015 = vunpack.c.l.b16 %v1989
        %v2016 = vunpack.c.h.b16 %v1989
        %v2017 = vunpack.c.l.b16 %v1990
        %v2018 = vunpack.c.h.b16 %v1990
        %v2019 = vpack.c.b16 %v2007, %v2003
        %v2020 = vpack.c.b16 %v2008, %v2004
        %v2021 = vpack.c.b16 %v2009, %v2005
        %v2022 = vpack.c.b16 %v2010, %v2006
        %v2023 = vpack.c.b16 %v2015, %v2011
        %v2024 = vpack.c.b16 %v2016, %v2012
        %v2025 = vpack.c.b16 %v2017, %v2013
        %v2026 = vpack.c.b16 %v2018, %v2014
        %v2036 = vsel %vm1626, %v1994, 0
        %2038 = vmatprep.subr.bf16.mxu0 %v2020
        %2039 = vmatpush1.bf16.msra.mxu0 %v2019
        %2040 = vmatprep.subr.bf16.mxu0 %v2024
        %2041 = vmatpush1.bf16.msra.mxu0 %v2023
        %2042 = vmatprep.subr.bf16.mxu0 0
        %2043 = vmatpush1.bf16.msra.mxu0 0
        %2044 = vmatprep.subr.bf16.mxu0 0
        %2045 = vmatpush1.bf16.msra.mxu0 0
        %2046 = vmatprep.subr.bf16.mxu0 0
        %2047 = vmatpush1.bf16.msra.mxu0 0
        %2048 = vmatprep.subr.bf16.mxu0 0
        %2049 = vmatpush1.bf16.msra.mxu0 0
        %2050 = vmatprep.subr.bf16.mxu0 0
        %2051 = vmatpush1.bf16.msra.mxu0 0
        %2052 = vmatprep.subr.bf16.mxu0 0
        %2053 = vmatpush1.bf16.msra.mxu0 0
        %2054 = vmatprep.subr.bf16.mxu0 0
        %2055 = vmatpush1.bf16.msra.mxu0 0
        %2056 = vmatprep.subr.bf16.mxu0 0
        %2057 = vmatpush1.bf16.msra.mxu0 0
        %2058 = vmatprep.subr.bf16.mxu0 0
        %2059 = vmatpush1.bf16.msra.mxu0 0
        %2060 = vmatprep.subr.bf16.mxu0 0
        %2061 = vmatpush1.bf16.msra.mxu0 0
        %2062 = vmatprep.subr.bf16.mxu0 0
        %2063 = vmatpush1.bf16.msra.mxu0 0
        %2064 = vmatprep.subr.bf16.mxu0 0
        %2065 = vmatpush1.bf16.msra.mxu0 0
        %2066 = vmatprep.subr.bf16.mxu0 0
        %2067 = vmatpush1.bf16.msra.mxu0 0
        %2068 = vmatprep.subr.bf16.mxu0 0
        %2069 = vmatpush1.bf16.msra.mxu0 0
        %2070 = vmatprep.mubr.bf16.mxu0 0
        %2071 = vmatmul.mubr.bf16.gmra.mrb[0].mxu0 %v2036
        %v2072 = vpop.f32.mrb[0].mxu0
        %v2073 = vadd.f32 0.0, %v2072
        %v2074 = vpop.f32.mrb[0].mxu0
        %v2075 = vadd.f32 0.0, %v2074
        %v2076 = vpop.f32.mrb[0].mxu0
        %v2077 = vpop.f32.mrb[0].mxu0
        %2078 = vdwg.mxu0
        %2079 = vmatprep.subr.bf16.mxu0 %v2022
        %2080 = vmatpush1.bf16.msra.mxu0 %v2021
        %2081 = vmatprep.subr.bf16.mxu0 %v2026
        %2082 = vmatpush1.bf16.msra.mxu0 %v2025
        %2083 = vmatprep.subr.bf16.mxu0 0
        %2084 = vmatpush1.bf16.msra.mxu0 0
        %2085 = vmatprep.subr.bf16.mxu0 0
        %2086 = vmatpush1.bf16.msra.mxu0 0
        %2087 = vmatprep.subr.bf16.mxu0 0
        %2088 = vmatpush1.bf16.msra.mxu0 0
        %2089 = vmatprep.subr.bf16.mxu0 0
        %2090 = vmatpush1.bf16.msra.mxu0 0
        %2091 = vmatprep.subr.bf16.mxu0 0
        %2092 = vmatpush1.bf16.msra.mxu0 0
        %2093 = vmatprep.subr.bf16.mxu0 0
        %2094 = vmatpush1.bf16.msra.mxu0 0
        %2095 = vmatprep.subr.bf16.mxu0 0
        %2096 = vmatpush1.bf16.msra.mxu0 0
        %2097 = vmatprep.subr.bf16.mxu0 0
        %2098 = vmatpush1.bf16.msra.mxu0 0
        %2099 = vmatprep.subr.bf16.mxu0 0
        %2100 = vmatpush1.bf16.msra.mxu0 0
        %2101 = vmatprep.subr.bf16.mxu0 0
        %2102 = vmatpush1.bf16.msra.mxu0 0
        %2103 = vmatprep.subr.bf16.mxu0 0
        %2104 = vmatpush1.bf16.msra.mxu0 0
        %2105 = vmatprep.subr.bf16.mxu0 0
        %2106 = vmatpush1.bf16.msra.mxu0 0
        %2107 = vmatprep.subr.bf16.mxu0 0
        %2108 = vmatpush1.bf16.msra.mxu0 0
        %2109 = vmatprep.subr.bf16.mxu0 0
        %2110 = vmatpush1.bf16.msra.mxu0 0
        %2111 = vmatprep.mubr.bf16.mxu0 0
        %2112 = vmatmul.mubr.bf16.gmra.mrb[0].mxu0 %v2036
        %v2113 = vpop.f32.mrb[0].mxu0
        %v2114 = vadd.f32 0.0, %v2113
        %v2115 = vpop.f32.mrb[0].mxu0
        %v2116 = vadd.f32 0.0, %v2115
        %v2117 = vpop.f32.mrb[0].mxu0
        %v2118 = vpop.f32.mrb[0].mxu0
        %2119 = vdwg.mxu0
        %v2120 = vadd.f32 %v1978, %v2073
        %v2121 = vadd.f32 %v1979, %v2075
        %v2122 = vadd.f32 %v1980, %v2114
        %v2123 = vadd.f32 %v1981, %v2116
        %s2124 = scalar_lea.vmem %s483, 256 [#allocation3]
        %v2125 = vld [vmem:[%s2124] sm:$0xff]
        %v2126 = vld [vmem:[%s2124 + $0x8] sm:$0xff]
        %v2127 = vld [vmem:[%s2124 + $0x10] sm:$0xff]
        %v2128 = vld [vmem:[%s2124 + $0x18] sm:$0xff]
        %v2129 = vld [vmem:[%s2124 + $0x20] sm:$0xff]
        %v2130 = vld [vmem:[%s2124 + $0x28] sm:$0xff]
        %v2131 = vld [vmem:[%s2124 + $0x30] sm:$0xff]
        %v2132 = vld [vmem:[%s2124 + $0x38] sm:$0xff]
        %v2133 = vrot.slane %v1580, 4
        %v2134 = vrot.slane %v1581, 3
        %v2135 = vsel %vm1583, %v2134, %v2133
        %v2136 = vpack.c.b16 %v2135, %v2135
        %v2145 = vunpack.c.l.b16 %v2125
        %v2146 = vunpack.c.h.b16 %v2125
        %v2147 = vunpack.c.l.b16 %v2126
        %v2148 = vunpack.c.h.b16 %v2126
        %v2149 = vunpack.c.l.b16 %v2127
        %v2150 = vunpack.c.h.b16 %v2127
        %v2151 = vunpack.c.l.b16 %v2128
        %v2152 = vunpack.c.h.b16 %v2128
        %v2153 = vunpack.c.l.b16 %v2129
        %v2154 = vunpack.c.h.b16 %v2129
        %v2155 = vunpack.c.l.b16 %v2130
        %v2156 = vunpack.c.h.b16 %v2130
        %v2157 = vunpack.c.l.b16 %v2131
        %v2158 = vunpack.c.h.b16 %v2131
        %v2159 = vunpack.c.l.b16 %v2132
        %v2160 = vunpack.c.h.b16 %v2132
        %v2161 = vpack.c.b16 %v2149, %v2145
        %v2162 = vpack.c.b16 %v2150, %v2146
        %v2163 = vpack.c.b16 %v2151, %v2147
        %v2164 = vpack.c.b16 %v2152, %v2148
        %v2165 = vpack.c.b16 %v2157, %v2153
        %v2166 = vpack.c.b16 %v2158, %v2154
        %v2167 = vpack.c.b16 %v2159, %v2155
        %v2168 = vpack.c.b16 %v2160, %v2156
        %v2178 = vsel %vm1626, %v2136, 0
        %2180 = vmatprep.subr.bf16.mxu0 %v2162
        %2181 = vmatpush1.bf16.msra.mxu0 %v2161
        %2182 = vmatprep.subr.bf16.mxu0 %v2166
        %2183 = vmatpush1.bf16.msra.mxu0 %v2165
        %2184 = vmatprep.subr.bf16.mxu0 0
        %2185 = vmatpush1.bf16.msra.mxu0 0
        %2186 = vmatprep.subr.bf16.mxu0 0
        %2187 = vmatpush1.bf16.msra.mxu0 0
        %2188 = vmatprep.subr.bf16.mxu0 0
        %2189 = vmatpush1.bf16.msra.mxu0 0
        %2190 = vmatprep.subr.bf16.mxu0 0
        %2191 = vmatpush1.bf16.msra.mxu0 0
        %2192 = vmatprep.subr.bf16.mxu0 0
        %2193 = vmatpush1.bf16.msra.mxu0 0
        %2194 = vmatprep.subr.bf16.mxu0 0
        %2195 = vmatpush1.bf16.msra.mxu0 0
        %2196 = vmatprep.subr.bf16.mxu0 0
        %2197 = vmatpush1.bf16.msra.mxu0 0
        %2198 = vmatprep.subr.bf16.mxu0 0
        %2199 = vmatpush1.bf16.msra.mxu0 0
        %2200 = vmatprep.subr.bf16.mxu0 0
        %2201 = vmatpush1.bf16.msra.mxu0 0
        %2202 = vmatprep.subr.bf16.mxu0 0
        %2203 = vmatpush1.bf16.msra.mxu0 0
        %2204 = vmatprep.subr.bf16.mxu0 0
        %2205 = vmatpush1.bf16.msra.mxu0 0
        %2206 = vmatprep.subr.bf16.mxu0 0
        %2207 = vmatpush1.bf16.msra.mxu0 0
        %2208 = vmatprep.subr.bf16.mxu0 0
        %2209 = vmatpush1.bf16.msra.mxu0 0
        %2210 = vmatprep.subr.bf16.mxu0 0
        %2211 = vmatpush1.bf16.msra.mxu0 0
        %2212 = vmatprep.mubr.bf16.mxu0 0
        %2213 = vmatmul.mubr.bf16.gmra.mrb[0].mxu0 %v2178
        %v2214 = vpop.f32.mrb[0].mxu0
        %v2215 = vadd.f32 0.0, %v2214
        %v2216 = vpop.f32.mrb[0].mxu0
        %v2217 = vadd.f32 0.0, %v2216
        %v2218 = vpop.f32.mrb[0].mxu0
        %v2219 = vpop.f32.mrb[0].mxu0
        %2220 = vdwg.mxu0
        %2221 = vmatprep.subr.bf16.mxu0 %v2164
        %2222 = vmatpush1.bf16.msra.mxu0 %v2163
        %2223 = vmatprep.subr.bf16.mxu0 %v2168
        %2224 = vmatpush1.bf16.msra.mxu0 %v2167
        %2225 = vmatprep.subr.bf16.mxu0 0
        %2226 = vmatpush1.bf16.msra.mxu0 0
        %2227 = vmatprep.subr.bf16.mxu0 0
        %2228 = vmatpush1.bf16.msra.mxu0 0
        %2229 = vmatprep.subr.bf16.mxu0 0
        %2230 = vmatpush1.bf16.msra.mxu0 0
        %2231 = vmatprep.subr.bf16.mxu0 0
        %2232 = vmatpush1.bf16.msra.mxu0 0
        %2233 = vmatprep.subr.bf16.mxu0 0
        %2234 = vmatpush1.bf16.msra.mxu0 0
        %2235 = vmatprep.subr.bf16.mxu0 0
        %2236 = vmatpush1.bf16.msra.mxu0 0
        %2237 = vmatprep.subr.bf16.mxu0 0
        %2238 = vmatpush1.bf16.msra.mxu0 0
        %2239 = vmatprep.subr.bf16.mxu0 0
        %2240 = vmatpush1.bf16.msra.mxu0 0
        %2241 = vmatprep.subr.bf16.mxu0 0
        %2242 = vmatpush1.bf16.msra.mxu0 0
        %2243 = vmatprep.subr.bf16.mxu0 0
        %2244 = vmatpush1.bf16.msra.mxu0 0
        %2245 = vmatprep.subr.bf16.mxu0 0
        %2246 = vmatpush1.bf16.msra.mxu0 0
        %2247 = vmatprep.subr.bf16.mxu0 0
        %2248 = vmatpush1.bf16.msra.mxu0 0
        %2249 = vmatprep.subr.bf16.mxu0 0
        %2250 = vmatpush1.bf16.msra.mxu0 0
        %2251 = vmatprep.subr.bf16.mxu0 0
        %2252 = vmatpush1.bf16.msra.mxu0 0
        %2253 = vmatprep.mubr.bf16.mxu0 0
        %2254 = vmatmul.mubr.bf16.gmra.mrb[0].mxu0 %v2178
        %v2255 = vpop.f32.mrb[0].mxu0
        %v2256 = vadd.f32 0.0, %v2255
        %v2257 = vpop.f32.mrb[0].mxu0
        %v2258 = vadd.f32 0.0, %v2257
        %v2259 = vpop.f32.mrb[0].mxu0
        %v2260 = vpop.f32.mrb[0].mxu0
        %2261 = vdwg.mxu0
        %v2262 = vadd.f32 %v2120, %v2215
        %v2263 = vadd.f32 %v2121, %v2217
        %v2264 = vadd.f32 %v2122, %v2256
        %v2265 = vadd.f32 %v2123, %v2258
        %s2266 = scalar_lea.vmem %s483, 320 [#allocation3]
        %v2267 = vld [vmem:[%s2266] sm:$0xff]
        %v2268 = vld [vmem:[%s2266 + $0x8] sm:$0xff]
        %v2269 = vld [vmem:[%s2266 + $0x10] sm:$0xff]
        %v2270 = vld [vmem:[%s2266 + $0x18] sm:$0xff]
        %v2271 = vld [vmem:[%s2266 + $0x20] sm:$0xff]
        %v2272 = vld [vmem:[%s2266 + $0x28] sm:$0xff]
        %v2273 = vld [vmem:[%s2266 + $0x30] sm:$0xff]
        %v2274 = vld [vmem:[%s2266 + $0x38] sm:$0xff]
        %v2275 = vrot.slane %v1580, 5
        %v2276 = vrot.slane %v1581, 4
        %v2277 = vsel %vm1583, %v2276, %v2275
        %v2278 = vpack.c.b16 %v2277, %v2277
        %v2287 = vunpack.c.l.b16 %v2267
        %v2288 = vunpack.c.h.b16 %v2267
        %v2289 = vunpack.c.l.b16 %v2268
        %v2290 = vunpack.c.h.b16 %v2268
        %v2291 = vunpack.c.l.b16 %v2269
        %v2292 = vunpack.c.h.b16 %v2269
        %v2293 = vunpack.c.l.b16 %v2270
        %v2294 = vunpack.c.h.b16 %v2270
        %v2295 = vunpack.c.l.b16 %v2271
        %v2296 = vunpack.c.h.b16 %v2271
        %v2297 = vunpack.c.l.b16 %v2272
        %v2298 = vunpack.c.h.b16 %v2272
        %v2299 = vunpack.c.l.b16 %v2273
        %v2300 = vunpack.c.h.b16 %v2273
        %v2301 = vunpack.c.l.b16 %v2274
        %v2302 = vunpack.c.h.b16 %v2274
        %v2303 = vpack.c.b16 %v2291, %v2287
        %v2304 = vpack.c.b16 %v2292, %v2288
        %v2305 = vpack.c.b16 %v2293, %v2289
        %v2306 = vpack.c.b16 %v2294, %v2290
        %v2307 = vpack.c.b16 %v2299, %v2295
        %v2308 = vpack.c.b16 %v2300, %v2296
        %v2309 = vpack.c.b16 %v2301, %v2297
        %v2310 = vpack.c.b16 %v2302, %v2298
        %v2320 = vsel %vm1626, %v2278, 0
        %2322 = vmatprep.subr.bf16.mxu0 %v2304
        %2323 = vmatpush1.bf16.msra.mxu0 %v2303
        %2324 = vmatprep.subr.bf16.mxu0 %v2308
        %2325 = vmatpush1.bf16.msra.mxu0 %v2307
        %2326 = vmatprep.subr.bf16.mxu0 0
        %2327 = vmatpush1.bf16.msra.mxu0 0
        %2328 = vmatprep.subr.bf16.mxu0 0
        %2329 = vmatpush1.bf16.msra.mxu0 0
        %2330 = vmatprep.subr.bf16.mxu0 0
        %2331 = vmatpush1.bf16.msra.mxu0 0
        %2332 = vmatprep.subr.bf16.mxu0 0
        %2333 = vmatpush1.bf16.msra.mxu0 0
        %2334 = vmatprep.subr.bf16.mxu0 0
        %2335 = vmatpush1.bf16.msra.mxu0 0
        %2336 = vmatprep.subr.bf16.mxu0 0
        %2337 = vmatpush1.bf16.msra.mxu0 0
        %2338 = vmatprep.subr.bf16.mxu0 0
        %2339 = vmatpush1.bf16.msra.mxu0 0
        %2340 = vmatprep.subr.bf16.mxu0 0
        %2341 = vmatpush1.bf16.msra.mxu0 0
        %2342 = vmatprep.subr.bf16.mxu0 0
        %2343 = vmatpush1.bf16.msra.mxu0 0
        %2344 = vmatprep.subr.bf16.mxu0 0
        %2345 = vmatpush1.bf16.msra.mxu0 0
        %2346 = vmatprep.subr.bf16.mxu0 0
        %2347 = vmatpush1.bf16.msra.mxu0 0
        %2348 = vmatprep.subr.bf16.mxu0 0
        %2349 = vmatpush1.bf16.msra.mxu0 0
        %2350 = vmatprep.subr.bf16.mxu0 0
        %2351 = vmatpush1.bf16.msra.mxu0 0
        %2352 = vmatprep.subr.bf16.mxu0 0
        %2353 = vmatpush1.bf16.msra.mxu0 0
        %2354 = vmatprep.mubr.bf16.mxu0 0
        %2355 = vmatmul.mubr.bf16.gmra.mrb[0].mxu0 %v2320
        %v2356 = vpop.f32.mrb[0].mxu0
        %v2357 = vadd.f32 0.0, %v2356
        %v2358 = vpop.f32.mrb[0].mxu0
        %v2359 = vadd.f32 0.0, %v2358
        %v2360 = vpop.f32.mrb[0].mxu0
        %v2361 = vpop.f32.mrb[0].mxu0
        %2362 = vdwg.mxu0
        %2363 = vmatprep.subr.bf16.mxu0 %v2306
        %2364 = vmatpush1.bf16.msra.mxu0 %v2305
        %2365 = vmatprep.subr.bf16.mxu0 %v2310
        %2366 = vmatpush1.bf16.msra.mxu0 %v2309
        %2367 = vmatprep.subr.bf16.mxu0 0
        %2368 = vmatpush1.bf16.msra.mxu0 0
        %2369 = vmatprep.subr.bf16.mxu0 0
        %2370 = vmatpush1.bf16.msra.mxu0 0
        %2371 = vmatprep.subr.bf16.mxu0 0
        %2372 = vmatpush1.bf16.msra.mxu0 0
        %2373 = vmatprep.subr.bf16.mxu0 0
        %2374 = vmatpush1.bf16.msra.mxu0 0
        %2375 = vmatprep.subr.bf16.mxu0 0
        %2376 = vmatpush1.bf16.msra.mxu0 0
        %2377 = vmatprep.subr.bf16.mxu0 0
        %2378 = vmatpush1.bf16.msra.mxu0 0
        %2379 = vmatprep.subr.bf16.mxu0 0
        %2380 = vmatpush1.bf16.msra.mxu0 0
        %2381 = vmatprep.subr.bf16.mxu0 0
        %2382 = vmatpush1.bf16.msra.mxu0 0
        %2383 = vmatprep.subr.bf16.mxu0 0
        %2384 = vmatpush1.bf16.msra.mxu0 0
        %2385 = vmatprep.subr.bf16.mxu0 0
        %2386 = vmatpush1.bf16.msra.mxu0 0
        %2387 = vmatprep.subr.bf16.mxu0 0
        %2388 = vmatpush1.bf16.msra.mxu0 0
        %2389 = vmatprep.subr.bf16.mxu0 0
        %2390 = vmatpush1.bf16.msra.mxu0 0
        %2391 = vmatprep.subr.bf16.mxu0 0
        %2392 = vmatpush1.bf16.msra.mxu0 0
        %2393 = vmatprep.subr.bf16.mxu0 0
        %2394 = vmatpush1.bf16.msra.mxu0 0
        %2395 = vmatprep.mubr.bf16.mxu0 0
        %2396 = vmatmul.mubr.bf16.gmra.mrb[0].mxu0 %v2320
        %v2397 = vpop.f32.mrb[0].mxu0
        %v2398 = vadd.f32 0.0, %v2397
        %v2399 = vpop.f32.mrb[0].mxu0
        %v2400 = vadd.f32 0.0, %v2399
        %v2401 = vpop.f32.mrb[0].mxu0
        %v2402 = vpop.f32.mrb[0].mxu0
        %2403 = vdwg.mxu0
        %v2404 = vadd.f32 %v2262, %v2357
        %v2405 = vadd.f32 %v2263, %v2359
        %v2406 = vadd.f32 %v2264, %v2398
        %v2407 = vadd.f32 %v2265, %v2400
        %s2408 = scalar_lea.vmem %s483, 384 [#allocation3]
        %v2409 = vld [vmem:[%s2408] sm:$0xff]
        %v2410 = vld [vmem:[%s2408 + $0x8] sm:$0xff]
        %v2411 = vld [vmem:[%s2408 + $0x10] sm:$0xff]
        %v2412 = vld [vmem:[%s2408 + $0x18] sm:$0xff]
        %v2413 = vld [vmem:[%s2408 + $0x20] sm:$0xff]
        %v2414 = vld [vmem:[%s2408 + $0x28] sm:$0xff]
        %v2415 = vld [vmem:[%s2408 + $0x30] sm:$0xff]
        %v2416 = vld [vmem:[%s2408 + $0x38] sm:$0xff]
        %v2417 = vrot.slane %v1580, 6
        %v2418 = vrot.slane %v1581, 5
        %v2419 = vsel %vm1583, %v2418, %v2417
        %v2420 = vpack.c.b16 %v2419, %v2419
        %v2429 = vunpack.c.l.b16 %v2409
        %v2430 = vunpack.c.h.b16 %v2409
        %v2431 = vunpack.c.l.b16 %v2410
        %v2432 = vunpack.c.h.b16 %v2410
        %v2433 = vunpack.c.l.b16 %v2411
        %v2434 = vunpack.c.h.b16 %v2411
        %v2435 = vunpack.c.l.b16 %v2412
        %v2436 = vunpack.c.h.b16 %v2412
        %v2437 = vunpack.c.l.b16 %v2413
        %v2438 = vunpack.c.h.b16 %v2413
        %v2439 = vunpack.c.l.b16 %v2414
        %v2440 = vunpack.c.h.b16 %v2414
        %v2441 = vunpack.c.l.b16 %v2415
        %v2442 = vunpack.c.h.b16 %v2415
        %v2443 = vunpack.c.l.b16 %v2416
        %v2444 = vunpack.c.h.b16 %v2416
        %v2445 = vpack.c.b16 %v2433, %v2429
        %v2446 = vpack.c.b16 %v2434, %v2430
        %v2447 = vpack.c.b16 %v2435, %v2431
        %v2448 = vpack.c.b16 %v2436, %v2432
        %v2449 = vpack.c.b16 %v2441, %v2437
        %v2450 = vpack.c.b16 %v2442, %v2438
        %v2451 = vpack.c.b16 %v2443, %v2439
        %v2452 = vpack.c.b16 %v2444, %v2440
        %v2462 = vsel %vm1626, %v2420, 0
        %2464 = vmatprep.subr.bf16.mxu0 %v2446
        %2465 = vmatpush1.bf16.msra.mxu0 %v2445
        %2466 = vmatprep.subr.bf16.mxu0 %v2450
        %2467 = vmatpush1.bf16.msra.mxu0 %v2449
        %2468 = vmatprep.subr.bf16.mxu0 0
        %2469 = vmatpush1.bf16.msra.mxu0 0
        %2470 = vmatprep.subr.bf16.mxu0 0
        %2471 = vmatpush1.bf16.msra.mxu0 0
        %2472 = vmatprep.subr.bf16.mxu0 0
        %2473 = vmatpush1.bf16.msra.mxu0 0
        %2474 = vmatprep.subr.bf16.mxu0 0
        %2475 = vmatpush1.bf16.msra.mxu0 0
        %2476 = vmatprep.subr.bf16.mxu0 0
        %2477 = vmatpush1.bf16.msra.mxu0 0
        %2478 = vmatprep.subr.bf16.mxu0 0
        %2479 = vmatpush1.bf16.msra.mxu0 0
        %2480 = vmatprep.subr.bf16.mxu0 0
        %2481 = vmatpush1.bf16.msra.mxu0 0
        %2482 = vmatprep.subr.bf16.mxu0 0
        %2483 = vmatpush1.bf16.msra.mxu0 0
        %2484 = vmatprep.subr.bf16.mxu0 0
        %2485 = vmatpush1.bf16.msra.mxu0 0
        %2486 = vmatprep.subr.bf16.mxu0 0
        %2487 = vmatpush1.bf16.msra.mxu0 0
        %2488 = vmatprep.subr.bf16.mxu0 0
        %2489 = vmatpush1.bf16.msra.mxu0 0
        %2490 = vmatprep.subr.bf16.mxu0 0
        %2491 = vmatpush1.bf16.msra.mxu0 0
        %2492 = vmatprep.subr.bf16.mxu0 0
        %2493 = vmatpush1.bf16.msra.mxu0 0
        %2494 = vmatprep.subr.bf16.mxu0 0
        %2495 = vmatpush1.bf16.msra.mxu0 0
        %2496 = vmatprep.mubr.bf16.mxu0 0
        %2497 = vmatmul.mubr.bf16.gmra.mrb[0].mxu0 %v2462
        %v2498 = vpop.f32.mrb[0].mxu0
        %v2499 = vadd.f32 0.0, %v2498
        %v2500 = vpop.f32.mrb[0].mxu0
        %v2501 = vadd.f32 0.0, %v2500
        %v2502 = vpop.f32.mrb[0].mxu0
        %v2503 = vpop.f32.mrb[0].mxu0
        %2504 = vdwg.mxu0
        %2505 = vmatprep.subr.bf16.mxu0 %v2448
        %2506 = vmatpush1.bf16.msra.mxu0 %v2447
        %2507 = vmatprep.subr.bf16.mxu0 %v2452
        %2508 = vmatpush1.bf16.msra.mxu0 %v2451
        %2509 = vmatprep.subr.bf16.mxu0 0
        %2510 = vmatpush1.bf16.msra.mxu0 0
        %2511 = vmatprep.subr.bf16.mxu0 0
        %2512 = vmatpush1.bf16.msra.mxu0 0
        %2513 = vmatprep.subr.bf16.mxu0 0
        %2514 = vmatpush1.bf16.msra.mxu0 0
        %2515 = vmatprep.subr.bf16.mxu0 0
        %2516 = vmatpush1.bf16.msra.mxu0 0
        %2517 = vmatprep.subr.bf16.mxu0 0
        %2518 = vmatpush1.bf16.msra.mxu0 0
        %2519 = vmatprep.subr.bf16.mxu0 0
        %2520 = vmatpush1.bf16.msra.mxu0 0
        %2521 = vmatprep.subr.bf16.mxu0 0
        %2522 = vmatpush1.bf16.msra.mxu0 0
        %2523 = vmatprep.subr.bf16.mxu0 0
        %2524 = vmatpush1.bf16.msra.mxu0 0
        %2525 = vmatprep.subr.bf16.mxu0 0
        %2526 = vmatpush1.bf16.msra.mxu0 0
        %2527 = vmatprep.subr.bf16.mxu0 0
        %2528 = vmatpush1.bf16.msra.mxu0 0
        %2529 = vmatprep.subr.bf16.mxu0 0
        %2530 = vmatpush1.bf16.msra.mxu0 0
        %2531 = vmatprep.subr.bf16.mxu0 0
        %2532 = vmatpush1.bf16.msra.mxu0 0
        %2533 = vmatprep.subr.bf16.mxu0 0
        %2534 = vmatpush1.bf16.msra.mxu0 0
        %2535 = vmatprep.subr.bf16.mxu0 0
        %2536 = vmatpush1.bf16.msra.mxu0 0
        %2537 = vmatprep.mubr.bf16.mxu0 0
        %2538 = vmatmul.mubr.bf16.gmra.mrb[0].mxu0 %v2462
        %v2539 = vpop.f32.mrb[0].mxu0
        %v2540 = vadd.f32 0.0, %v2539
        %v2541 = vpop.f32.mrb[0].mxu0
        %v2542 = vadd.f32 0.0, %v2541
        %v2543 = vpop.f32.mrb[0].mxu0
        %v2544 = vpop.f32.mrb[0].mxu0
        %2545 = vdwg.mxu0
        %v2546 = vadd.f32 %v2404, %v2499
        %v2547 = vadd.f32 %v2405, %v2501
        %v2548 = vadd.f32 %v2406, %v2540
        %v2549 = vadd.f32 %v2407, %v2542
        %s2550 = scalar_lea.vmem %s483, 448 [#allocation3]
        %v2551 = vld [vmem:[%s2550] sm:$0xff]
        %v2552 = vld [vmem:[%s2550 + $0x8] sm:$0xff]
        %v2553 = vld [vmem:[%s2550 + $0x10] sm:$0xff]
        %v2554 = vld [vmem:[%s2550 + $0x18] sm:$0xff]
        %v2555 = vld [vmem:[%s2550 + $0x20] sm:$0xff]
        %v2556 = vld [vmem:[%s2550 + $0x28] sm:$0xff]
        %v2557 = vld [vmem:[%s2550 + $0x30] sm:$0xff]
        %v2558 = vld [vmem:[%s2550 + $0x38] sm:$0xff]
        %v2559 = vrot.slane %v1580, 7
        %v2560 = vrot.slane %v1581, 6
        %v2561 = vsel %vm1583, %v2560, %v2559
        %v2562 = vpack.c.b16 %v2561, %v2561
        %v2571 = vunpack.c.l.b16 %v2551
        %v2572 = vunpack.c.h.b16 %v2551
        %v2573 = vunpack.c.l.b16 %v2552
        %v2574 = vunpack.c.h.b16 %v2552
        %v2575 = vunpack.c.l.b16 %v2553
        %v2576 = vunpack.c.h.b16 %v2553
        %v2577 = vunpack.c.l.b16 %v2554
        %v2578 = vunpack.c.h.b16 %v2554
        %v2579 = vunpack.c.l.b16 %v2555
        %v2580 = vunpack.c.h.b16 %v2555
        %v2581 = vunpack.c.l.b16 %v2556
        %v2582 = vunpack.c.h.b16 %v2556
        %v2583 = vunpack.c.l.b16 %v2557
        %v2584 = vunpack.c.h.b16 %v2557
        %v2585 = vunpack.c.l.b16 %v2558
        %v2586 = vunpack.c.h.b16 %v2558
        %v2587 = vpack.c.b16 %v2575, %v2571
        %v2588 = vpack.c.b16 %v2576, %v2572
        %v2589 = vpack.c.b16 %v2577, %v2573
        %v2590 = vpack.c.b16 %v2578, %v2574
        %v2591 = vpack.c.b16 %v2583, %v2579
        %v2592 = vpack.c.b16 %v2584, %v2580
        %v2593 = vpack.c.b16 %v2585, %v2581
        %v2594 = vpack.c.b16 %v2586, %v2582
        %v2604 = vsel %vm1626, %v2562, 0
        %2606 = vmatprep.subr.bf16.mxu0 %v2588
        %2607 = vmatpush1.bf16.msra.mxu0 %v2587
        %2608 = vmatprep.subr.bf16.mxu0 %v2592
        %2609 = vmatpush1.bf16.msra.mxu0 %v2591
        %2610 = vmatprep.subr.bf16.mxu0 0
        %2611 = vmatpush1.bf16.msra.mxu0 0
        %2612 = vmatprep.subr.bf16.mxu0 0
        %2613 = vmatpush1.bf16.msra.mxu0 0
        %2614 = vmatprep.subr.bf16.mxu0 0
        %2615 = vmatpush1.bf16.msra.mxu0 0
        %2616 = vmatprep.subr.bf16.mxu0 0
        %2617 = vmatpush1.bf16.msra.mxu0 0
        %2618 = vmatprep.subr.bf16.mxu0 0
        %2619 = vmatpush1.bf16.msra.mxu0 0
        %2620 = vmatprep.subr.bf16.mxu0 0
        %2621 = vmatpush1.bf16.msra.mxu0 0
        %2622 = vmatprep.subr.bf16.mxu0 0
        %2623 = vmatpush1.bf16.msra.mxu0 0
        %2624 = vmatprep.subr.bf16.mxu0 0
        %2625 = vmatpush1.bf16.msra.mxu0 0
        %2626 = vmatprep.subr.bf16.mxu0 0
        %2627 = vmatpush1.bf16.msra.mxu0 0
        %2628 = vmatprep.subr.bf16.mxu0 0
        %2629 = vmatpush1.bf16.msra.mxu0 0
        %2630 = vmatprep.subr.bf16.mxu0 0
        %2631 = vmatpush1.bf16.msra.mxu0 0
        %2632 = vmatprep.subr.bf16.mxu0 0
        %2633 = vmatpush1.bf16.msra.mxu0 0
        %2634 = vmatprep.subr.bf16.mxu0 0
        %2635 = vmatpush1.bf16.msra.mxu0 0
        %2636 = vmatprep.subr.bf16.mxu0 0
        %2637 = vmatpush1.bf16.msra.mxu0 0
        %2638 = vmatprep.mubr.bf16.mxu0 0
        %2639 = vmatmul.mubr.bf16.gmra.mrb[0].mxu0 %v2604
        %v2640 = vpop.f32.mrb[0].mxu0
        %v2641 = vadd.f32 0.0, %v2640
        %v2642 = vpop.f32.mrb[0].mxu0
        %v2643 = vadd.f32 0.0, %v2642
        %v2644 = vpop.f32.mrb[0].mxu0
        %v2645 = vpop.f32.mrb[0].mxu0
        %2646 = vdwg.mxu0
        %2647 = vmatprep.subr.bf16.mxu0 %v2590
        %2648 = vmatpush1.bf16.msra.mxu0 %v2589
        %2649 = vmatprep.subr.bf16.mxu0 %v2594
        %2650 = vmatpush1.bf16.msra.mxu0 %v2593
        %2651 = vmatprep.subr.bf16.mxu0 0
        %2652 = vmatpush1.bf16.msra.mxu0 0
        %2653 = vmatprep.subr.bf16.mxu0 0
        %2654 = vmatpush1.bf16.msra.mxu0 0
        %2655 = vmatprep.subr.bf16.mxu0 0
        %2656 = vmatpush1.bf16.msra.mxu0 0
        %2657 = vmatprep.subr.bf16.mxu0 0
        %2658 = vmatpush1.bf16.msra.mxu0 0
        %2659 = vmatprep.subr.bf16.mxu0 0
        %2660 = vmatpush1.bf16.msra.mxu0 0
        %2661 = vmatprep.subr.bf16.mxu0 0
        %2662 = vmatpush1.bf16.msra.mxu0 0
        %2663 = vmatprep.subr.bf16.mxu0 0
        %2664 = vmatpush1.bf16.msra.mxu0 0
        %2665 = vmatprep.subr.bf16.mxu0 0
        %2666 = vmatpush1.bf16.msra.mxu0 0
        %2667 = vmatprep.subr.bf16.mxu0 0
        %2668 = vmatpush1.bf16.msra.mxu0 0
        %2669 = vmatprep.subr.bf16.mxu0 0
        %2670 = vmatpush1.bf16.msra.mxu0 0
        %2671 = vmatprep.subr.bf16.mxu0 0
        %2672 = vmatpush1.bf16.msra.mxu0 0
        %2673 = vmatprep.subr.bf16.mxu0 0
        %2674 = vmatpush1.bf16.msra.mxu0 0
        %2675 = vmatprep.subr.bf16.mxu0 0
        %2676 = vmatpush1.bf16.msra.mxu0 0
        %2677 = vmatprep.subr.bf16.mxu0 0
        %2678 = vmatpush1.bf16.msra.mxu0 0
        %2679 = vmatprep.mubr.bf16.mxu0 0
        %2680 = vmatmul.mubr.bf16.gmra.mrb[0].mxu0 %v2604
        %v2681 = vpop.f32.mrb[0].mxu0
        %v2682 = vadd.f32 0.0, %v2681
        %v2683 = vpop.f32.mrb[0].mxu0
        %v2684 = vadd.f32 0.0, %v2683
        %v2685 = vpop.f32.mrb[0].mxu0
        %v2686 = vpop.f32.mrb[0].mxu0
        %2687 = vdwg.mxu0
        %v2688 = vadd.f32 %v2546, %v2641
        %v2689 = vadd.f32 %v2547, %v2643
        %v2690 = vadd.f32 %v2548, %v2682
        %v2691 = vadd.f32 %v2549, %v2684
        %v2692 = vld [vmem:[%s526] sm:$0xf]
        %v2694 = vlaneseq
        %v2695 = vshrl.u32 %v2694, 7
        %v2696 = vsub.s32 0, %v2695
        %v2697 = vrot.slane %v2692, %v2696
        %v2698 = vlaneseq
        %v2699 = vshrl.u32 %v2698, 7
        %v2700 = vsub.s32 1, %v2699
        %v2701 = vrot.slane %v2692, %v2700
        %v2702 = vlaneseq
        %v2703 = vshrl.u32 %v2702, 7
        %v2704 = vsub.s32 2, %v2703
        %v2705 = vrot.slane %v2692, %v2704
        %v2706 = vlaneseq
        %v2707 = vshrl.u32 %v2706, 7
        %v2708 = vsub.s32 3, %v2707
        %v2709 = vrot.slane %v2692, %v2708
        %v2714 = vadd.f32 %v2688, %v2697
        %v2715 = vadd.f32 %v2689, %v2701
        %v2716 = vadd.f32 %v2690, %v2705
        %v2717 = vadd.f32 %v2691, %v2709
        %v2718 = vld [vmem:[#allocation4] sm:$0x3]
        %v2719 = vpack.c.bf16 %v2714, %v2714
        %v2720 = vpack.c.bf16 %v2715, %v2715
        %v2721 = vpack.c.bf16 %v2716, %v2716
        %v2722 = vpack.c.bf16 %v2717, %v2717
        %v2723 = vld [vmem:[%s532] sm:$0xf]
        %v2724 = vld [vmem:[%s532 + $0x4] sm:$0xf]
        %v2725 = vld [vmem:[%s532 + $0x8] sm:$0xf]
        %v2726 = vld [vmem:[%s532 + $0xc] sm:$0xf]
        %v2727 = vld [vmem:[%s532 + $0x10] sm:$0xf]
        %v2728 = vld [vmem:[%s532 + $0x14] sm:$0xf]
        %v2729 = vld [vmem:[%s532 + $0x18] sm:$0xf]
        %v2730 = vld [vmem:[%s532 + $0x1c] sm:$0xf]
        %v2731 = vld [vmem:[%s532 + $0x20] sm:$0xf]
        %v2732 = vld [vmem:[%s532 + $0x24] sm:$0xf]
        %v2733 = vld [vmem:[%s532 + $0x28] sm:$0xf]
        %v2734 = vld [vmem:[%s532 + $0x2c] sm:$0xf]
        %v2735 = vld [vmem:[%s532 + $0x30] sm:$0xf]
        %v2736 = vld [vmem:[%s532 + $0x34] sm:$0xf]
        %v2737 = vld [vmem:[%s532 + $0x38] sm:$0xf]
        %v2738 = vld [vmem:[%s532 + $0x3c] sm:$0xf]
        %v2739 = vld [vmem:[%s532 + $0x40] sm:$0xf]
        %v2740 = vld [vmem:[%s532 + $0x44] sm:$0xf]
        %v2741 = vld [vmem:[%s532 + $0x48] sm:$0xf]
        %v2742 = vld [vmem:[%s532 + $0x4c] sm:$0xf]
        %v2743 = vld [vmem:[%s532 + $0x50] sm:$0xf]
        %v2744 = vld [vmem:[%s532 + $0x54] sm:$0xf]
        %v2745 = vld [vmem:[%s532 + $0x58] sm:$0xf]
        %v2746 = vld [vmem:[%s532 + $0x5c] sm:$0xf]
        %v2747 = vld [vmem:[%s532 + $0x60] sm:$0xf]
        %v2748 = vld [vmem:[%s532 + $0x64] sm:$0xf]
        %v2749 = vld [vmem:[%s532 + $0x68] sm:$0xf]
        %v2750 = vld [vmem:[%s532 + $0x6c] sm:$0xf]
        %v2751 = vld [vmem:[%s532 + $0x70] sm:$0xf]
        %v2752 = vld [vmem:[%s532 + $0x74] sm:$0xf]
        %v2753 = vld [vmem:[%s532 + $0x78] sm:$0xf]
        %v2754 = vld [vmem:[%s532 + $0x7c] sm:$0xf]
        %v2755 = vld [vmem:[%s532 + $0x80] sm:$0xf]
        %v2756 = vld [vmem:[%s532 + $0x84] sm:$0xf]
        %v2757 = vld [vmem:[%s532 + $0x88] sm:$0xf]
        %v2758 = vld [vmem:[%s532 + $0x8c] sm:$0xf]
        %v2759 = vld [vmem:[%s532 + $0x90] sm:$0xf]
        %v2760 = vld [vmem:[%s532 + $0x94] sm:$0xf]
        %v2761 = vld [vmem:[%s532 + $0x98] sm:$0xf]
        %v2762 = vld [vmem:[%s532 + $0x9c] sm:$0xf]
        %v2763 = vld [vmem:[%s532 + $0xa0] sm:$0xf]
        %v2764 = vld [vmem:[%s532 + $0xa4] sm:$0xf]
        %v2765 = vld [vmem:[%s532 + $0xa8] sm:$0xf]
        %v2766 = vld [vmem:[%s532 + $0xac] sm:$0xf]
        %v2767 = vld [vmem:[%s532 + $0xb0] sm:$0xf]
        %v2768 = vld [vmem:[%s532 + $0xb4] sm:$0xf]
        %v2769 = vld [vmem:[%s532 + $0xb8] sm:$0xf]
        %v2770 = vld [vmem:[%s532 + $0xbc] sm:$0xf]
        %v2771 = vld [vmem:[%s532 + $0xc0] sm:$0xf]
        %v2772 = vld [vmem:[%s532 + $0xc4] sm:$0xf]
        %v2773 = vld [vmem:[%s532 + $0xc8] sm:$0xf]
        %v2774 = vld [vmem:[%s532 + $0xcc] sm:$0xf]
        %v2775 = vld [vmem:[%s532 + $0xd0] sm:$0xf]
        %v2776 = vld [vmem:[%s532 + $0xd4] sm:$0xf]
        %v2777 = vld [vmem:[%s532 + $0xd8] sm:$0xf]
        %v2778 = vld [vmem:[%s532 + $0xdc] sm:$0xf]
        %v2779 = vld [vmem:[%s532 + $0xe0] sm:$0xf]
        %v2780 = vld [vmem:[%s532 + $0xe4] sm:$0xf]
        %v2781 = vld [vmem:[%s532 + $0xe8] sm:$0xf]
        %v2782 = vld [vmem:[%s532 + $0xec] sm:$0xf]
        %v2783 = vld [vmem:[%s532 + $0xf0] sm:$0xf]
        %v2784 = vld [vmem:[%s532 + $0xf4] sm:$0xf]
        %v2785 = vld [vmem:[%s532 + $0xf8] sm:$0xf]
        %v2786 = vld [vmem:[%s532 + $0xfc] sm:$0xf]
        %v2851 = vunpack.c.l.b16 %v2723
        %v2852 = vunpack.c.l.b16 %v2724
        %v2853 = vunpack.c.l.b16 %v2725
        %v2854 = vunpack.c.l.b16 %v2726
        %v2855 = vunpack.c.l.b16 %v2727
        %v2856 = vunpack.c.l.b16 %v2728
        %v2857 = vunpack.c.l.b16 %v2729
        %v2858 = vunpack.c.l.b16 %v2730
        %v2859 = vunpack.c.l.b16 %v2731
        %v2860 = vunpack.c.l.b16 %v2732
        %v2861 = vunpack.c.l.b16 %v2733
        %v2862 = vunpack.c.l.b16 %v2734
        %v2863 = vunpack.c.l.b16 %v2735
        %v2864 = vunpack.c.l.b16 %v2736
        %v2865 = vunpack.c.l.b16 %v2737
        %v2866 = vunpack.c.l.b16 %v2738
        %v2867 = vunpack.c.l.b16 %v2739
        %v2868 = vunpack.c.l.b16 %v2740
        %v2869 = vunpack.c.l.b16 %v2741
        %v2870 = vunpack.c.l.b16 %v2742
        %v2871 = vunpack.c.l.b16 %v2743
        %v2872 = vunpack.c.l.b16 %v2744
        %v2873 = vunpack.c.l.b16 %v2745
        %v2874 = vunpack.c.l.b16 %v2746
        %v2875 = vunpack.c.l.b16 %v2747
        %v2876 = vunpack.c.l.b16 %v2748
        %v2877 = vunpack.c.l.b16 %v2749
        %v2878 = vunpack.c.l.b16 %v2750
        %v2879 = vunpack.c.l.b16 %v2751
        %v2880 = vunpack.c.l.b16 %v2752
        %v2881 = vunpack.c.l.b16 %v2753
        %v2882 = vunpack.c.l.b16 %v2754
        %v2883 = vunpack.c.l.b16 %v2755
        %v2884 = vunpack.c.l.b16 %v2756
        %v2885 = vunpack.c.l.b16 %v2757
        %v2886 = vunpack.c.l.b16 %v2758
        %v2887 = vunpack.c.l.b16 %v2759
        %v2888 = vunpack.c.l.b16 %v2760
        %v2889 = vunpack.c.l.b16 %v2761
        %v2890 = vunpack.c.l.b16 %v2762
        %v2891 = vunpack.c.l.b16 %v2763
        %v2892 = vunpack.c.l.b16 %v2764
        %v2893 = vunpack.c.l.b16 %v2765
        %v2894 = vunpack.c.l.b16 %v2766
        %v2895 = vunpack.c.l.b16 %v2767
        %v2896 = vunpack.c.l.b16 %v2768
        %v2897 = vunpack.c.l.b16 %v2769
        %v2898 = vunpack.c.l.b16 %v2770
        %v2899 = vunpack.c.l.b16 %v2771
        %v2900 = vunpack.c.l.b16 %v2772
        %v2901 = vunpack.c.l.b16 %v2773
        %v2902 = vunpack.c.l.b16 %v2774
        %v2903 = vunpack.c.l.b16 %v2775
        %v2904 = vunpack.c.l.b16 %v2776
        %v2905 = vunpack.c.l.b16 %v2777
        %v2906 = vunpack.c.l.b16 %v2778
        %v2907 = vunpack.c.l.b16 %v2779
        %v2908 = vunpack.c.l.b16 %v2780
        %v2909 = vunpack.c.l.b16 %v2781
        %v2910 = vunpack.c.l.b16 %v2782
        %v2911 = vunpack.c.l.b16 %v2783
        %v2912 = vunpack.c.l.b16 %v2784
        %v2913 = vunpack.c.l.b16 %v2785
        %v2914 = vunpack.c.l.b16 %v2786
        %v2915 = vpack.c.b16 %v2852, %v2851
        %v2916 = vpack.c.b16 %v2854, %v2853
        %v2917 = vpack.c.b16 %v2856, %v2855
        %v2918 = vpack.c.b16 %v2858, %v2857
        %v2919 = vpack.c.b16 %v2860, %v2859
        %v2920 = vpack.c.b16 %v2862, %v2861
        %v2921 = vpack.c.b16 %v2864, %v2863
        %v2922 = vpack.c.b16 %v2866, %v2865
        %v2923 = vpack.c.b16 %v2868, %v2867
        %v2924 = vpack.c.b16 %v2870, %v2869
        %v2925 = vpack.c.b16 %v2872, %v2871
        %v2926 = vpack.c.b16 %v2874, %v2873
        %v2927 = vpack.c.b16 %v2876, %v2875
        %v2928 = vpack.c.b16 %v2878, %v2877
        %v2929 = vpack.c.b16 %v2880, %v2879
        %v2930 = vpack.c.b16 %v2882, %v2881
        %v2931 = vpack.c.b16 %v2884, %v2883
        %v2932 = vpack.c.b16 %v2886, %v2885
        %v2933 = vpack.c.b16 %v2888, %v2887
        %v2934 = vpack.c.b16 %v2890, %v2889
        %v2935 = vpack.c.b16 %v2892, %v2891
        %v2936 = vpack.c.b16 %v2894, %v2893
        %v2937 = vpack.c.b16 %v2896, %v2895
        %v2938 = vpack.c.b16 %v2898, %v2897
        %v2939 = vpack.c.b16 %v2900, %v2899
        %v2940 = vpack.c.b16 %v2902, %v2901
        %v2941 = vpack.c.b16 %v2904, %v2903
        %v2942 = vpack.c.b16 %v2906, %v2905
        %v2943 = vpack.c.b16 %v2908, %v2907
        %v2944 = vpack.c.b16 %v2910, %v2909
        %v2945 = vpack.c.b16 %v2912, %v2911
        %v2946 = vpack.c.b16 %v2914, %v2913
        %2979 = vmatprep.subr.bf16.mxu0 0
        %2980 = vmatpush1.bf16.msra.mxu0 %v2915
        %2981 = vmatprep.subr.bf16.mxu0 0
        %2982 = vmatpush1.bf16.msra.mxu0 %v2916
        %2983 = vmatprep.subr.bf16.mxu0 0
        %2984 = vmatpush1.bf16.msra.mxu0 %v2917
        %2985 = vmatprep.subr.bf16.mxu0 0
        %2986 = vmatpush1.bf16.msra.mxu0 %v2918
        %2987 = vmatprep.subr.bf16.mxu0 0
        %2988 = vmatpush1.bf16.msra.mxu0 %v2919
        %2989 = vmatprep.subr.bf16.mxu0 0
        %2990 = vmatpush1.bf16.msra.mxu0 %v2920
        %2991 = vmatprep.subr.bf16.mxu0 0
        %2992 = vmatpush1.bf16.msra.mxu0 %v2921
        %2993 = vmatprep.subr.bf16.mxu0 0
        %2994 = vmatpush1.bf16.msra.mxu0 %v2922
        %2995 = vmatprep.subr.bf16.mxu0 0
        %2996 = vmatpush1.bf16.msra.mxu0 %v2923
        %2997 = vmatprep.subr.bf16.mxu0 0
        %2998 = vmatpush1.bf16.msra.mxu0 %v2924
        %2999 = vmatprep.subr.bf16.mxu0 0
        %3000 = vmatpush1.bf16.msra.mxu0 %v2925
        %3001 = vmatprep.subr.bf16.mxu0 0
        %3002 = vmatpush1.bf16.msra.mxu0 %v2926
        %3003 = vmatprep.subr.bf16.mxu0 0
        %3004 = vmatpush1.bf16.msra.mxu0 %v2927
        %3005 = vmatprep.subr.bf16.mxu0 0
        %3006 = vmatpush1.bf16.msra.mxu0 %v2928
        %3007 = vmatprep.subr.bf16.mxu0 0
        %3008 = vmatpush1.bf16.msra.mxu0 %v2929
        %3009 = vmatprep.subr.bf16.mxu0 0
        %3010 = vmatpush1.bf16.msra.mxu0 %v2930
        %3011 = vmatprep.mubr.bf16.mxu0 %v2720
        %3012 = vmatmul.mubr.bf16.gmra.mrb[0].mxu0 %v2719
        %v3013 = vpop.f32.mrb[0].mxu0
        %v3014 = vadd.f32 0.0, %v3013
        %v3015 = vpop.f32.mrb[0].mxu0
        %v3016 = vpop.f32.mrb[0].mxu0
        %v3017 = vpop.f32.mrb[0].mxu0
        %3018 = vdwg.mxu0
        %3019 = vmatprep.subr.bf16.mxu0 0
        %3020 = vmatpush1.bf16.msra.mxu0 %v2931
        %3021 = vmatprep.subr.bf16.mxu0 0
        %3022 = vmatpush1.bf16.msra.mxu0 %v2932
        %3023 = vmatprep.subr.bf16.mxu0 0
        %3024 = vmatpush1.bf16.msra.mxu0 %v2933
        %3025 = vmatprep.subr.bf16.mxu0 0
        %3026 = vmatpush1.bf16.msra.mxu0 %v2934
        %3027 = vmatprep.subr.bf16.mxu0 0
        %3028 = vmatpush1.bf16.msra.mxu0 %v2935
        %3029 = vmatprep.subr.bf16.mxu0 0
        %3030 = vmatpush1.bf16.msra.mxu0 %v2936
        %3031 = vmatprep.subr.bf16.mxu0 0
        %3032 = vmatpush1.bf16.msra.mxu0 %v2937
        %3033 = vmatprep.subr.bf16.mxu0 0
        %3034 = vmatpush1.bf16.msra.mxu0 %v2938
        %3035 = vmatprep.subr.bf16.mxu0 0
        %3036 = vmatpush1.bf16.msra.mxu0 %v2939
        %3037 = vmatprep.subr.bf16.mxu0 0
        %3038 = vmatpush1.bf16.msra.mxu0 %v2940
        %3039 = vmatprep.subr.bf16.mxu0 0
        %3040 = vmatpush1.bf16.msra.mxu0 %v2941
        %3041 = vmatprep.subr.bf16.mxu0 0
        %3042 = vmatpush1.bf16.msra.mxu0 %v2942
        %3043 = vmatprep.subr.bf16.mxu0 0
        %3044 = vmatpush1.bf16.msra.mxu0 %v2943
        %3045 = vmatprep.subr.bf16.mxu0 0
        %3046 = vmatpush1.bf16.msra.mxu0 %v2944
        %3047 = vmatprep.subr.bf16.mxu0 0
        %3048 = vmatpush1.bf16.msra.mxu0 %v2945
        %3049 = vmatprep.subr.bf16.mxu0 0
        %3050 = vmatpush1.bf16.msra.mxu0 %v2946
        %3051 = vmatprep.mubr.bf16.mxu0 %v2722
        %3052 = vmatmul.mubr.bf16.gmra.mrb[0].mxu0 %v2721
        %v3053 = vpop.f32.mrb[0].mxu0
        %v3054 = vadd.f32 %v3014, %v3053
        %v3055 = vpop.f32.mrb[0].mxu0
        %v3056 = vpop.f32.mrb[0].mxu0
        %v3057 = vpop.f32.mrb[0].mxu0
        %3058 = vdwg.mxu0
        %v3059 = vadd.f32 %v2718, %v3054
        %vm3060 = vcmask 254976
        %3061 = vst.msk [vmem:[#allocation4] sm:$0x3] %vm3060, %v3059
        // Predicated region
        $region88: #{rnn_decoder_forward.1} parent=78 // pred_check
          %p3062 = pneg %p260
        $region89: #{rnn_decoder_forward.1} parent=78 // pred_check_branch
          %3064 = sbr.rel (%p3062) target = $region91
        $region90: #{rnn_decoder_forward.1} parent=78 // pred_region
          %s3066 = ssub.s32 32, 32
          %3067 = vsyncadd [#allocation5], %s3066
          %s3069 = sshll.u32 [#allocation4], 4
          %s3070 = int_to_ptr.vmem [resolvable:$true] %s3069
          %3072 = dma.vmem_to_hbm [thread:$0]  %s3070, 32, %s10, [#allocation5]
        $region91: #{rnn_decoder_forward.1} parent=78 // pred_fallthru
          _
        // Predicated region
        $region92: #{rnn_decoder_forward.1} parent=78 // pred_check
          %p3073 = pneg %p260
        $region93: #{rnn_decoder_forward.1} parent=78 // pred_check_branch
          %3075 = sbr.rel (%p3073) target = $region95
        $region94: #{rnn_decoder_forward.1} parent=78 // pred_region
          %3076 = dma.done [#allocation5], 32
        $region95: #{rnn_decoder_forward.1} parent=78 // pred_fallthru
          _
      $region79: #{rnn_decoder_forward.1} parent=5 // pred_fallthru
        _
      %p3077 = scmp.le.s32.totalorder 2, %s17
      // Predicated region
      $region96: #{rnn_decoder_forward.1} parent=5 // pred_check
        %p3078 = pneg %p3077
      $region97: #{rnn_decoder_forward.1} parent=5 // pred_check_branch
        %3080 = sbr.rel (%p3078) target = $region99
      $region98: #{rnn_decoder_forward.1} parent=5 // pred_region
        %s3081 = ssub.s32 %s17, 2
      $region99: #{rnn_decoder_forward.1} parent=5 // pred_fallthru
        _
    $region6: #{rnn_decoder_forward.1} parent=1 // loop_footer
      %s21 = sadd.s32 1, %s17
    $region7: #{rnn_decoder_forward.1} parent=1 // loop_footer_branch
      %16 = sbr.rel target = $region3
    $region8: #{rnn_decoder_forward.1} parent=1 // loop_exit
      _
    %3082 = vsyncpa [#allocation5], 1
    %s3083 = scalar_lea.sflag [#allocation5], 1
    %3084 = vsyncpa %s3083, 1

</llo_original>
